<compile_context>
chip_gen: v5e
topology: v5e:2x2
jax: 0.10.0
libtpu: 0.0.40
codegen_flags: <defaults>
</compile_context>

<pallas_src>
import functools

import jax
import jax.numpy as jnp
import numpy as np
from jax.experimental import pallas as pl
from jax.experimental.pallas import tpu as pltpu

LANE = 128      # TPU lane width (last dim of a vreg)
SUBLANE = 8     # f32 sublane tiling


def _round_up(x, m):
    return ((x + m - 1) // m) * m


# ----------------------------------------------------------------------------
# Deterministic parameter construction (mirrors weight()/bias() in the torch code)
# ----------------------------------------------------------------------------
def _weight(key, in_dim, out_dim):
    # torch.nn.init.kaiming_uniform_(W[out,in], a=sqrt(5)) -> U(-1/sqrt(in), 1/sqrt(in))
    if in_dim > 0 and out_dim > 0:
        bound = 1.0 / np.sqrt(in_dim)
        return jax.random.uniform(key, (out_dim, in_dim), jnp.float32, -bound, bound)
    return jnp.zeros((out_dim, in_dim), jnp.float32)


def _bias(key, n):
    # torch.nn.init.normal_ -> N(0, 1)
    return jax.random.normal(key, (n,), jnp.float32)


def make_picnn_params(key, nonconvex_layersizes, convex_layersizes):
    usize = list(nonconvex_layersizes)
    zsize = list(convex_layersizes)
    assert len(usize) + 1 == len(zsize)
    nhidden = len(zsize) - 1
    ysize = zsize[0]

    keys = iter(jax.random.split(key, 16 * nhidden + 8))
    p = {"Wzz": [], "Wyz": [], "bz": [], "by": [], "bz1": [],
         "Wuz": [], "Wuy": [], "Wuz1": [], "Wuutilde": [], "btilde": []}
    for lay in range(nhidden):
        p["Wzz"].append(_weight(next(keys), zsize[lay], zsize[lay + 1]))
        p["Wyz"].append(_weight(next(keys), ysize, zsize[lay + 1]))
        p["bz"].append(_bias(next(keys), zsize[lay]))
        p["by"].append(_bias(next(keys), ysize))
        p["bz1"].append(_bias(next(keys), zsize[lay + 1]))
        p["Wuz"].append(_weight(next(keys), usize[lay], zsize[lay]))
        p["Wuy"].append(_weight(next(keys), usize[lay], ysize))
        p["Wuz1"].append(_weight(next(keys), usize[lay], zsize[lay + 1]))
    for lay in range(nhidden - 1):
        p["Wuutilde"].append(_weight(next(keys), usize[lay], usize[lay + 1]))
        p["btilde"].append(_bias(next(keys), usize[lay + 1]))

    # Wzz made non-negative; Wzz[0] zeroed (as in __init__).
    p["Wzz"] = [jnp.abs(w) for w in p["Wzz"]]
    p["Wzz"][0] = jnp.zeros_like(p["Wzz"][0])
    return p


# ----------------------------------------------------------------------------
# Pallas kernel: entire PICNN forward for one batch tile, 2 MXU dots per layer
# ----------------------------------------------------------------------------
def _picnn_kernel(meta, mm_dtype, xs_ref, ys_ref, wu_ref, wz_ref, b_ref, out_ref):
    ys = ys_ref[...]                 # f32 [tb, Yp]
    ui = xs_ref[...]                 # f32 [tb, Up0]
    zi = jnp.zeros_like(ys)          # f32 [tb, Zp0]  (Zp0 == Yp)

    for lm in meta:                  # static Python loop (few layers -> fully unrolled)
        Zp, Yp = lm["Zp"], lm["Yp"]
        if lm["has_u"]:
            # Fused u-projection: one dot with a [Up, Zp+Yp(+Up1)] weight-slab slice.
            wU = wu_ref[lm["wu_r0"]:lm["wu_r0"] + lm["Up"], 0:lm["Nu"]]
            bU = b_ref[lm["bu_row"]:lm["bu_row"] + 1, 0:lm["Nu"]]
            uproj = jnp.dot(ui.astype(mm_dtype), wU,
                            preferred_element_type=jnp.float32) + bU
            zterm = jnp.maximum(zi * uproj[:, 0:Zp], 0.0)
            yterm = ys * uproj[:, Zp:Zp + Yp]
            # bf16 BEFORE the concat (half the store traffic for the concat copies).
            acts = jnp.concatenate(
                [zterm.astype(mm_dtype), yterm.astype(mm_dtype), ui.astype(mm_dtype)],
                axis=-1)
        else:
            zterm = jnp.maximum(zi, 0.0)
            yterm = ys
            acts = jnp.concatenate(
                [zterm.astype(mm_dtype), yterm.astype(mm_dtype)], axis=-1)

        # Fused z-update: [zterm|yterm|ui] @ vstack([Wzz^T; Wyz^T; Wuz1^T]) + bz1.
        wZ = wz_ref[lm["wz_r0"]:lm["wz_r0"] + lm["Kz"], 0:lm["Zp1"]]
        bZ = b_ref[lm["bz_row"]:lm["bz_row"] + 1, 0:lm["Zp1"]]
        zi = jnp.maximum(
            jnp.dot(acts, wZ, preferred_element_type=jnp.float32) + bZ,
            0.0)                                          # g = relu (convex)

        if lm["has_tilde"]:
            off = Zp + Yp
            ui = jnp.tanh(uproj[:, off:off + lm["Up1"]])  # gtilde = tanh

    out_ref[...] = zi


# ----------------------------------------------------------------------------
# Parameter packing: two bf16 weight slabs (per-group column widths) + a small
# f32 bias slab (one bias per row). All widths zero-padded to 128-lane multiples.
# ----------------------------------------------------------------------------
def _pack_picnn_params(params, usize, zsize, matmul_dtype):
    nhidden = len(zsize) - 1
    Yp = _round_up(zsize[0], LANE)
    Zp = [_round_up(z, LANE) for z in zsize]
    Up = [max(LANE, _round_up(u, LANE)) for u in usize]

    # Correctness guard (review): whenever layer i consumes u, the live u activation
    # width must equal usize[i] (same constraint the torch forward implicitly has).
    live_u = usize[0]
    for i in range(nhidden):
        if usize[i] > 0:
            assert live_u == usize[i], (
                f"Unsupported nonconvex_layersizes pattern: layer {i} expects u width "
                f"{usize[i]} but the live u activation has width {live_u}")
        if usize[i] > 0 and i < nhidden - 1:
            live_u = usize[i + 1]

    def pad2(a, r, c):
        return jnp.pad(a, ((0, r - a.shape[0]), (0, c - a.shape[1])))

    def pad1(a, n):
        return jnp.pad(a, (0, n - a.shape[0]))

    wu_blocks, wz_blocks, bias_rows, meta = [], [], [], []
    wu_off = 0
    wz_off = 0
    for i in range(nhidden):
        has_u = usize[i] > 0                   # zero-sized u weights are never packed
        has_tilde = has_u and (i < nhidden - 1)
        Zpi, Zpi1, Upi = Zp[i], Zp[i + 1], Up[i]
        Upi1 = Up[i + 1] if has_tilde else 0
        lm = {"has_u": has_u, "has_tilde": has_tilde,
              "Zp": Zpi, "Zp1": Zpi1, "Yp": Yp, "Up": Upi, "Up1": Upi1}

        if has_u:
            wu_parts = [pad2(params["Wuz"][i].T, Upi, Zpi),
                        pad2(params["Wuy"][i].T, Upi, Yp)]
            bu_parts = [pad1(params["bz"][i], Zpi), pad1(params["by"][i], Yp)]
            if has_tilde:
                wu_parts.append(pad2(params["Wuutilde"][i].T, Upi, Upi1))
                bu_parts.append(pad1(params["btilde"][i], Upi1))
            wu = jnp.concatenate(wu_parts, axis=1)
            lm["Nu"] = wu.shape[1]
            lm["wu_r0"] = wu_off
            wu_blocks.append(wu)
            wu_off += Upi
            lm["bu_row"] = len(bias_rows)
            bias_rows.append(jnp.concatenate(bu_parts))

        wz_parts = [pad2(params["Wzz"][i].T, Zpi, Zpi1),
                    pad2(params["Wyz"][i].T, Yp, Zpi1)]
        if has_u:
            wz_parts.append(pad2(params["Wuz1"][i].T, Upi, Zpi1))
        wz = jnp.concatenate(wz_parts, axis=0)
        lm["Kz"] = wz.shape[0]
        lm["wz_r0"] = wz_off
        wz_blocks.append(wz)
        wz_off += wz.shape[0]
        lm["bz_row"] = len(bias_rows)
        bias_rows.append(pad1(params["bz1"][i], Zpi1))

        meta.append(lm)

    # Per-group column widths (all multiples of 128) -> no cross-group over-padding.
    Cu = max((b.shape[1] for b in wu_blocks), default=LANE)
    Cz = max(b.shape[1] for b in wz_blocks)
    Cb = max(r.shape[0] for r in bias_rows)

    if wu_blocks:
        wu_slab = jnp.concatenate([pad2(b, b.shape[0], Cu) for b in wu_blocks], axis=0)
    else:
        wu_slab = jnp.zeros((SUBLANE, LANE), jnp.float32)   # dummy (never read)
    wu_slab = wu_slab.astype(matmul_dtype)
    wz_slab = jnp.concatenate(
        [pad2(b, b.shape[0], Cz) for b in wz_blocks], axis=0).astype(matmul_dtype)

    Rb = _round_up(len(bias_rows), SUBLANE)
    b_slab = jnp.zeros((Rb, Cb), jnp.float32)
    for r, row in enumerate(bias_rows):                      # one bias per row
        b_slab = b_slab.at[r, 0:row.shape[0]].set(row)

    dims = {"Yp": Yp, "Up0": Up[0], "Zp_out": Zp[-1]}
    return wu_slab, wz_slab, b_slab, tuple(meta), dims


def _pick_batch_tile(Bp, cap=512):
    # Single grid step for small batches; for big batches the largest multiple-of-8
    # divisor of Bp that is <= cap (keeps per-step overhead amortized).
    if Bp <= cap:
        return Bp
    cands = [t for t in range(SUBLANE, cap + 1, SUBLANE) if Bp % t == 0]
    return max(cands)


# ----------------------------------------------------------------------------
# Forward builder: packs parameters ONCE, returns a jitted forward(xs, ys).
# ----------------------------------------------------------------------------
def make_picnn_forward(params, nonconvex_layersizes, convex_layersizes,
                       matmul_dtype=jnp.bfloat16):
    usize = list(nonconvex_layersizes)
    zsize = list(convex_layersizes)
    assert len(usize) + 1 == len(zsize)

    wu_slab, wz_slab, b_slab, meta, dims = _pack_picnn_params(
        params, usize, zsize, matmul_dtype)
    Yp, Up0, Zp_out = dims["Yp"], dims["Up0"], dims["Zp_out"]
    n_out = zsize[-1]
    kernel = functools.partial(_picnn_kernel, meta, matmul_dtype)

    def _fwd(xs, ys, wu, wz, b, aggressive):
        B = xs.shape[0]
        Bp = _round_up(max(B, SUBLANE), SUBLANE)
        tb = _pick_batch_tile(Bp)
        steps = Bp // tb

        # Zero-pad activations to lane-dense widths (zeros stay zero through the net).
        xs_p = jnp.zeros((Bp, Up0), jnp.float32).at[:B, :xs.shape[1]].set(
            xs.astype(jnp.float32))
        ys_p = jnp.zeros((Bp, Yp), jnp.float32).at[:B, :ys.shape[1]].set(
            ys.astype(jnp.float32))

        # Parameter slabs: constant block index -> fetched once. In the aggressive
        # config they are single-buffered (halves their VMEM footprint).
        if aggressive:
            def p_spec(shape):
                return pl.BlockSpec(shape, lambda bidx: (0, 0),
                                    pipeline_mode=pl.Buffered(1))
        else:
            def p_spec(shape):
                return pl.BlockSpec(shape, lambda bidx: (0, 0))

        if aggressive and steps >= 2:
            # v7x: actually shard the batch grid axis across both TensorCores.
            dim_sem = (pltpu.CORE_PARALLEL,)
        else:
            dim_sem = ("parallel",)

        out = pl.pallas_call(
            kernel,
            out_shape=jax.ShapeDtypeStruct((Bp, Zp_out), jnp.float32),
            grid_spec=pltpu.PrefetchScalarGridSpec(
                num_scalar_prefetch=0,
                grid=(steps,),
                in_specs=[
                    pl.BlockSpec((tb, Up0), lambda bidx: (bidx, 0)),
                    pl.BlockSpec((tb, Yp), lambda bidx: (bidx, 0)),
                    p_spec(wu.shape),
                    p_spec(wz.shape),
                    p_spec(b.shape),
                ],
                out_specs=pl.BlockSpec((tb, Zp_out), lambda bidx: (bidx, 0)),
            ),
            # Default VMEM limit is plenty for these slab sizes; set
            # vmem_limit_bytes explicitly only for much larger PICNN configs.
            compiler_params=pltpu.CompilerParams(dimension_semantics=dim_sem),
        )(xs_p, ys_p, wu, wz, b)
        return out[:B, :n_out]

    fwd_fast = jax.jit(lambda xs, ys, wu, wz, b: _fwd(xs, ys, wu, wz, b, True))
    fwd_safe = jax.jit(lambda xs, ys, wu, wz, b: _fwd(xs, ys, wu, wz, b, False))

    def forward(xs, ys):
        # Aggressive config first (Buffered(1) slabs, CORE_PARALLEL batch axis);
        # silently fall back to the conservative config if this chip / jax build
        # rejects it, so the kernel always runs clean.
        try:
            out = fwd_fast(xs, ys, wu_slab, wz_slab, b_slab)
            jax.block_until_ready(out)
            return out
        except Exception:
            return fwd_safe(xs, ys, wu_slab, wz_slab, b_slab)

    return forward


# ----------------------------------------------------------------------------
# Pure-JAX reference (mirrors the torch forward); matmul_dtype lets us match the
# kernel's bf16 MXU operands exactly, or run the full-f32 PyTorch semantics.
# ----------------------------------------------------------------------------
def picnn_reference(xs, ys, params, nonconvex_layersizes, convex_layersizes,
                    matmul_dtype=jnp.float32):
    usize = list(nonconvex_layersizes)
    nhidden = len(convex_layersizes) - 1

    def mm(a, w):  # a [B,K] f32, w torch-layout [N,K]
        return jnp.dot(a.astype(matmul_dtype), w.T.astype(matmul_dtype),
                       preferred_element_type=jnp.float32)

    ui = xs
    zi = jnp.zeros_like(ys)
    for i in range(nhidden):
        if usize[i]:
            zterm = jax.nn.relu(zi * (mm(ui, params["Wuz"][i]) + params["bz"][i]))
            yterm = ys * (mm(ui, params["Wuy"][i]) + params["by"][i])
            uterm = mm(ui, params["Wuz1"][i]) + params["bz1"][i]
        else:
            zterm = jax.nn.relu(zi)
            yterm = ys
            uterm = params["bz1"][i]
        zi = jax.nn.relu(mm(zterm, params["Wzz"][i]) + mm(yterm, params["Wyz"][i]) + uterm)
        if i < nhidden - 1 and usize[i]:
            ui = jnp.tanh(mm(ui, params["Wuutilde"][i]) + params["btilde"][i])
    return zi


def _check(out, xs, ys, params, usize, zsize):
    # 1) Matched-precision reference (bf16 MXU operands, f32 accumulate): tight check.
    ref_bf16 = picnn_reference(xs, ys, params, usize, zsize, matmul_dtype=jnp.bfloat16)
    assert jnp.allclose(out, ref_bf16, atol=3e-3, rtol=3e-3), \
        "Pallas output mismatch vs matched-precision reference"
    # 2) Full-f32 reference (PyTorch forward semantics): loose check (bf16 rounding).
    ref_f32 = picnn_reference(xs, ys, params, usize, zsize, matmul_dtype=jnp.float32)
    scale = float(jnp.max(jnp.abs(ref_f32))) + 1e-6
    rel_err = float(jnp.max(jnp.abs(out - ref_f32))) / scale
    assert rel_err < 0.08, f"Pallas output too far from f32 reference (rel_err={rel_err})"


if __name__ == "__main__":
    # Small, deterministic example consistent with the module's constructor:
    #   nonconvex_layersizes (usize) = [16, 32, 32]     -> len 3
    #   convex_layersizes    (zsize) = [32, 64, 64, 32] -> len 4, nhidden = 3, ysize = 32
    nonconvex_layersizes = [16, 32, 32]
    convex_layersizes = [32, 64, 64, 32]

    key = jax.random.PRNGKey(0)
    kp, kx, ky, kx2, ky2 = jax.random.split(key, 5)
    params = make_picnn_params(kp, nonconvex_layersizes, convex_layersizes)
    forward = make_picnn_forward(params, nonconvex_layersizes, convex_layersizes)

    # --- Test 1: small batch -> single grid step (grid=(1,)), step-overhead optimal.
    B = 64
    xs = jax.random.normal(kx, (B, nonconvex_layersizes[0]), jnp.float32)
    ys = jax.random.normal(ky, (B, convex_layersizes[0]), jnp.float32)
    out = jax.block_until_ready(forward(xs, ys))
    assert out.shape == (B, convex_layersizes[-1])
    _check(out, xs, ys, params, nonconvex_layersizes, convex_layersizes)

    # --- Test 2: large batch -> tile 512, 2 grid steps (exercises the CORE_PARALLEL
    #     aggressive path on v7x, with automatic fallback elsewhere).
    B2 = 1024
    xs2 = jax.random.normal(kx2, (B2, nonconvex_layersizes[0]), jnp.float32)
    ys2 = jax.random.normal(ky2, (B2, convex_layersizes[0]), jnp.float32)
    out2 = jax.block_until_ready(forward(xs2, ys2))
    assert out2.shape == (B2, convex_layersizes[-1])
    _check(out2, xs2, ys2, params, nonconvex_layersizes, convex_layersizes)

    print("KERNEL_OK")
</pallas_src>

<mosaic_0001>
module attributes {stable_mosaic.version = 11 : i64} {
  func.func @_picnn_kernel(%arg0: i32, %arg1: memref<64x128xf32, #tpu.memory_space<vmem>>, %arg2: memref<64x128xf32, #tpu.memory_space<vmem>>, %arg3: memref<384x384xbf16, #tpu.memory_space<vmem>>, %arg4: memref<1152x128xbf16, #tpu.memory_space<vmem>>, %arg5: memref<8x384xf32, #tpu.memory_space<vmem>>, %arg6: memref<64x128xf32, #tpu.memory_space<vmem>>) attributes {dimension_semantics = [#tpu.dimension_semantics<parallel>], iteration_bounds = array<i64: 1>, scalar_prefetch = 0 : i64, scratch_operands = 0 : i64, tpu.core_type = #tpu.core_type<tc>, window_params = [{transform_indices = @transform_0, window_bounds = array<i64: 64, 128>}, {transform_indices = @transform_1, window_bounds = array<i64: 64, 128>}, {pipeline_mode = #tpu.pipeline_mode<synchronous>, transform_indices = @transform_2, window_bounds = array<i64: 384, 384>}, {pipeline_mode = #tpu.pipeline_mode<synchronous>, transform_indices = @transform_3, window_bounds = array<i64: 1152, 128>}, {pipeline_mode = #tpu.pipeline_mode<synchronous>, transform_indices = @transform_4, window_bounds = array<i64: 8, 384>}, {transform_indices = @transform_5, window_bounds = array<i64: 64, 128>}]} {
    %c0 = arith.constant 0 : index
    %c0_0 = arith.constant 0 : index
    %0 = vector.load %arg2[%c0, %c0_0] : memref<64x128xf32, #tpu.memory_space<vmem>>, vector<64x128xf32>
    %c0_1 = arith.constant 0 : index
    %c0_2 = arith.constant 0 : index
    %1 = vector.load %arg1[%c0_1, %c0_2] : memref<64x128xf32, #tpu.memory_space<vmem>>, vector<64x128xf32>
    %cst = arith.constant 0.000000e+00 : f32
    %2 = vector.broadcast %cst : f32 to vector<64x128xf32>
    %c0_3 = arith.constant 0 : index
    %c0_4 = arith.constant 0 : index
    %3 = vector.load %arg3[%c0_3, %c0_4] : memref<384x384xbf16, #tpu.memory_space<vmem>>, vector<128x384xbf16>
    %c0_5 = arith.constant 0 : index
    %c0_6 = arith.constant 0 : index
    %4 = vector.load %arg5[%c0_5, %c0_6] : memref<8x384xf32, #tpu.memory_space<vmem>>, vector<1x384xf32>
    %5 = arith.truncf %1 : vector<64x128xf32> to vector<64x128xbf16>
    %cst_7 = arith.constant dense<0.000000e+00> : vector<64x384xf32>
    %6 = tpu.matmul %5, %3, %cst_7 {dimension_numbers = #tpu.dot_dimension_numbers<[1], [0], [0], [1], [0, 0, 1, 1], [], []>} : vector<64x128xbf16>, vector<128x384xbf16>, vector<64x384xf32> -> vector<64x384xf32>
    %7 = vector.broadcast %4 : vector<1x384xf32> to vector<64x384xf32>
    %8 = arith.addf %6, %7 : vector<64x384xf32>
    %9 = vector.extract_strided_slice %8 {offsets = [0, 0], sizes = [64, 128], strides = [1, 1]} : vector<64x384xf32> to vector<64x128xf32>
    %10 = arith.mulf %2, %9 : vector<64x128xf32>
    %cst_8 = arith.constant 0.000000e+00 : f32
    %11 = vector.broadcast %cst_8 : f32 to vector<64x128xf32>
    %12 = arith.maximumf %10, %11 : vector<64x128xf32>
    %13 = vector.extract_strided_slice %8 {offsets = [0, 128], sizes = [64, 128], strides = [1, 1]} : vector<64x384xf32> to vector<64x128xf32>
    %14 = arith.mulf %0, %13 : vector<64x128xf32>
    %15 = arith.truncf %12 : vector<64x128xf32> to vector<64x128xbf16>
    %16 = arith.truncf %14 : vector<64x128xf32> to vector<64x128xbf16>
    %17 = arith.truncf %1 : vector<64x128xf32> to vector<64x128xbf16>
    %18 = tpu.concatenate %15, %16, %17 in 1 : vector<64x128xbf16>, vector<64x128xbf16>, vector<64x128xbf16> -> vector<64x384xbf16>
    %c0_9 = arith.constant 0 : index
    %c0_10 = arith.constant 0 : index
    %19 = vector.load %arg4[%c0_9, %c0_10] : memref<1152x128xbf16, #tpu.memory_space<vmem>>, vector<384x128xbf16>
    %c1 = arith.constant 1 : index
    %c0_11 = arith.constant 0 : index
    %20 = vector.load %arg5[%c1, %c0_11] : memref<8x384xf32, #tpu.memory_space<vmem>>, vector<1x128xf32>
    %cst_12 = arith.constant dense<0.000000e+00> : vector<64x128xf32>
    %21 = tpu.matmul %18, %19, %cst_12 {dimension_numbers = #tpu.dot_dimension_numbers<[1], [0], [0], [1], [0, 0, 1, 1], [], []>} : vector<64x384xbf16>, vector<384x128xbf16>, vector<64x128xf32> -> vector<64x128xf32>
    %22 = vector.broadcast %20 : vector<1x128xf32> to vector<64x128xf32>
    %23 = arith.addf %21, %22 : vector<64x128xf32>
    %cst_13 = arith.constant 0.000000e+00 : f32
    %24 = vector.broadcast %cst_13 : f32 to vector<64x128xf32>
    %25 = arith.maximumf %23, %24 : vector<64x128xf32>
    %26 = vector.extract_strided_slice %8 {offsets = [0, 256], sizes = [64, 128], strides = [1, 1]} : vector<64x384xf32> to vector<64x128xf32>
    %27 = math.tanh %26 : vector<64x128xf32>
    %c128 = arith.constant 128 : index
    %c0_14 = arith.constant 0 : index
    %28 = vector.load %arg3[%c128, %c0_14] : memref<384x384xbf16, #tpu.memory_space<vmem>>, vector<128x384xbf16>
    %c2 = arith.constant 2 : index
    %c0_15 = arith.constant 0 : index
    %29 = vector.load %arg5[%c2, %c0_15] : memref<8x384xf32, #tpu.memory_space<vmem>>, vector<1x384xf32>
    %30 = arith.truncf %27 : vector<64x128xf32> to vector<64x128xbf16>
    %cst_16 = arith.constant dense<0.000000e+00> : vector<64x384xf32>
    %31 = tpu.matmul %30, %28, %cst_16 {dimension_numbers = #tpu.dot_dimension_numbers<[1], [0], [0], [1], [0, 0, 1, 1], [], []>} : vector<64x128xbf16>, vector<128x384xbf16>, vector<64x384xf32> -> vector<64x384xf32>
    %32 = vector.broadcast %29 : vector<1x384xf32> to vector<64x384xf32>
    %33 = arith.addf %31, %32 : vector<64x384xf32>
    %34 = vector.extract_strided_slice %33 {offsets = [0, 0], sizes = [64, 128], strides = [1, 1]} : vector<64x384xf32> to vector<64x128xf32>
    %35 = arith.mulf %25, %34 : vector<64x128xf32>
    %cst_17 = arith.constant 0.000000e+00 : f32
    %36 = vector.broadcast %cst_17 : f32 to vector<64x128xf32>
    %37 = arith.maximumf %35, %36 : vector<64x128xf32>
    %38 = vector.extract_strided_slice %33 {offsets = [0, 128], sizes = [64, 128], strides = [1, 1]} : vector<64x384xf32> to vector<64x128xf32>
    %39 = arith.mulf %0, %38 : vector<64x128xf32>
    %40 = arith.truncf %37 : vector<64x128xf32> to vector<64x128xbf16>
    %41 = arith.truncf %39 : vector<64x128xf32> to vector<64x128xbf16>
    %42 = arith.truncf %27 : vector<64x128xf32> to vector<64x128xbf16>
    %43 = tpu.concatenate %40, %41, %42 in 1 : vector<64x128xbf16>, vector<64x128xbf16>, vector<64x128xbf16> -> vector<64x384xbf16>
    %c384 = arith.constant 384 : index
    %c0_18 = arith.constant 0 : index
    %44 = vector.load %arg4[%c384, %c0_18] : memref<1152x128xbf16, #tpu.memory_space<vmem>>, vector<384x128xbf16>
    %c3 = arith.constant 3 : index
    %c0_19 = arith.constant 0 : index
    %45 = vector.load %arg5[%c3, %c0_19] : memref<8x384xf32, #tpu.memory_space<vmem>>, vector<1x128xf32>
    %cst_20 = arith.constant dense<0.000000e+00> : vector<64x128xf32>
    %46 = tpu.matmul %43, %44, %cst_20 {dimension_numbers = #tpu.dot_dimension_numbers<[1], [0], [0], [1], [0, 0, 1, 1], [], []>} : vector<64x384xbf16>, vector<384x128xbf16>, vector<64x128xf32> -> vector<64x128xf32>
    %47 = vector.broadcast %45 : vector<1x128xf32> to vector<64x128xf32>
    %48 = arith.addf %46, %47 : vector<64x128xf32>
    %cst_21 = arith.constant 0.000000e+00 : f32
    %49 = vector.broadcast %cst_21 : f32 to vector<64x128xf32>
    %50 = arith.maximumf %48, %49 : vector<64x128xf32>
    %51 = vector.extract_strided_slice %33 {offsets = [0, 256], sizes = [64, 128], strides = [1, 1]} : vector<64x384xf32> to vector<64x128xf32>
    %52 = math.tanh %51 : vector<64x128xf32>
    %c256 = arith.constant 256 : index
    %c0_22 = arith.constant 0 : index
    %53 = vector.load %arg3[%c256, %c0_22] : memref<384x384xbf16, #tpu.memory_space<vmem>>, vector<128x256xbf16>
    %c4 = arith.constant 4 : index
    %c0_23 = arith.constant 0 : index
    %54 = vector.load %arg5[%c4, %c0_23] : memref<8x384xf32, #tpu.memory_space<vmem>>, vector<1x256xf32>
    %55 = arith.truncf %52 : vector<64x128xf32> to vector<64x128xbf16>
    %cst_24 = arith.constant dense<0.000000e+00> : vector<64x256xf32>
    %56 = tpu.matmul %55, %53, %cst_24 {dimension_numbers = #tpu.dot_dimension_numbers<[1], [0], [0], [1], [0, 0, 1, 1], [], []>} : vector<64x128xbf16>, vector<128x256xbf16>, vector<64x256xf32> -> vector<64x256xf32>
    %57 = vector.broadcast %54 : vector<1x256xf32> to vector<64x256xf32>
    %58 = arith.addf %56, %57 : vector<64x256xf32>
    %59 = vector.extract_strided_slice %58 {offsets = [0, 0], sizes = [64, 128], strides = [1, 1]} : vector<64x256xf32> to vector<64x128xf32>
    %60 = arith.mulf %50, %59 : vector<64x128xf32>
    %cst_25 = arith.constant 0.000000e+00 : f32
    %61 = vector.broadcast %cst_25 : f32 to vector<64x128xf32>
    %62 = arith.maximumf %60, %61 : vector<64x128xf32>
    %63 = vector.extract_strided_slice %58 {offsets = [0, 128], sizes = [64, 128], strides = [1, 1]} : vector<64x256xf32> to vector<64x128xf32>
    %64 = arith.mulf %0, %63 : vector<64x128xf32>
    %65 = arith.truncf %62 : vector<64x128xf32> to vector<64x128xbf16>
    %66 = arith.truncf %64 : vector<64x128xf32> to vector<64x128xbf16>
    %67 = arith.truncf %52 : vector<64x128xf32> to vector<64x128xbf16>
    %68 = tpu.concatenate %65, %66, %67 in 1 : vector<64x128xbf16>, vector<64x128xbf16>, vector<64x128xbf16> -> vector<64x384xbf16>
    %c768 = arith.constant 768 : index
    %c0_26 = arith.constant 0 : index
    %69 = vector.load %arg4[%c768, %c0_26] : memref<1152x128xbf16, #tpu.memory_space<vmem>>, vector<384x128xbf16>
    %c5 = arith.constant 5 : index
    %c0_27 = arith.constant 0 : index
    %70 = vector.load %arg5[%c5, %c0_27] : memref<8x384xf32, #tpu.memory_space<vmem>>, vector<1x128xf32>
    %cst_28 = arith.constant dense<0.000000e+00> : vector<64x128xf32>
    %71 = tpu.matmul %68, %69, %cst_28 {dimension_numbers = #tpu.dot_dimension_numbers<[1], [0], [0], [1], [0, 0, 1, 1], [], []>} : vector<64x384xbf16>, vector<384x128xbf16>, vector<64x128xf32> -> vector<64x128xf32>
    %72 = vector.broadcast %70 : vector<1x128xf32> to vector<64x128xf32>
    %73 = arith.addf %71, %72 : vector<64x128xf32>
    %cst_29 = arith.constant 0.000000e+00 : f32
    %74 = vector.broadcast %cst_29 : f32 to vector<64x128xf32>
    %75 = arith.maximumf %73, %74 : vector<64x128xf32>
    %c0_30 = arith.constant 0 : index
    %c0_31 = arith.constant 0 : index
    %76 = vector.load %arg6[%c0_30, %c0_31] : memref<64x128xf32, #tpu.memory_space<vmem>>, vector<64x128xf32>
    tpu.vector_store %arg6[%c0_30, %c0_31], %75 {strides = array<i32>} : memref<64x128xf32, #tpu.memory_space<vmem>>, vector<64x128xf32>,
    return
  }
  func.func @transform_0(%arg0: i32) -> (i32, i32) {
    %c0_i32 = arith.constant 0 : i32
    %c0_i32_0 = arith.constant 0 : i32
    return %arg0, %c0_i32 : i32, i32
  }
  func.func @transform_1(%arg0: i32) -> (i32, i32) {
    %c0_i32 = arith.constant 0 : i32
    %c0_i32_0 = arith.constant 0 : i32
    return %arg0, %c0_i32 : i32, i32
  }
  func.func @transform_2(%arg0: i32) -> (i32, i32) {
    %c0_i32 = arith.constant 0 : i32
    %c0_i32_0 = arith.constant 0 : i32
    %c0_i32_1 = arith.constant 0 : i32
    return %c0_i32, %c0_i32_0 : i32, i32
  }
  func.func @transform_3(%arg0: i32) -> (i32, i32) {
    %c0_i32 = arith.constant 0 : i32
    %c0_i32_0 = arith.constant 0 : i32
    %c0_i32_1 = arith.constant 0 : i32
    return %c0_i32, %c0_i32_0 : i32, i32
  }
  func.func @transform_4(%arg0: i32) -> (i32, i32) {
    %c0_i32 = arith.constant 0 : i32
    %c0_i32_0 = arith.constant 0 : i32
    %c0_i32_1 = arith.constant 0 : i32
    return %c0_i32, %c0_i32_0 : i32, i32
  }
  func.func @transform_5(%arg0: i32) -> (i32, i32) {
    %c0_i32 = arith.constant 0 : i32
    %c0_i32_0 = arith.constant 0 : i32
    return %arg0, %c0_i32 : i32, i32
  }
}

module attributes {stable_mosaic.version = 11 : i64} {
  func.func @_picnn_kernel(%arg0: i32, %arg1: memref<64x128xf32, #tpu.memory_space<vmem>>, %arg2: memref<64x128xf32, #tpu.memory_space<vmem>>, %arg3: memref<384x384xbf16, #tpu.memory_space<vmem>>, %arg4: memref<1152x128xbf16, #tpu.memory_space<vmem>>, %arg5: memref<8x384xf32, #tpu.memory_space<vmem>>, %arg6: memref<64x128xf32, #tpu.memory_space<vmem>>) attributes {dimension_semantics = [#tpu.dimension_semantics<parallel>], iteration_bounds = array<i64: 1>, scalar_prefetch = 0 : i64, scratch_operands = 0 : i64, tpu.core_type = #tpu.core_type<tc>, window_params = [{transform_indices = @transform_0, window_bounds = array<i64: 64, 128>}, {transform_indices = @transform_1, window_bounds = array<i64: 64, 128>}, {pipeline_mode = #tpu.pipeline_mode<synchronous>, transform_indices = @transform_2, window_bounds = array<i64: 384, 384>}, {pipeline_mode = #tpu.pipeline_mode<synchronous>, transform_indices = @transform_3, window_bounds = array<i64: 1152, 128>}, {pipeline_mode = #tpu.pipeline_mode<synchronous>, transform_indices = @transform_4, window_bounds = array<i64: 8, 384>}, {transform_indices = @transform_5, window_bounds = array<i64: 64, 128>}]} {
    %c0 = arith.constant 0 : index
    %c0_0 = arith.constant 0 : index
    %0 = vector.load %arg2[%c0, %c0_0] : memref<64x128xf32, #tpu.memory_space<vmem>>, vector<64x128xf32>
    %c0_1 = arith.constant 0 : index
    %c0_2 = arith.constant 0 : index
    %1 = vector.load %arg1[%c0_1, %c0_2] : memref<64x128xf32, #tpu.memory_space<vmem>>, vector<64x128xf32>
    %cst = arith.constant 0.000000e+00 : f32
    %2 = vector.broadcast %cst : f32 to vector<64x128xf32>
    %c0_3 = arith.constant 0 : index
    %c0_4 = arith.constant 0 : index
    %3 = vector.load %arg3[%c0_3, %c0_4] : memref<384x384xbf16, #tpu.memory_space<vmem>>, vector<128x384xbf16>
    %c0_5 = arith.constant 0 : index
    %c0_6 = arith.constant 0 : index
    %4 = vector.load %arg5[%c0_5, %c0_6] : memref<8x384xf32, #tpu.memory_space<vmem>>, vector<1x384xf32>
    %5 = arith.truncf %1 : vector<64x128xf32> to vector<64x128xbf16>
    %cst_7 = arith.constant dense<0.000000e+00> : vector<64x384xf32>
    %6 = tpu.matmul %5, %3, %cst_7 {dimension_numbers = #tpu.dot_dimension_numbers<[1], [0], [0], [1], [0, 0, 1, 1], [], []>} : vector<64x128xbf16>, vector<128x384xbf16>, vector<64x384xf32> -> vector<64x384xf32>
    %7 = vector.broadcast %4 : vector<1x384xf32> to vector<64x384xf32>
    %8 = arith.addf %6, %7 : vector<64x384xf32>
    %9 = vector.extract_strided_slice %8 {offsets = [0, 0], sizes = [64, 128], strides = [1, 1]} : vector<64x384xf32> to vector<64x128xf32>
    %10 = arith.mulf %2, %9 : vector<64x128xf32>
    %cst_8 = arith.constant 0.000000e+00 : f32
    %11 = vector.broadcast %cst_8 : f32 to vector<64x128xf32>
    %12 = arith.maximumf %10, %11 : vector<64x128xf32>
    %13 = vector.extract_strided_slice %8 {offsets = [0, 128], sizes = [64, 128], strides = [1, 1]} : vector<64x384xf32> to vector<64x128xf32>
    %14 = arith.mulf %0, %13 : vector<64x128xf32>
    %15 = arith.truncf %12 : vector<64x128xf32> to vector<64x128xbf16>
    %16 = arith.truncf %14 : vector<64x128xf32> to vector<64x128xbf16>
    %17 = arith.truncf %1 : vector<64x128xf32> to vector<64x128xbf16>
    %18 = tpu.concatenate %15, %16, %17 in 1 : vector<64x128xbf16>, vector<64x128xbf16>, vector<64x128xbf16> -> vector<64x384xbf16>
    %c0_9 = arith.constant 0 : index
    %c0_10 = arith.constant 0 : index
    %19 = vector.load %arg4[%c0_9, %c0_10] : memref<1152x128xbf16, #tpu.memory_space<vmem>>, vector<384x128xbf16>
    %c1 = arith.constant 1 : index
    %c0_11 = arith.constant 0 : index
    %20 = vector.load %arg5[%c1, %c0_11] : memref<8x384xf32, #tpu.memory_space<vmem>>, vector<1x128xf32>
    %cst_12 = arith.constant dense<0.000000e+00> : vector<64x128xf32>
    %21 = tpu.matmul %18, %19, %cst_12 {dimension_numbers = #tpu.dot_dimension_numbers<[1], [0], [0], [1], [0, 0, 1, 1], [], []>} : vector<64x384xbf16>, vector<384x128xbf16>, vector<64x128xf32> -> vector<64x128xf32>
    %22 = vector.broadcast %20 : vector<1x128xf32> to vector<64x128xf32>
    %23 = arith.addf %21, %22 : vector<64x128xf32>
    %cst_13 = arith.constant 0.000000e+00 : f32
    %24 = vector.broadcast %cst_13 : f32 to vector<64x128xf32>
    %25 = arith.maximumf %23, %24 : vector<64x128xf32>
    %26 = vector.extract_strided_slice %8 {offsets = [0, 256], sizes = [64, 128], strides = [1, 1]} : vector<64x384xf32> to vector<64x128xf32>
    %27 = math.tanh %26 : vector<64x128xf32>
    %c128 = arith.constant 128 : index
    %c0_14 = arith.constant 0 : index
    %28 = vector.load %arg3[%c128, %c0_14] : memref<384x384xbf16, #tpu.memory_space<vmem>>, vector<128x384xbf16>
    %c2 = arith.constant 2 : index
    %c0_15 = arith.constant 0 : index
    %29 = vector.load %arg5[%c2, %c0_15] : memref<8x384xf32, #tpu.memory_space<vmem>>, vector<1x384xf32>
    %30 = arith.truncf %27 : vector<64x128xf32> to vector<64x128xbf16>
    %cst_16 = arith.constant dense<0.000000e+00> : vector<64x384xf32>
    %31 = tpu.matmul %30, %28, %cst_16 {dimension_numbers = #tpu.dot_dimension_numbers<[1], [0], [0], [1], [0, 0, 1, 1], [], []>} : vector<64x128xbf16>, vector<128x384xbf16>, vector<64x384xf32> -> vector<64x384xf32>
    %32 = vector.broadcast %29 : vector<1x384xf32> to vector<64x384xf32>
    %33 = arith.addf %31, %32 : vector<64x384xf32>
    %34 = vector.extract_strided_slice %33 {offsets = [0, 0], sizes = [64, 128], strides = [1, 1]} : vector<64x384xf32> to vector<64x128xf32>
    %35 = arith.mulf %25, %34 : vector<64x128xf32>
    %cst_17 = arith.constant 0.000000e+00 : f32
    %36 = vector.broadcast %cst_17 : f32 to vector<64x128xf32>
    %37 = arith.maximumf %35, %36 : vector<64x128xf32>
    %38 = vector.extract_strided_slice %33 {offsets = [0, 128], sizes = [64, 128], strides = [1, 1]} : vector<64x384xf32> to vector<64x128xf32>
    %39 = arith.mulf %0, %38 : vector<64x128xf32>
    %40 = arith.truncf %37 : vector<64x128xf32> to vector<64x128xbf16>
    %41 = arith.truncf %39 : vector<64x128xf32> to vector<64x128xbf16>
    %42 = arith.truncf %27 : vector<64x128xf32> to vector<64x128xbf16>
    %43 = tpu.concatenate %40, %41, %42 in 1 : vector<64x128xbf16>, vector<64x128xbf16>, vector<64x128xbf16> -> vector<64x384xbf16>
    %c384 = arith.constant 384 : index
    %c0_18 = arith.constant 0 : index
    %44 = vector.load %arg4[%c384, %c0_18] : memref<1152x128xbf16, #tpu.memory_space<vmem>>, vector<384x128xbf16>
    %c3 = arith.constant 3 : index
    %c0_19 = arith.constant 0 : index
    %45 = vector.load %arg5[%c3, %c0_19] : memref<8x384xf32, #tpu.memory_space<vmem>>, vector<1x128xf32>
    %cst_20 = arith.constant dense<0.000000e+00> : vector<64x128xf32>
    %46 = tpu.matmul %43, %44, %cst_20 {dimension_numbers = #tpu.dot_dimension_numbers<[1], [0], [0], [1], [0, 0, 1, 1], [], []>} : vector<64x384xbf16>, vector<384x128xbf16>, vector<64x128xf32> -> vector<64x128xf32>
    %47 = vector.broadcast %45 : vector<1x128xf32> to vector<64x128xf32>
    %48 = arith.addf %46, %47 : vector<64x128xf32>
    %cst_21 = arith.constant 0.000000e+00 : f32
    %49 = vector.broadcast %cst_21 : f32 to vector<64x128xf32>
    %50 = arith.maximumf %48, %49 : vector<64x128xf32>
    %51 = vector.extract_strided_slice %33 {offsets = [0, 256], sizes = [64, 128], strides = [1, 1]} : vector<64x384xf32> to vector<64x128xf32>
    %52 = math.tanh %51 : vector<64x128xf32>
    %c256 = arith.constant 256 : index
    %c0_22 = arith.constant 0 : index
    %53 = vector.load %arg3[%c256, %c0_22] : memref<384x384xbf16, #tpu.memory_space<vmem>>, vector<128x256xbf16>
    %c4 = arith.constant 4 : index
    %c0_23 = arith.constant 0 : index
    %54 = vector.load %arg5[%c4, %c0_23] : memref<8x384xf32, #tpu.memory_space<vmem>>, vector<1x256xf32>
    %55 = arith.truncf %52 : vector<64x128xf32> to vector<64x128xbf16>
    %cst_24 = arith.constant dense<0.000000e+00> : vector<64x256xf32>
    %56 = tpu.matmul %55, %53, %cst_24 {dimension_numbers = #tpu.dot_dimension_numbers<[1], [0], [0], [1], [0, 0, 1, 1], [], []>} : vector<64x128xbf16>, vector<128x256xbf16>, vector<64x256xf32> -> vector<64x256xf32>
    %57 = vector.broadcast %54 : vector<1x256xf32> to vector<64x256xf32>
    %58 = arith.addf %56, %57 : vector<64x256xf32>
    %59 = vector.extract_strided_slice %58 {offsets = [0, 0], sizes = [64, 128], strides = [1, 1]} : vector<64x256xf32> to vector<64x128xf32>
    %60 = arith.mulf %50, %59 : vector<64x128xf32>
    %cst_25 = arith.constant 0.000000e+00 : f32
    %61 = vector.broadcast %cst_25 : f32 to vector<64x128xf32>
    %62 = arith.maximumf %60, %61 : vector<64x128xf32>
    %63 = vector.extract_strided_slice %58 {offsets = [0, 128], sizes = [64, 128], strides = [1, 1]} : vector<64x256xf32> to vector<64x128xf32>
    %64 = arith.mulf %0, %63 : vector<64x128xf32>
    %65 = arith.truncf %62 : vector<64x128xf32> to vector<64x128xbf16>
    %66 = arith.truncf %64 : vector<64x128xf32> to vector<64x128xbf16>
    %67 = arith.truncf %52 : vector<64x128xf32> to vector<64x128xbf16>
    %68 = tpu.concatenate %65, %66, %67 in 1 : vector<64x128xbf16>, vector<64x128xbf16>, vector<64x128xbf16> -> vector<64x384xbf16>
    %c768 = arith.constant 768 : index
    %c0_26 = arith.constant 0 : index
    %69 = vector.load %arg4[%c768, %c0_26] : memref<1152x128xbf16, #tpu.memory_space<vmem>>, vector<384x128xbf16>
    %c5 = arith.constant 5 : index
    %c0_27 = arith.constant 0 : index
    %70 = vector.load %arg5[%c5, %c0_27] : memref<8x384xf32, #tpu.memory_space<vmem>>, vector<1x128xf32>
    %cst_28 = arith.constant dense<0.000000e+00> : vector<64x128xf32>
    %71 = tpu.matmul %68, %69, %cst_28 {dimension_numbers = #tpu.dot_dimension_numbers<[1], [0], [0], [1], [0, 0, 1, 1], [], []>} : vector<64x384xbf16>, vector<384x128xbf16>, vector<64x128xf32> -> vector<64x128xf32>
    %72 = vector.broadcast %70 : vector<1x128xf32> to vector<64x128xf32>
    %73 = arith.addf %71, %72 : vector<64x128xf32>
    %cst_29 = arith.constant 0.000000e+00 : f32
    %74 = vector.broadcast %cst_29 : f32 to vector<64x128xf32>
    %75 = arith.maximumf %73, %74 : vector<64x128xf32>
    %c0_30 = arith.constant 0 : index
    %c0_31 = arith.constant 0 : index
    %76 = vector.load %arg6[%c0_30, %c0_31] : memref<64x128xf32, #tpu.memory_space<vmem>>, vector<64x128xf32>
    tpu.vector_store %arg6[%c0_30, %c0_31], %75 {strides = array<i32>} : memref<64x128xf32, #tpu.memory_space<vmem>>, vector<64x128xf32>,
    return
  }
  func.func @transform_0(%arg0: i32) -> (i32, i32) {
    %c0_i32 = arith.constant 0 : i32
    %c0_i32_0 = arith.constant 0 : i32
    return %arg0, %c0_i32 : i32, i32
  }
  func.func @transform_1(%arg0: i32) -> (i32, i32) {
    %c0_i32 = arith.constant 0 : i32
    %c0_i32_0 = arith.constant 0 : i32
    return %arg0, %c0_i32 : i32, i32
  }
  func.func @transform_2(%arg0: i32) -> (i32, i32) {
    %c0_i32 = arith.constant 0 : i32
    %c0_i32_0 = arith.constant 0 : i32
    %c0_i32_1 = arith.constant 0 : i32
    return %c0_i32, %c0_i32_0 : i32, i32
  }
  func.func @transform_3(%arg0: i32) -> (i32, i32) {
    %c0_i32 = arith.constant 0 : i32
    %c0_i32_0 = arith.constant 0 : i32
    %c0_i32_1 = arith.constant 0 : i32
    return %c0_i32, %c0_i32_0 : i32, i32
  }
  func.func @transform_4(%arg0: i32) -> (i32, i32) {
    %c0_i32 = arith.constant 0 : i32
    %c0_i32_0 = arith.constant 0 : i32
    %c0_i32_1 = arith.constant 0 : i32
    return %c0_i32, %c0_i32_0 : i32, i32
  }
  func.func @transform_5(%arg0: i32) -> (i32, i32) {
    %c0_i32 = arith.constant 0 : i32
    %c0_i32_0 = arith.constant 0 : i32
    return %arg0, %c0_i32 : i32, i32
  }
}

</mosaic_0001>

<llo_original>
// kernel: _lambda_.1
$region0: #{_lambda_.1}
  #allocation0 [shape = 'u32[]', space=smem, size = 0x4, offset = 0x4, fixed_abs, tag = 'smem constant byte address 0x4 - core index']
  #allocation1 [shape = 'u32[72,128]{1,0:T(1,128)}', space=vmem, size = 0x9000, scoped, tag = 'internal scratch']
  %s0 = inlined_call_operand.vmem [shape: f32[64,128], index: 0, kind: input, shape index: {}]
  %s1 = inlined_call_operand.vmem [shape: f32[64,128], index: 1, kind: input, shape index: {}]
  %s2 = inlined_call_operand.hbm [shape: bf16[384,384], index: 2, kind: input, shape index: {}]
  %s3 = inlined_call_operand.hbm [shape: bf16[1152,128], index: 3, kind: input, shape index: {}]
  %s4 = inlined_call_operand.vmem [shape: f32[8,384], index: 4, kind: input, shape index: {}]
  %s5 = inlined_call_operand.vmem [shape: f32[64,128], index: 5, kind: output, shape index: {}]
  %s6 = sld [smem:[#allocation0]]
  $region38: #{_lambda_.1} parent=0
    _
  %s8 = ssub.s32 1, %s6
  %s9 = scalar_select 0, %s8, %s6
  $region1: #{_lambda_.1} parent=0
    #allocation2 [shape = 'u8[294912]{0}', space=vmem, size = 0x48000, scoped, tag = 'input window, operand 2, single buffered']
    #allocation3 [shape = 's32[1]{0}', space=sflag, size = 0x4, scoped, tag = 'scoped memory for _lambda_.1']
    #allocation4 [shape = 'u8[294912]{0}', space=vmem, size = 0x48000, scoped, tag = 'input window, operand 3, single buffered']
    #allocation5 [shape = 's32[1]{0}', space=sflag, size = 0x4, scoped, tag = 'scoped memory for _lambda_.1']
    %10 = vsyncpa [#allocation3], 0
    %11 = vsyncpa [#allocation5], 0
    // Predicated region
    $region2: #{_lambda_.1} parent=1 // pred_check
      _
    $region3: #{_lambda_.1} parent=1 // pred_check_branch
      %13 = sbr.rel (0) target = $region5
    $region4: #{_lambda_.1} parent=1 // pred_region
      _
    $region5: #{_lambda_.1} parent=1 // pred_fallthru
      _
    // Predicated region
    $region6: #{_lambda_.1} parent=1 // pred_check
      _
    $region7: #{_lambda_.1} parent=1 // pred_check_branch
      %15 = sbr.rel (0) target = $region9
    $region8: #{_lambda_.1} parent=1 // pred_region
      _
    $region9: #{_lambda_.1} parent=1 // pred_fallthru
      _
    // Predicated region
    $region10: #{_lambda_.1} parent=1 // pred_check
      _
    $region11: #{_lambda_.1} parent=1 // pred_check_branch
      %17 = sbr.rel (0) target = $region13
    $region12: #{_lambda_.1} parent=1 // pred_region
      %19 = vsyncadd [#allocation3], 0
      %s20 = sshll.u32 %s2, 4
      %s21 = int_to_ptr.hbm [resolvable:$true] %s20
      %s22 = sshll.u32 [#allocation2], 4
      %s23 = int_to_ptr.vmem [resolvable:$true] %s22
      %28 = dma.hbm_to_vmem [thread:$0]  %s21, 9216, %s23, [#allocation3], 192, 192, 12
    $region13: #{_lambda_.1} parent=1 // pred_fallthru
      _
    // Predicated region
    $region14: #{_lambda_.1} parent=1 // pred_check
      _
    $region15: #{_lambda_.1} parent=1 // pred_check_branch
      %30 = sbr.rel (0) target = $region17
    $region16: #{_lambda_.1} parent=1 // pred_region
      %32 = vsyncadd [#allocation5], 0
      %s33 = sshll.u32 %s3, 4
      %s34 = int_to_ptr.hbm [resolvable:$true] %s33
      %s35 = sshll.u32 [#allocation4], 4
      %s36 = int_to_ptr.vmem [resolvable:$true] %s35
      %41 = dma.hbm_to_vmem [thread:$0]  %s34, 9216, %s36, [#allocation5], 64, 64, 4
    $region17: #{_lambda_.1} parent=1 // pred_fallthru
      _
    // Predicated region
    $region18: #{_lambda_.1} parent=1 // pred_check
      _
    $region19: #{_lambda_.1} parent=1 // pred_check_branch
      %43 = sbr.rel (0) target = $region21
    $region20: #{_lambda_.1} parent=1 // pred_region
      _
    $region21: #{_lambda_.1} parent=1 // pred_fallthru
      _
    // Predicated region
    $region22: #{_lambda_.1} parent=1 // pred_check
      _
    $region23: #{_lambda_.1} parent=1 // pred_check_branch
      %45 = sbr.rel (0) target = $region25
    $region24: #{_lambda_.1} parent=1 // pred_region
      %47 = dma.done [#allocation3], 9216
    $region25: #{_lambda_.1} parent=1 // pred_fallthru
      _
    // Predicated region
    $region26: #{_lambda_.1} parent=1 // pred_check
      _
    $region27: #{_lambda_.1} parent=1 // pred_check_branch
      %49 = sbr.rel (0) target = $region29
    $region28: #{_lambda_.1} parent=1 // pred_region
      %51 = dma.done [#allocation5], 9216
    $region29: #{_lambda_.1} parent=1 // pred_fallthru
      _
    %v52 = vld [vmem:[%s1] sm:$0xff]
    %v53 = vld [vmem:[%s1 + $0x8] sm:$0xff]
    %v54 = vld [vmem:[%s1 + $0x10] sm:$0xff]
    %v55 = vld [vmem:[%s1 + $0x18] sm:$0xff]
    %v56 = vld [vmem:[%s1 + $0x20] sm:$0xff]
    %v57 = vld [vmem:[%s1 + $0x28] sm:$0xff]
    %v58 = vld [vmem:[%s1 + $0x30] sm:$0xff]
    %v59 = vld [vmem:[%s1 + $0x38] sm:$0xff]
    %v60 = vld [vmem:[%s0] sm:$0xff]
    %v61 = vld [vmem:[%s0 + $0x8] sm:$0xff]
    %v62 = vld [vmem:[%s0 + $0x10] sm:$0xff]
    %v63 = vld [vmem:[%s0 + $0x18] sm:$0xff]
    %v64 = vld [vmem:[%s0 + $0x20] sm:$0xff]
    %v65 = vld [vmem:[%s0 + $0x28] sm:$0xff]
    %v66 = vld [vmem:[%s0 + $0x30] sm:$0xff]
    %v67 = vld [vmem:[%s0 + $0x38] sm:$0xff]
    %v68 = vld [vmem:[#allocation2] sm:$0xff]
    %v69 = vld [vmem:[#allocation2 + $0x8] sm:$0xf]
    %v70 = vld [vmem:[#allocation2 + $0xc] sm:$0xff]
    %v71 = vld [vmem:[#allocation2 + $0x14] sm:$0xf]
    %v72 = vld [vmem:[#allocation2 + $0x18] sm:$0xff]
    %v73 = vld [vmem:[#allocation2 + $0x20] sm:$0xf]
    %v74 = vld [vmem:[#allocation2 + $0x24] sm:$0xff]
    %v75 = vld [vmem:[#allocation2 + $0x2c] sm:$0xf]
    %v76 = vld [vmem:[#allocation2 + $0x30] sm:$0xff]
    %v77 = vld [vmem:[#allocation2 + $0x38] sm:$0xf]
    %v78 = vld [vmem:[#allocation2 + $0x3c] sm:$0xff]
    %v79 = vld [vmem:[#allocation2 + $0x44] sm:$0xf]
    %v80 = vld [vmem:[#allocation2 + $0x48] sm:$0xff]
    %v81 = vld [vmem:[#allocation2 + $0x50] sm:$0xf]
    %v82 = vld [vmem:[#allocation2 + $0x54] sm:$0xff]
    %v83 = vld [vmem:[#allocation2 + $0x5c] sm:$0xf]
    %v84 = vld [vmem:[#allocation2 + $0x60] sm:$0xff]
    %v85 = vld [vmem:[#allocation2 + $0x68] sm:$0xf]
    %v86 = vld [vmem:[#allocation2 + $0x6c] sm:$0xff]
    %v87 = vld [vmem:[#allocation2 + $0x74] sm:$0xf]
    %v88 = vld [vmem:[#allocation2 + $0x78] sm:$0xff]
    %v89 = vld [vmem:[#allocation2 + $0x80] sm:$0xf]
    %v90 = vld [vmem:[#allocation2 + $0x84] sm:$0xff]
    %v91 = vld [vmem:[#allocation2 + $0x8c] sm:$0xf]
    %v92 = vld [vmem:[#allocation2 + $0x90] sm:$0xff]
    %v93 = vld [vmem:[#allocation2 + $0x98] sm:$0xf]
    %v94 = vld [vmem:[#allocation2 + $0x9c] sm:$0xff]
    %v95 = vld [vmem:[#allocation2 + $0xa4] sm:$0xf]
    %v96 = vld [vmem:[#allocation2 + $0xa8] sm:$0xff]
    %v97 = vld [vmem:[#allocation2 + $0xb0] sm:$0xf]
    %v98 = vld [vmem:[#allocation2 + $0xb4] sm:$0xff]
    %v99 = vld [vmem:[#allocation2 + $0xbc] sm:$0xf]
    %v100 = vld [vmem:[%s4] ss:$8 sm:$0x7]
    %v101 = vpack.c.bf16 %v60, %v60
    %v102 = vpack.c.bf16 %v61, %v61
    %v103 = vpack.c.bf16 %v62, %v62
    %v104 = vpack.c.bf16 %v63, %v63
    %v105 = vpack.c.bf16 %v64, %v64
    %v106 = vpack.c.bf16 %v65, %v65
    %v107 = vpack.c.bf16 %v66, %v66
    %v108 = vpack.c.bf16 %v67, %v67
    %v110 = vperm.slane %v100, 0
    %v111 = vperm.slane %v100, 1
    %v112 = vperm.slane %v100, 2
    %v124 = vunpack.c.l.b16 %v101
    %v125 = vunpack.c.l.b16 %v102
    %v126 = vunpack.c.l.b16 %v103
    %v127 = vunpack.c.l.b16 %v104
    %v128 = vunpack.c.l.b16 %v105
    %v129 = vunpack.c.l.b16 %v106
    %v130 = vunpack.c.l.b16 %v107
    %v131 = vunpack.c.l.b16 %v108
    %v132 = vpack.c.b16 %v125, %v124
    %v133 = vpack.c.b16 %v127, %v126
    %v134 = vpack.c.b16 %v129, %v128
    %v135 = vpack.c.b16 %v131, %v130
    %v172 = vunpack.c.l.b16 %v68
    %v173 = vunpack.c.h.b16 %v68
    %v174 = vunpack.c.l.b16 %v69
    %v175 = vunpack.c.l.b16 %v70
    %v176 = vunpack.c.h.b16 %v70
    %v177 = vunpack.c.l.b16 %v71
    %v178 = vunpack.c.l.b16 %v72
    %v179 = vunpack.c.h.b16 %v72
    %v180 = vunpack.c.l.b16 %v73
    %v181 = vunpack.c.l.b16 %v74
    %v182 = vunpack.c.h.b16 %v74
    %v183 = vunpack.c.l.b16 %v75
    %v184 = vunpack.c.l.b16 %v76
    %v185 = vunpack.c.h.b16 %v76
    %v186 = vunpack.c.l.b16 %v77
    %v187 = vunpack.c.l.b16 %v78
    %v188 = vunpack.c.h.b16 %v78
    %v189 = vunpack.c.l.b16 %v79
    %v190 = vunpack.c.l.b16 %v80
    %v191 = vunpack.c.h.b16 %v80
    %v192 = vunpack.c.l.b16 %v81
    %v193 = vunpack.c.l.b16 %v82
    %v194 = vunpack.c.h.b16 %v82
    %v195 = vunpack.c.l.b16 %v83
    %v196 = vunpack.c.l.b16 %v84
    %v197 = vunpack.c.h.b16 %v84
    %v198 = vunpack.c.l.b16 %v85
    %v199 = vunpack.c.l.b16 %v86
    %v200 = vunpack.c.h.b16 %v86
    %v201 = vunpack.c.l.b16 %v87
    %v202 = vunpack.c.l.b16 %v88
    %v203 = vunpack.c.h.b16 %v88
    %v204 = vunpack.c.l.b16 %v89
    %v205 = vunpack.c.l.b16 %v90
    %v206 = vunpack.c.h.b16 %v90
    %v207 = vunpack.c.l.b16 %v91
    %v208 = vunpack.c.l.b16 %v92
    %v209 = vunpack.c.h.b16 %v92
    %v210 = vunpack.c.l.b16 %v93
    %v211 = vunpack.c.l.b16 %v94
    %v212 = vunpack.c.h.b16 %v94
    %v213 = vunpack.c.l.b16 %v95
    %v214 = vunpack.c.l.b16 %v96
    %v215 = vunpack.c.h.b16 %v96
    %v216 = vunpack.c.l.b16 %v97
    %v217 = vunpack.c.l.b16 %v98
    %v218 = vunpack.c.h.b16 %v98
    %v219 = vunpack.c.l.b16 %v99
    %v220 = vpack.c.b16 %v175, %v172
    %v221 = vpack.c.b16 %v176, %v173
    %v222 = vpack.c.b16 %v177, %v174
    %v223 = vpack.c.b16 %v181, %v178
    %v224 = vpack.c.b16 %v182, %v179
    %v225 = vpack.c.b16 %v183, %v180
    %v226 = vpack.c.b16 %v187, %v184
    %v227 = vpack.c.b16 %v188, %v185
    %v228 = vpack.c.b16 %v189, %v186
    %v229 = vpack.c.b16 %v193, %v190
    %v230 = vpack.c.b16 %v194, %v191
    %v231 = vpack.c.b16 %v195, %v192
    %v232 = vpack.c.b16 %v199, %v196
    %v233 = vpack.c.b16 %v200, %v197
    %v234 = vpack.c.b16 %v201, %v198
    %v235 = vpack.c.b16 %v205, %v202
    %v236 = vpack.c.b16 %v206, %v203
    %v237 = vpack.c.b16 %v207, %v204
    %v238 = vpack.c.b16 %v211, %v208
    %v239 = vpack.c.b16 %v212, %v209
    %v240 = vpack.c.b16 %v213, %v210
    %v241 = vpack.c.b16 %v217, %v214
    %v242 = vpack.c.b16 %v218, %v215
    %v243 = vpack.c.b16 %v219, %v216
    %268 = vmatpush.bf16.msra.mxu0 %v241
    %269 = vmatpush.bf16.msra.mxu0 %v238
    %270 = vmatpush.bf16.msra.mxu0 %v235
    %271 = vmatpush.bf16.msra.mxu0 %v232
    %272 = vmatpush.bf16.msra.mxu0 %v229
    %273 = vmatpush.bf16.msra.mxu0 %v226
    %274 = vmatpush.bf16.msra.mxu0 %v223
    %275 = vmatpush.bf16.msra.mxu0 %v220
    %276 = vmatmul.bf16.gmra.mxu0 %v132
    %v277 = vpop.f32.mrf.mxu0
    %v278 = vadd.f32 %v110, %v277
    %v279 = vpop.f32.mrf.mxu0
    %v280 = vadd.f32 %v110, %v279
    %281 = vmatmul.bf16.gmra.mxu0 %v133
    %v282 = vpop.f32.mrf.mxu0
    %v283 = vadd.f32 %v110, %v282
    %v284 = vpop.f32.mrf.mxu0
    %v285 = vadd.f32 %v110, %v284
    %286 = vmatmul.bf16.gmra.mxu0 %v134
    %v287 = vpop.f32.mrf.mxu0
    %v288 = vadd.f32 %v110, %v287
    %v289 = vpop.f32.mrf.mxu0
    %v290 = vadd.f32 %v110, %v289
    %291 = vmatmul.bf16.gmra.mxu0 %v135
    %v292 = vpop.f32.mrf.mxu0
    %v293 = vadd.f32 %v110, %v292
    %v294 = vpop.f32.mrf.mxu0
    %v295 = vadd.f32 %v110, %v294
    %296 = vdwg.mxu0
    %297 = vmatpush.bf16.msra.mxu0 %v242
    %298 = vmatpush.bf16.msra.mxu0 %v239
    %299 = vmatpush.bf16.msra.mxu0 %v236
    %300 = vmatpush.bf16.msra.mxu0 %v233
    %301 = vmatpush.bf16.msra.mxu0 %v230
    %302 = vmatpush.bf16.msra.mxu0 %v227
    %303 = vmatpush.bf16.msra.mxu0 %v224
    %304 = vmatpush.bf16.msra.mxu0 %v221
    %305 = vmatmul.bf16.gmra.mxu0 %v132
    %v306 = vpop.f32.mrf.mxu0
    %v307 = vadd.f32 %v111, %v306
    %v308 = vpop.f32.mrf.mxu0
    %v309 = vadd.f32 %v111, %v308
    %310 = vmatmul.bf16.gmra.mxu0 %v133
    %v311 = vpop.f32.mrf.mxu0
    %v312 = vadd.f32 %v111, %v311
    %v313 = vpop.f32.mrf.mxu0
    %v314 = vadd.f32 %v111, %v313
    %315 = vmatmul.bf16.gmra.mxu0 %v134
    %v316 = vpop.f32.mrf.mxu0
    %v317 = vadd.f32 %v111, %v316
    %v318 = vpop.f32.mrf.mxu0
    %v319 = vadd.f32 %v111, %v318
    %320 = vmatmul.bf16.gmra.mxu0 %v135
    %v321 = vpop.f32.mrf.mxu0
    %v322 = vadd.f32 %v111, %v321
    %v323 = vpop.f32.mrf.mxu0
    %v324 = vadd.f32 %v111, %v323
    %325 = vdwg.mxu0
    %326 = vmatpush.bf16.msra.mxu0 %v243
    %327 = vmatpush.bf16.msra.mxu0 %v240
    %328 = vmatpush.bf16.msra.mxu0 %v237
    %329 = vmatpush.bf16.msra.mxu0 %v234
    %330 = vmatpush.bf16.msra.mxu0 %v231
    %331 = vmatpush.bf16.msra.mxu0 %v228
    %332 = vmatpush.bf16.msra.mxu0 %v225
    %333 = vmatpush.bf16.msra.mxu0 %v222
    %334 = vmatmul.bf16.gmra.mxu0 %v132
    %v335 = vpop.f32.mrf.mxu0
    %v336 = vadd.f32 %v112, %v335
    %v337 = vpop.f32.mrf.mxu0
    %v338 = vadd.f32 %v112, %v337
    %339 = vmatmul.bf16.gmra.mxu0 %v133
    %v340 = vpop.f32.mrf.mxu0
    %v341 = vadd.f32 %v112, %v340
    %v342 = vpop.f32.mrf.mxu0
    %v343 = vadd.f32 %v112, %v342
    %344 = vmatmul.bf16.gmra.mxu0 %v134
    %v345 = vpop.f32.mrf.mxu0
    %v346 = vadd.f32 %v112, %v345
    %v347 = vpop.f32.mrf.mxu0
    %v348 = vadd.f32 %v112, %v347
    %349 = vmatmul.bf16.gmra.mxu0 %v135
    %v350 = vpop.f32.mrf.mxu0
    %v351 = vadd.f32 %v112, %v350
    %v352 = vpop.f32.mrf.mxu0
    %v353 = vadd.f32 %v112, %v352
    %354 = vdwg.mxu0
    %v355 = vmul.f32 %v278, 0.0
    %v356 = vmul.f32 %v280, 0.0
    %v357 = vmul.f32 %v283, 0.0
    %v358 = vmul.f32 %v285, 0.0
    %v359 = vmul.f32 %v288, 0.0
    %v360 = vmul.f32 %v290, 0.0
    %v361 = vmul.f32 %v293, 0.0
    %v362 = vmul.f32 %v295, 0.0
    %v363 = vmax.f32 %v355, 0.0
    %v364 = vmax.f32 %v356, 0.0
    %v365 = vmax.f32 %v357, 0.0
    %v366 = vmax.f32 %v358, 0.0
    %v367 = vmax.f32 %v359, 0.0
    %v368 = vmax.f32 %v360, 0.0
    %v369 = vmax.f32 %v361, 0.0
    %v370 = vmax.f32 %v362, 0.0
    %v371 = vmul.f32 %v52, %v307
    %v372 = vmul.f32 %v53, %v309
    %v373 = vmul.f32 %v54, %v312
    %v374 = vmul.f32 %v55, %v314
    %v375 = vmul.f32 %v56, %v317
    %v376 = vmul.f32 %v57, %v319
    %v377 = vmul.f32 %v58, %v322
    %v378 = vmul.f32 %v59, %v324
    %v379 = vpack.c.bf16 %v363, %v363
    %v380 = vpack.c.bf16 %v364, %v364
    %v381 = vpack.c.bf16 %v365, %v365
    %v382 = vpack.c.bf16 %v366, %v366
    %v383 = vpack.c.bf16 %v367, %v367
    %v384 = vpack.c.bf16 %v368, %v368
    %v385 = vpack.c.bf16 %v369, %v369
    %v386 = vpack.c.bf16 %v370, %v370
    %v387 = vpack.c.bf16 %v371, %v371
    %v388 = vpack.c.bf16 %v372, %v372
    %v389 = vpack.c.bf16 %v373, %v373
    %v390 = vpack.c.bf16 %v374, %v374
    %v391 = vpack.c.bf16 %v375, %v375
    %v392 = vpack.c.bf16 %v376, %v376
    %v393 = vpack.c.bf16 %v377, %v377
    %v394 = vpack.c.bf16 %v378, %v378
    %v403 = vunpack.c.l.b16 %v379
    %v404 = vunpack.c.l.b16 %v380
    %v405 = vunpack.c.l.b16 %v381
    %v406 = vunpack.c.l.b16 %v382
    %v407 = vunpack.c.l.b16 %v383
    %v408 = vunpack.c.l.b16 %v384
    %v409 = vunpack.c.l.b16 %v385
    %v410 = vunpack.c.l.b16 %v386
    %v411 = vpack.c.b16 %v404, %v403
    %v412 = vpack.c.b16 %v406, %v405
    %v413 = vpack.c.b16 %v408, %v407
    %v414 = vpack.c.b16 %v410, %v409
    %v427 = vunpack.c.l.b16 %v387
    %v428 = vunpack.c.l.b16 %v388
    %v429 = vunpack.c.l.b16 %v389
    %v430 = vunpack.c.l.b16 %v390
    %v431 = vunpack.c.l.b16 %v391
    %v432 = vunpack.c.l.b16 %v392
    %v433 = vunpack.c.l.b16 %v393
    %v434 = vunpack.c.l.b16 %v394
    %v435 = vpack.c.b16 %v428, %v427
    %v436 = vpack.c.b16 %v430, %v429
    %v437 = vpack.c.b16 %v432, %v431
    %v438 = vpack.c.b16 %v434, %v433
    %v443 = vld [vmem:[#allocation4] sm:$0xf]
    %v444 = vld [vmem:[#allocation4 + $0x4] sm:$0xf]
    %v445 = vld [vmem:[#allocation4 + $0x8] sm:$0xf]
    %v446 = vld [vmem:[#allocation4 + $0xc] sm:$0xf]
    %v447 = vld [vmem:[#allocation4 + $0x10] sm:$0xf]
    %v448 = vld [vmem:[#allocation4 + $0x14] sm:$0xf]
    %v449 = vld [vmem:[#allocation4 + $0x18] sm:$0xf]
    %v450 = vld [vmem:[#allocation4 + $0x1c] sm:$0xf]
    %v451 = vld [vmem:[#allocation4 + $0x20] sm:$0xf]
    %v452 = vld [vmem:[#allocation4 + $0x24] sm:$0xf]
    %v453 = vld [vmem:[#allocation4 + $0x28] sm:$0xf]
    %v454 = vld [vmem:[#allocation4 + $0x2c] sm:$0xf]
    %v455 = vld [vmem:[#allocation4 + $0x30] sm:$0xf]
    %v456 = vld [vmem:[#allocation4 + $0x34] sm:$0xf]
    %v457 = vld [vmem:[#allocation4 + $0x38] sm:$0xf]
    %v458 = vld [vmem:[#allocation4 + $0x3c] sm:$0xf]
    %v459 = vld [vmem:[#allocation4 + $0x40] sm:$0xf]
    %v460 = vld [vmem:[#allocation4 + $0x44] sm:$0xf]
    %v461 = vld [vmem:[#allocation4 + $0x48] sm:$0xf]
    %v462 = vld [vmem:[#allocation4 + $0x4c] sm:$0xf]
    %v463 = vld [vmem:[#allocation4 + $0x50] sm:$0xf]
    %v464 = vld [vmem:[#allocation4 + $0x54] sm:$0xf]
    %v465 = vld [vmem:[#allocation4 + $0x58] sm:$0xf]
    %v466 = vld [vmem:[#allocation4 + $0x5c] sm:$0xf]
    %v467 = vld [vmem:[#allocation4 + $0x60] sm:$0xf]
    %v468 = vld [vmem:[#allocation4 + $0x64] sm:$0xf]
    %v469 = vld [vmem:[#allocation4 + $0x68] sm:$0xf]
    %v470 = vld [vmem:[#allocation4 + $0x6c] sm:$0xf]
    %v471 = vld [vmem:[#allocation4 + $0x70] sm:$0xf]
    %v472 = vld [vmem:[#allocation4 + $0x74] sm:$0xf]
    %v473 = vld [vmem:[#allocation4 + $0x78] sm:$0xf]
    %v474 = vld [vmem:[#allocation4 + $0x7c] sm:$0xf]
    %v475 = vld [vmem:[#allocation4 + $0x80] sm:$0xf]
    %v476 = vld [vmem:[#allocation4 + $0x84] sm:$0xf]
    %v477 = vld [vmem:[#allocation4 + $0x88] sm:$0xf]
    %v478 = vld [vmem:[#allocation4 + $0x8c] sm:$0xf]
    %v479 = vld [vmem:[#allocation4 + $0x90] sm:$0xf]
    %v480 = vld [vmem:[#allocation4 + $0x94] sm:$0xf]
    %v481 = vld [vmem:[#allocation4 + $0x98] sm:$0xf]
    %v482 = vld [vmem:[#allocation4 + $0x9c] sm:$0xf]
    %v483 = vld [vmem:[#allocation4 + $0xa0] sm:$0xf]
    %v484 = vld [vmem:[#allocation4 + $0xa4] sm:$0xf]
    %v485 = vld [vmem:[#allocation4 + $0xa8] sm:$0xf]
    %v486 = vld [vmem:[#allocation4 + $0xac] sm:$0xf]
    %v487 = vld [vmem:[#allocation4 + $0xb0] sm:$0xf]
    %v488 = vld [vmem:[#allocation4 + $0xb4] sm:$0xf]
    %v489 = vld [vmem:[#allocation4 + $0xb8] sm:$0xf]
    %v490 = vld [vmem:[#allocation4 + $0xbc] sm:$0xf]
    %v491 = vld [vmem:[%s4 + $0x1] ss:$0 sm:$0xff]
    %v540 = vunpack.c.l.b16 %v443
    %v541 = vunpack.c.l.b16 %v444
    %v542 = vunpack.c.l.b16 %v445
    %v543 = vunpack.c.l.b16 %v446
    %v544 = vunpack.c.l.b16 %v447
    %v545 = vunpack.c.l.b16 %v448
    %v546 = vunpack.c.l.b16 %v449
    %v547 = vunpack.c.l.b16 %v450
    %v548 = vunpack.c.l.b16 %v451
    %v549 = vunpack.c.l.b16 %v452
    %v550 = vunpack.c.l.b16 %v453
    %v551 = vunpack.c.l.b16 %v454
    %v552 = vunpack.c.l.b16 %v455
    %v553 = vunpack.c.l.b16 %v456
    %v554 = vunpack.c.l.b16 %v457
    %v555 = vunpack.c.l.b16 %v458
    %v556 = vunpack.c.l.b16 %v459
    %v557 = vunpack.c.l.b16 %v460
    %v558 = vunpack.c.l.b16 %v461
    %v559 = vunpack.c.l.b16 %v462
    %v560 = vunpack.c.l.b16 %v463
    %v561 = vunpack.c.l.b16 %v464
    %v562 = vunpack.c.l.b16 %v465
    %v563 = vunpack.c.l.b16 %v466
    %v564 = vunpack.c.l.b16 %v467
    %v565 = vunpack.c.l.b16 %v468
    %v566 = vunpack.c.l.b16 %v469
    %v567 = vunpack.c.l.b16 %v470
    %v568 = vunpack.c.l.b16 %v471
    %v569 = vunpack.c.l.b16 %v472
    %v570 = vunpack.c.l.b16 %v473
    %v571 = vunpack.c.l.b16 %v474
    %v572 = vunpack.c.l.b16 %v475
    %v573 = vunpack.c.l.b16 %v476
    %v574 = vunpack.c.l.b16 %v477
    %v575 = vunpack.c.l.b16 %v478
    %v576 = vunpack.c.l.b16 %v479
    %v577 = vunpack.c.l.b16 %v480
    %v578 = vunpack.c.l.b16 %v481
    %v579 = vunpack.c.l.b16 %v482
    %v580 = vunpack.c.l.b16 %v483
    %v581 = vunpack.c.l.b16 %v484
    %v582 = vunpack.c.l.b16 %v485
    %v583 = vunpack.c.l.b16 %v486
    %v584 = vunpack.c.l.b16 %v487
    %v585 = vunpack.c.l.b16 %v488
    %v586 = vunpack.c.l.b16 %v489
    %v587 = vunpack.c.l.b16 %v490
    %v588 = vpack.c.b16 %v541, %v540
    %v589 = vpack.c.b16 %v543, %v542
    %v590 = vpack.c.b16 %v545, %v544
    %v591 = vpack.c.b16 %v547, %v546
    %v592 = vpack.c.b16 %v549, %v548
    %v593 = vpack.c.b16 %v551, %v550
    %v594 = vpack.c.b16 %v553, %v552
    %v595 = vpack.c.b16 %v555, %v554
    %v596 = vpack.c.b16 %v557, %v556
    %v597 = vpack.c.b16 %v559, %v558
    %v598 = vpack.c.b16 %v561, %v560
    %v599 = vpack.c.b16 %v563, %v562
    %v600 = vpack.c.b16 %v565, %v564
    %v601 = vpack.c.b16 %v567, %v566
    %v602 = vpack.c.b16 %v569, %v568
    %v603 = vpack.c.b16 %v571, %v570
    %v604 = vpack.c.b16 %v573, %v572
    %v605 = vpack.c.b16 %v575, %v574
    %v606 = vpack.c.b16 %v577, %v576
    %v607 = vpack.c.b16 %v579, %v578
    %v608 = vpack.c.b16 %v581, %v580
    %v609 = vpack.c.b16 %v583, %v582
    %v610 = vpack.c.b16 %v585, %v584
    %v611 = vpack.c.b16 %v587, %v586
    %636 = vmatpush.bf16.msra.mxu0 %v595
    %637 = vmatpush.bf16.msra.mxu0 %v594
    %638 = vmatpush.bf16.msra.mxu0 %v593
    %639 = vmatpush.bf16.msra.mxu0 %v592
    %640 = vmatpush.bf16.msra.mxu0 %v591
    %641 = vmatpush.bf16.msra.mxu0 %v590
    %642 = vmatpush.bf16.msra.mxu0 %v589
    %643 = vmatpush.bf16.msra.mxu0 %v588
    %644 = vmatmul.bf16.gmra.mxu0 %v411
    %v645 = vpop.f32.mrf.mxu0
    %v646 = vadd.f32 %v491, %v645
    %v647 = vpop.f32.mrf.mxu0
    %v648 = vadd.f32 %v491, %v647
    %649 = vmatmul.bf16.gmra.mxu0 %v412
    %v650 = vpop.f32.mrf.mxu0
    %v651 = vadd.f32 %v491, %v650
    %v652 = vpop.f32.mrf.mxu0
    %v653 = vadd.f32 %v491, %v652
    %654 = vmatmul.bf16.gmra.mxu0 %v413
    %v655 = vpop.f32.mrf.mxu0
    %v656 = vadd.f32 %v491, %v655
    %v657 = vpop.f32.mrf.mxu0
    %v658 = vadd.f32 %v491, %v657
    %659 = vmatmul.bf16.gmra.mxu0 %v414
    %v660 = vpop.f32.mrf.mxu0
    %v661 = vadd.f32 %v491, %v660
    %v662 = vpop.f32.mrf.mxu0
    %v663 = vadd.f32 %v491, %v662
    %664 = vdwg.mxu0
    %665 = vmatpush.bf16.msra.mxu0 %v603
    %666 = vmatpush.bf16.msra.mxu0 %v602
    %667 = vmatpush.bf16.msra.mxu0 %v601
    %668 = vmatpush.bf16.msra.mxu0 %v600
    %669 = vmatpush.bf16.msra.mxu0 %v599
    %670 = vmatpush.bf16.msra.mxu0 %v598
    %671 = vmatpush.bf16.msra.mxu0 %v597
    %672 = vmatpush.bf16.msra.mxu0 %v596
    %673 = vmatmul.bf16.gmra.mxu0 %v435
    %v674 = vpop.f32.mrf.mxu0
    %v675 = vadd.f32 %v646, %v674
    %v676 = vpop.f32.mrf.mxu0
    %v677 = vadd.f32 %v648, %v676
    %678 = vmatmul.bf16.gmra.mxu0 %v436
    %v679 = vpop.f32.mrf.mxu0
    %v680 = vadd.f32 %v651, %v679
    %v681 = vpop.f32.mrf.mxu0
    %v682 = vadd.f32 %v653, %v681
    %683 = vmatmul.bf16.gmra.mxu0 %v437
    %v684 = vpop.f32.mrf.mxu0
    %v685 = vadd.f32 %v656, %v684
    %v686 = vpop.f32.mrf.mxu0
    %v687 = vadd.f32 %v658, %v686
    %688 = vmatmul.bf16.gmra.mxu0 %v438
    %v689 = vpop.f32.mrf.mxu0
    %v690 = vadd.f32 %v661, %v689
    %v691 = vpop.f32.mrf.mxu0
    %v692 = vadd.f32 %v663, %v691
    %693 = vdwg.mxu0
    %694 = vmatpush.bf16.msra.mxu0 %v611
    %695 = vmatpush.bf16.msra.mxu0 %v610
    %696 = vmatpush.bf16.msra.mxu0 %v609
    %697 = vmatpush.bf16.msra.mxu0 %v608
    %698 = vmatpush.bf16.msra.mxu0 %v607
    %699 = vmatpush.bf16.msra.mxu0 %v606
    %700 = vmatpush.bf16.msra.mxu0 %v605
    %701 = vmatpush.bf16.msra.mxu0 %v604
    %702 = vmatmul.bf16.gmra.mxu0 %v132
    %v703 = vpop.f32.mrf.mxu0
    %v704 = vadd.f32 %v675, %v703
    %v705 = vpop.f32.mrf.mxu0
    %v706 = vadd.f32 %v677, %v705
    %707 = vmatmul.bf16.gmra.mxu0 %v133
    %v708 = vpop.f32.mrf.mxu0
    %v709 = vadd.f32 %v680, %v708
    %v710 = vpop.f32.mrf.mxu0
    %v711 = vadd.f32 %v682, %v710
    %712 = vmatmul.bf16.gmra.mxu0 %v134
    %v713 = vpop.f32.mrf.mxu0
    %v714 = vadd.f32 %v685, %v713
    %v715 = vpop.f32.mrf.mxu0
    %v716 = vadd.f32 %v687, %v715
    %717 = vmatmul.bf16.gmra.mxu0 %v135
    %v718 = vpop.f32.mrf.mxu0
    %v719 = vadd.f32 %v690, %v718
    %v720 = vpop.f32.mrf.mxu0
    %v721 = vadd.f32 %v692, %v720
    %722 = vdwg.mxu0
    %v723 = vmax.f32 %v704, 0.0
    %v724 = vmax.f32 %v706, 0.0
    %v725 = vmax.f32 %v709, 0.0
    %v726 = vmax.f32 %v711, 0.0
    %v727 = vmax.f32 %v714, 0.0
    %v728 = vmax.f32 %v716, 0.0
    %v729 = vmax.f32 %v719, 0.0
    %v730 = vmax.f32 %v721, 0.0
    %v731 = vtanh.pop %v336
    %v732 = vtanh.pop %v338
    %v733 = vtanh.pop %v341
    %v734 = vtanh.pop %v343
    %v735 = vtanh.pop %v346
    %v736 = vtanh.pop %v348
    %v737 = vtanh.pop %v351
    %v738 = vtanh.pop %v353
    %v739 = vld [vmem:[#allocation2 + $0xc0] sm:$0xff]
    %v740 = vld [vmem:[#allocation2 + $0xc8] sm:$0xf]
    %v741 = vld [vmem:[#allocation2 + $0xcc] sm:$0xff]
    %v742 = vld [vmem:[#allocation2 + $0xd4] sm:$0xf]
    %v743 = vld [vmem:[#allocation2 + $0xd8] sm:$0xff]
    %v744 = vld [vmem:[#allocation2 + $0xe0] sm:$0xf]
    %v745 = vld [vmem:[#allocation2 + $0xe4] sm:$0xff]
    %v746 = vld [vmem:[#allocation2 + $0xec] sm:$0xf]
    %v747 = vld [vmem:[#allocation2 + $0xf0] sm:$0xff]
    %v748 = vld [vmem:[#allocation2 + $0xf8] sm:$0xf]
    %v749 = vld [vmem:[#allocation2 + $0xfc] sm:$0xff]
    %v750 = vld [vmem:[#allocation2 + $0x104] sm:$0xf]
    %v751 = vld [vmem:[#allocation2 + $0x108] sm:$0xff]
    %v752 = vld [vmem:[#allocation2 + $0x110] sm:$0xf]
    %v753 = vld [vmem:[#allocation2 + $0x114] sm:$0xff]
    %v754 = vld [vmem:[#allocation2 + $0x11c] sm:$0xf]
    %v755 = vld [vmem:[#allocation2 + $0x120] sm:$0xff]
    %v756 = vld [vmem:[#allocation2 + $0x128] sm:$0xf]
    %v757 = vld [vmem:[#allocation2 + $0x12c] sm:$0xff]
    %v758 = vld [vmem:[#allocation2 + $0x134] sm:$0xf]
    %v759 = vld [vmem:[#allocation2 + $0x138] sm:$0xff]
    %v760 = vld [vmem:[#allocation2 + $0x140] sm:$0xf]
    %v761 = vld [vmem:[#allocation2 + $0x144] sm:$0xff]
    %v762 = vld [vmem:[#allocation2 + $0x14c] sm:$0xf]
    %v763 = vld [vmem:[#allocation2 + $0x150] sm:$0xff]
    %v764 = vld [vmem:[#allocation2 + $0x158] sm:$0xf]
    %v765 = vld [vmem:[#allocation2 + $0x15c] sm:$0xff]
    %v766 = vld [vmem:[#allocation2 + $0x164] sm:$0xf]
    %v767 = vld [vmem:[#allocation2 + $0x168] sm:$0xff]
    %v768 = vld [vmem:[#allocation2 + $0x170] sm:$0xf]
    %v769 = vld [vmem:[#allocation2 + $0x174] sm:$0xff]
    %v770 = vld [vmem:[#allocation2 + $0x17c] sm:$0xf]
    %s771 = scalar_lea.vmem %s4, 2
    %v772 = vld [vmem:[%s771] ss:$8 sm:$0x7]
    %v773 = vpack.c.bf16 %v731, %v731
    %v774 = vpack.c.bf16 %v732, %v732
    %v775 = vpack.c.bf16 %v733, %v733
    %v776 = vpack.c.bf16 %v734, %v734
    %v777 = vpack.c.bf16 %v735, %v735
    %v778 = vpack.c.bf16 %v736, %v736
    %v779 = vpack.c.bf16 %v737, %v737
    %v780 = vpack.c.bf16 %v738, %v738
    %v782 = vperm.slane %v772, 0
    %v783 = vperm.slane %v772, 1
    %v784 = vperm.slane %v772, 2
    %v796 = vunpack.c.l.b16 %v773
    %v797 = vunpack.c.l.b16 %v774
    %v798 = vunpack.c.l.b16 %v775
    %v799 = vunpack.c.l.b16 %v776
    %v800 = vunpack.c.l.b16 %v777
    %v801 = vunpack.c.l.b16 %v778
    %v802 = vunpack.c.l.b16 %v779
    %v803 = vunpack.c.l.b16 %v780
    %v804 = vpack.c.b16 %v797, %v796
    %v805 = vpack.c.b16 %v799, %v798
    %v806 = vpack.c.b16 %v801, %v800
    %v807 = vpack.c.b16 %v803, %v802
    %v844 = vunpack.c.l.b16 %v739
    %v845 = vunpack.c.h.b16 %v739
    %v846 = vunpack.c.l.b16 %v740
    %v847 = vunpack.c.l.b16 %v741
    %v848 = vunpack.c.h.b16 %v741
    %v849 = vunpack.c.l.b16 %v742
    %v850 = vunpack.c.l.b16 %v743
    %v851 = vunpack.c.h.b16 %v743
    %v852 = vunpack.c.l.b16 %v744
    %v853 = vunpack.c.l.b16 %v745
    %v854 = vunpack.c.h.b16 %v745
    %v855 = vunpack.c.l.b16 %v746
    %v856 = vunpack.c.l.b16 %v747
    %v857 = vunpack.c.h.b16 %v747
    %v858 = vunpack.c.l.b16 %v748
    %v859 = vunpack.c.l.b16 %v749
    %v860 = vunpack.c.h.b16 %v749
    %v861 = vunpack.c.l.b16 %v750
    %v862 = vunpack.c.l.b16 %v751
    %v863 = vunpack.c.h.b16 %v751
    %v864 = vunpack.c.l.b16 %v752
    %v865 = vunpack.c.l.b16 %v753
    %v866 = vunpack.c.h.b16 %v753
    %v867 = vunpack.c.l.b16 %v754
    %v868 = vunpack.c.l.b16 %v755
    %v869 = vunpack.c.h.b16 %v755
    %v870 = vunpack.c.l.b16 %v756
    %v871 = vunpack.c.l.b16 %v757
    %v872 = vunpack.c.h.b16 %v757
    %v873 = vunpack.c.l.b16 %v758
    %v874 = vunpack.c.l.b16 %v759
    %v875 = vunpack.c.h.b16 %v759
    %v876 = vunpack.c.l.b16 %v760
    %v877 = vunpack.c.l.b16 %v761
    %v878 = vunpack.c.h.b16 %v761
    %v879 = vunpack.c.l.b16 %v762
    %v880 = vunpack.c.l.b16 %v763
    %v881 = vunpack.c.h.b16 %v763
    %v882 = vunpack.c.l.b16 %v764
    %v883 = vunpack.c.l.b16 %v765
    %v884 = vunpack.c.h.b16 %v765
    %v885 = vunpack.c.l.b16 %v766
    %v886 = vunpack.c.l.b16 %v767
    %v887 = vunpack.c.h.b16 %v767
    %v888 = vunpack.c.l.b16 %v768
    %v889 = vunpack.c.l.b16 %v769
    %v890 = vunpack.c.h.b16 %v769
    %v891 = vunpack.c.l.b16 %v770
    %v892 = vpack.c.b16 %v847, %v844
    %v893 = vpack.c.b16 %v848, %v845
    %v894 = vpack.c.b16 %v849, %v846
    %v895 = vpack.c.b16 %v853, %v850
    %v896 = vpack.c.b16 %v854, %v851
    %v897 = vpack.c.b16 %v855, %v852
    %v898 = vpack.c.b16 %v859, %v856
    %v899 = vpack.c.b16 %v860, %v857
    %v900 = vpack.c.b16 %v861, %v858
    %v901 = vpack.c.b16 %v865, %v862
    %v902 = vpack.c.b16 %v866, %v863
    %v903 = vpack.c.b16 %v867, %v864
    %v904 = vpack.c.b16 %v871, %v868
    %v905 = vpack.c.b16 %v872, %v869
    %v906 = vpack.c.b16 %v873, %v870
    %v907 = vpack.c.b16 %v877, %v874
    %v908 = vpack.c.b16 %v878, %v875
    %v909 = vpack.c.b16 %v879, %v876
    %v910 = vpack.c.b16 %v883, %v880
    %v911 = vpack.c.b16 %v884, %v881
    %v912 = vpack.c.b16 %v885, %v882
    %v913 = vpack.c.b16 %v889, %v886
    %v914 = vpack.c.b16 %v890, %v887
    %v915 = vpack.c.b16 %v891, %v888
    %940 = vmatpush.bf16.msra.mxu0 %v913
    %941 = vmatpush.bf16.msra.mxu0 %v910
    %942 = vmatpush.bf16.msra.mxu0 %v907
    %943 = vmatpush.bf16.msra.mxu0 %v904
    %944 = vmatpush.bf16.msra.mxu0 %v901
    %945 = vmatpush.bf16.msra.mxu0 %v898
    %946 = vmatpush.bf16.msra.mxu0 %v895
    %947 = vmatpush.bf16.msra.mxu0 %v892
    %948 = vmatmul.bf16.gmra.mxu0 %v804
    %v949 = vpop.f32.mrf.mxu0
    %v950 = vadd.f32 %v782, %v949
    %v951 = vpop.f32.mrf.mxu0
    %v952 = vadd.f32 %v782, %v951
    %953 = vmatmul.bf16.gmra.mxu0 %v805
    %v954 = vpop.f32.mrf.mxu0
    %v955 = vadd.f32 %v782, %v954
    %v956 = vpop.f32.mrf.mxu0
    %v957 = vadd.f32 %v782, %v956
    %958 = vmatmul.bf16.gmra.mxu0 %v806
    %v959 = vpop.f32.mrf.mxu0
    %v960 = vadd.f32 %v782, %v959
    %v961 = vpop.f32.mrf.mxu0
    %v962 = vadd.f32 %v782, %v961
    %963 = vmatmul.bf16.gmra.mxu0 %v807
    %v964 = vpop.f32.mrf.mxu0
    %v965 = vadd.f32 %v782, %v964
    %v966 = vpop.f32.mrf.mxu0
    %v967 = vadd.f32 %v782, %v966
    %968 = vdwg.mxu0
    %969 = vmatpush.bf16.msra.mxu0 %v914
    %970 = vmatpush.bf16.msra.mxu0 %v911
    %971 = vmatpush.bf16.msra.mxu0 %v908
    %972 = vmatpush.bf16.msra.mxu0 %v905
    %973 = vmatpush.bf16.msra.mxu0 %v902
    %974 = vmatpush.bf16.msra.mxu0 %v899
    %975 = vmatpush.bf16.msra.mxu0 %v896
    %976 = vmatpush.bf16.msra.mxu0 %v893
    %977 = vmatmul.bf16.gmra.mxu0 %v804
    %v978 = vpop.f32.mrf.mxu0
    %v979 = vadd.f32 %v783, %v978
    %v980 = vpop.f32.mrf.mxu0
    %v981 = vadd.f32 %v783, %v980
    %982 = vmatmul.bf16.gmra.mxu0 %v805
    %v983 = vpop.f32.mrf.mxu0
    %v984 = vadd.f32 %v783, %v983
    %v985 = vpop.f32.mrf.mxu0
    %v986 = vadd.f32 %v783, %v985
    %987 = vmatmul.bf16.gmra.mxu0 %v806
    %v988 = vpop.f32.mrf.mxu0
    %v989 = vadd.f32 %v783, %v988
    %v990 = vpop.f32.mrf.mxu0
    %v991 = vadd.f32 %v783, %v990
    %992 = vmatmul.bf16.gmra.mxu0 %v807
    %v993 = vpop.f32.mrf.mxu0
    %v994 = vadd.f32 %v783, %v993
    %v995 = vpop.f32.mrf.mxu0
    %v996 = vadd.f32 %v783, %v995
    %997 = vdwg.mxu0
    %998 = vmatpush.bf16.msra.mxu0 %v915
    %999 = vmatpush.bf16.msra.mxu0 %v912
    %1000 = vmatpush.bf16.msra.mxu0 %v909
    %1001 = vmatpush.bf16.msra.mxu0 %v906
    %1002 = vmatpush.bf16.msra.mxu0 %v903
    %1003 = vmatpush.bf16.msra.mxu0 %v900
    %1004 = vmatpush.bf16.msra.mxu0 %v897
    %1005 = vmatpush.bf16.msra.mxu0 %v894
    %1006 = vmatmul.bf16.gmra.mxu0 %v804
    %v1007 = vpop.f32.mrf.mxu0
    %v1008 = vadd.f32 %v784, %v1007
    %v1009 = vpop.f32.mrf.mxu0
    %v1010 = vadd.f32 %v784, %v1009
    %1011 = vmatmul.bf16.gmra.mxu0 %v805
    %v1012 = vpop.f32.mrf.mxu0
    %v1013 = vadd.f32 %v784, %v1012
    %v1014 = vpop.f32.mrf.mxu0
    %v1015 = vadd.f32 %v784, %v1014
    %1016 = vmatmul.bf16.gmra.mxu0 %v806
    %v1017 = vpop.f32.mrf.mxu0
    %v1018 = vadd.f32 %v784, %v1017
    %v1019 = vpop.f32.mrf.mxu0
    %v1020 = vadd.f32 %v784, %v1019
    %1021 = vmatmul.bf16.gmra.mxu0 %v807
    %v1022 = vpop.f32.mrf.mxu0
    %v1023 = vadd.f32 %v784, %v1022
    %v1024 = vpop.f32.mrf.mxu0
    %v1025 = vadd.f32 %v784, %v1024
    %1026 = vdwg.mxu0
    %v1027 = vmul.f32 %v723, %v950
    %v1028 = vmul.f32 %v724, %v952
    %v1029 = vmul.f32 %v725, %v955
    %v1030 = vmul.f32 %v726, %v957
    %v1031 = vmul.f32 %v727, %v960
    %v1032 = vmul.f32 %v728, %v962
    %v1033 = vmul.f32 %v729, %v965
    %v1034 = vmul.f32 %v730, %v967
    %v1035 = vmax.f32 %v1027, 0.0
    %v1036 = vmax.f32 %v1028, 0.0
    %v1037 = vmax.f32 %v1029, 0.0
    %v1038 = vmax.f32 %v1030, 0.0
    %v1039 = vmax.f32 %v1031, 0.0
    %v1040 = vmax.f32 %v1032, 0.0
    %v1041 = vmax.f32 %v1033, 0.0
    %v1042 = vmax.f32 %v1034, 0.0
    %v1043 = vmul.f32 %v52, %v979
    %v1044 = vmul.f32 %v53, %v981
    %v1045 = vmul.f32 %v54, %v984
    %v1046 = vmul.f32 %v55, %v986
    %v1047 = vmul.f32 %v56, %v989
    %v1048 = vmul.f32 %v57, %v991
    %v1049 = vmul.f32 %v58, %v994
    %v1050 = vmul.f32 %v59, %v996
    %v1051 = vpack.c.bf16 %v1035, %v1035
    %v1052 = vpack.c.bf16 %v1036, %v1036
    %v1053 = vpack.c.bf16 %v1037, %v1037
    %v1054 = vpack.c.bf16 %v1038, %v1038
    %v1055 = vpack.c.bf16 %v1039, %v1039
    %v1056 = vpack.c.bf16 %v1040, %v1040
    %v1057 = vpack.c.bf16 %v1041, %v1041
    %v1058 = vpack.c.bf16 %v1042, %v1042
    %v1059 = vpack.c.bf16 %v1043, %v1043
    %v1060 = vpack.c.bf16 %v1044, %v1044
    %v1061 = vpack.c.bf16 %v1045, %v1045
    %v1062 = vpack.c.bf16 %v1046, %v1046
    %v1063 = vpack.c.bf16 %v1047, %v1047
    %v1064 = vpack.c.bf16 %v1048, %v1048
    %v1065 = vpack.c.bf16 %v1049, %v1049
    %v1066 = vpack.c.bf16 %v1050, %v1050
    %v1075 = vunpack.c.l.b16 %v1051
    %v1076 = vunpack.c.l.b16 %v1052
    %v1077 = vunpack.c.l.b16 %v1053
    %v1078 = vunpack.c.l.b16 %v1054
    %v1079 = vunpack.c.l.b16 %v1055
    %v1080 = vunpack.c.l.b16 %v1056
    %v1081 = vunpack.c.l.b16 %v1057
    %v1082 = vunpack.c.l.b16 %v1058
    %v1083 = vpack.c.b16 %v1076, %v1075
    %v1084 = vpack.c.b16 %v1078, %v1077
    %v1085 = vpack.c.b16 %v1080, %v1079
    %v1086 = vpack.c.b16 %v1082, %v1081
    %v1099 = vunpack.c.l.b16 %v1059
    %v1100 = vunpack.c.l.b16 %v1060
    %v1101 = vunpack.c.l.b16 %v1061
    %v1102 = vunpack.c.l.b16 %v1062
    %v1103 = vunpack.c.l.b16 %v1063
    %v1104 = vunpack.c.l.b16 %v1064
    %v1105 = vunpack.c.l.b16 %v1065
    %v1106 = vunpack.c.l.b16 %v1066
    %v1107 = vpack.c.b16 %v1100, %v1099
    %v1108 = vpack.c.b16 %v1102, %v1101
    %v1109 = vpack.c.b16 %v1104, %v1103
    %v1110 = vpack.c.b16 %v1106, %v1105
    %v1115 = vld [vmem:[#allocation4 + $0xc0] sm:$0xf]
    %v1116 = vld [vmem:[#allocation4 + $0xc4] sm:$0xf]
    %v1117 = vld [vmem:[#allocation4 + $0xc8] sm:$0xf]
    %v1118 = vld [vmem:[#allocation4 + $0xcc] sm:$0xf]
    %v1119 = vld [vmem:[#allocation4 + $0xd0] sm:$0xf]
    %v1120 = vld [vmem:[#allocation4 + $0xd4] sm:$0xf]
    %v1121 = vld [vmem:[#allocation4 + $0xd8] sm:$0xf]
    %v1122 = vld [vmem:[#allocation4 + $0xdc] sm:$0xf]
    %v1123 = vld [vmem:[#allocation4 + $0xe0] sm:$0xf]
    %v1124 = vld [vmem:[#allocation4 + $0xe4] sm:$0xf]
    %v1125 = vld [vmem:[#allocation4 + $0xe8] sm:$0xf]
    %v1126 = vld [vmem:[#allocation4 + $0xec] sm:$0xf]
    %v1127 = vld [vmem:[#allocation4 + $0xf0] sm:$0xf]
    %v1128 = vld [vmem:[#allocation4 + $0xf4] sm:$0xf]
    %v1129 = vld [vmem:[#allocation4 + $0xf8] sm:$0xf]
    %v1130 = vld [vmem:[#allocation4 + $0xfc] sm:$0xf]
    %v1131 = vld [vmem:[#allocation4 + $0x100] sm:$0xf]
    %v1132 = vld [vmem:[#allocation4 + $0x104] sm:$0xf]
    %v1133 = vld [vmem:[#allocation4 + $0x108] sm:$0xf]
    %v1134 = vld [vmem:[#allocation4 + $0x10c] sm:$0xf]
    %v1135 = vld [vmem:[#allocation4 + $0x110] sm:$0xf]
    %v1136 = vld [vmem:[#allocation4 + $0x114] sm:$0xf]
    %v1137 = vld [vmem:[#allocation4 + $0x118] sm:$0xf]
    %v1138 = vld [vmem:[#allocation4 + $0x11c] sm:$0xf]
    %v1139 = vld [vmem:[#allocation4 + $0x120] sm:$0xf]
    %v1140 = vld [vmem:[#allocation4 + $0x124] sm:$0xf]
    %v1141 = vld [vmem:[#allocation4 + $0x128] sm:$0xf]
    %v1142 = vld [vmem:[#allocation4 + $0x12c] sm:$0xf]
    %v1143 = vld [vmem:[#allocation4 + $0x130] sm:$0xf]
    %v1144 = vld [vmem:[#allocation4 + $0x134] sm:$0xf]
    %v1145 = vld [vmem:[#allocation4 + $0x138] sm:$0xf]
    %v1146 = vld [vmem:[#allocation4 + $0x13c] sm:$0xf]
    %v1147 = vld [vmem:[#allocation4 + $0x140] sm:$0xf]
    %v1148 = vld [vmem:[#allocation4 + $0x144] sm:$0xf]
    %v1149 = vld [vmem:[#allocation4 + $0x148] sm:$0xf]
    %v1150 = vld [vmem:[#allocation4 + $0x14c] sm:$0xf]
    %v1151 = vld [vmem:[#allocation4 + $0x150] sm:$0xf]
    %v1152 = vld [vmem:[#allocation4 + $0x154] sm:$0xf]
    %v1153 = vld [vmem:[#allocation4 + $0x158] sm:$0xf]
    %v1154 = vld [vmem:[#allocation4 + $0x15c] sm:$0xf]
    %v1155 = vld [vmem:[#allocation4 + $0x160] sm:$0xf]
    %v1156 = vld [vmem:[#allocation4 + $0x164] sm:$0xf]
    %v1157 = vld [vmem:[#allocation4 + $0x168] sm:$0xf]
    %v1158 = vld [vmem:[#allocation4 + $0x16c] sm:$0xf]
    %v1159 = vld [vmem:[#allocation4 + $0x170] sm:$0xf]
    %v1160 = vld [vmem:[#allocation4 + $0x174] sm:$0xf]
    %v1161 = vld [vmem:[#allocation4 + $0x178] sm:$0xf]
    %v1162 = vld [vmem:[#allocation4 + $0x17c] sm:$0xf]
    %v1163 = vld [vmem:[%s4 + $0x3] ss:$0 sm:$0xff]
    %v1212 = vunpack.c.l.b16 %v1115
    %v1213 = vunpack.c.l.b16 %v1116
    %v1214 = vunpack.c.l.b16 %v1117
    %v1215 = vunpack.c.l.b16 %v1118
    %v1216 = vunpack.c.l.b16 %v1119
    %v1217 = vunpack.c.l.b16 %v1120
    %v1218 = vunpack.c.l.b16 %v1121
    %v1219 = vunpack.c.l.b16 %v1122
    %v1220 = vunpack.c.l.b16 %v1123
    %v1221 = vunpack.c.l.b16 %v1124
    %v1222 = vunpack.c.l.b16 %v1125
    %v1223 = vunpack.c.l.b16 %v1126
    %v1224 = vunpack.c.l.b16 %v1127
    %v1225 = vunpack.c.l.b16 %v1128
    %v1226 = vunpack.c.l.b16 %v1129
    %v1227 = vunpack.c.l.b16 %v1130
    %v1228 = vunpack.c.l.b16 %v1131
    %v1229 = vunpack.c.l.b16 %v1132
    %v1230 = vunpack.c.l.b16 %v1133
    %v1231 = vunpack.c.l.b16 %v1134
    %v1232 = vunpack.c.l.b16 %v1135
    %v1233 = vunpack.c.l.b16 %v1136
    %v1234 = vunpack.c.l.b16 %v1137
    %v1235 = vunpack.c.l.b16 %v1138
    %v1236 = vunpack.c.l.b16 %v1139
    %v1237 = vunpack.c.l.b16 %v1140
    %v1238 = vunpack.c.l.b16 %v1141
    %v1239 = vunpack.c.l.b16 %v1142
    %v1240 = vunpack.c.l.b16 %v1143
    %v1241 = vunpack.c.l.b16 %v1144
    %v1242 = vunpack.c.l.b16 %v1145
    %v1243 = vunpack.c.l.b16 %v1146
    %v1244 = vunpack.c.l.b16 %v1147
    %v1245 = vunpack.c.l.b16 %v1148
    %v1246 = vunpack.c.l.b16 %v1149
    %v1247 = vunpack.c.l.b16 %v1150
    %v1248 = vunpack.c.l.b16 %v1151
    %v1249 = vunpack.c.l.b16 %v1152
    %v1250 = vunpack.c.l.b16 %v1153
    %v1251 = vunpack.c.l.b16 %v1154
    %v1252 = vunpack.c.l.b16 %v1155
    %v1253 = vunpack.c.l.b16 %v1156
    %v1254 = vunpack.c.l.b16 %v1157
    %v1255 = vunpack.c.l.b16 %v1158
    %v1256 = vunpack.c.l.b16 %v1159
    %v1257 = vunpack.c.l.b16 %v1160
    %v1258 = vunpack.c.l.b16 %v1161
    %v1259 = vunpack.c.l.b16 %v1162
    %v1260 = vpack.c.b16 %v1213, %v1212
    %v1261 = vpack.c.b16 %v1215, %v1214
    %v1262 = vpack.c.b16 %v1217, %v1216
    %v1263 = vpack.c.b16 %v1219, %v1218
    %v1264 = vpack.c.b16 %v1221, %v1220
    %v1265 = vpack.c.b16 %v1223, %v1222
    %v1266 = vpack.c.b16 %v1225, %v1224
    %v1267 = vpack.c.b16 %v1227, %v1226
    %v1268 = vpack.c.b16 %v1229, %v1228
    %v1269 = vpack.c.b16 %v1231, %v1230
    %v1270 = vpack.c.b16 %v1233, %v1232
    %v1271 = vpack.c.b16 %v1235, %v1234
    %v1272 = vpack.c.b16 %v1237, %v1236
    %v1273 = vpack.c.b16 %v1239, %v1238
    %v1274 = vpack.c.b16 %v1241, %v1240
    %v1275 = vpack.c.b16 %v1243, %v1242
    %v1276 = vpack.c.b16 %v1245, %v1244
    %v1277 = vpack.c.b16 %v1247, %v1246
    %v1278 = vpack.c.b16 %v1249, %v1248
    %v1279 = vpack.c.b16 %v1251, %v1250
    %v1280 = vpack.c.b16 %v1253, %v1252
    %v1281 = vpack.c.b16 %v1255, %v1254
    %v1282 = vpack.c.b16 %v1257, %v1256
    %v1283 = vpack.c.b16 %v1259, %v1258
    %1308 = vmatpush.bf16.msra.mxu0 %v1267
    %1309 = vmatpush.bf16.msra.mxu0 %v1266
    %1310 = vmatpush.bf16.msra.mxu0 %v1265
    %1311 = vmatpush.bf16.msra.mxu0 %v1264
    %1312 = vmatpush.bf16.msra.mxu0 %v1263
    %1313 = vmatpush.bf16.msra.mxu0 %v1262
    %1314 = vmatpush.bf16.msra.mxu0 %v1261
    %1315 = vmatpush.bf16.msra.mxu0 %v1260
    %1316 = vmatmul.bf16.gmra.mxu0 %v1083
    %v1317 = vpop.f32.mrf.mxu0
    %v1318 = vadd.f32 %v1163, %v1317
    %v1319 = vpop.f32.mrf.mxu0
    %v1320 = vadd.f32 %v1163, %v1319
    %1321 = vmatmul.bf16.gmra.mxu0 %v1084
    %v1322 = vpop.f32.mrf.mxu0
    %v1323 = vadd.f32 %v1163, %v1322
    %v1324 = vpop.f32.mrf.mxu0
    %v1325 = vadd.f32 %v1163, %v1324
    %1326 = vmatmul.bf16.gmra.mxu0 %v1085
    %v1327 = vpop.f32.mrf.mxu0
    %v1328 = vadd.f32 %v1163, %v1327
    %v1329 = vpop.f32.mrf.mxu0
    %v1330 = vadd.f32 %v1163, %v1329
    %1331 = vmatmul.bf16.gmra.mxu0 %v1086
    %v1332 = vpop.f32.mrf.mxu0
    %v1333 = vadd.f32 %v1163, %v1332
    %v1334 = vpop.f32.mrf.mxu0
    %v1335 = vadd.f32 %v1163, %v1334
    %1336 = vdwg.mxu0
    %1337 = vmatpush.bf16.msra.mxu0 %v1275
    %1338 = vmatpush.bf16.msra.mxu0 %v1274
    %1339 = vmatpush.bf16.msra.mxu0 %v1273
    %1340 = vmatpush.bf16.msra.mxu0 %v1272
    %1341 = vmatpush.bf16.msra.mxu0 %v1271
    %1342 = vmatpush.bf16.msra.mxu0 %v1270
    %1343 = vmatpush.bf16.msra.mxu0 %v1269
    %1344 = vmatpush.bf16.msra.mxu0 %v1268
    %1345 = vmatmul.bf16.gmra.mxu0 %v1107
    %v1346 = vpop.f32.mrf.mxu0
    %v1347 = vadd.f32 %v1318, %v1346
    %v1348 = vpop.f32.mrf.mxu0
    %v1349 = vadd.f32 %v1320, %v1348
    %1350 = vmatmul.bf16.gmra.mxu0 %v1108
    %v1351 = vpop.f32.mrf.mxu0
    %v1352 = vadd.f32 %v1323, %v1351
    %v1353 = vpop.f32.mrf.mxu0
    %v1354 = vadd.f32 %v1325, %v1353
    %1355 = vmatmul.bf16.gmra.mxu0 %v1109
    %v1356 = vpop.f32.mrf.mxu0
    %v1357 = vadd.f32 %v1328, %v1356
    %v1358 = vpop.f32.mrf.mxu0
    %v1359 = vadd.f32 %v1330, %v1358
    %1360 = vmatmul.bf16.gmra.mxu0 %v1110
    %v1361 = vpop.f32.mrf.mxu0
    %v1362 = vadd.f32 %v1333, %v1361
    %v1363 = vpop.f32.mrf.mxu0
    %v1364 = vadd.f32 %v1335, %v1363
    %1365 = vdwg.mxu0
    %1366 = vmatpush.bf16.msra.mxu0 %v1283
    %1367 = vmatpush.bf16.msra.mxu0 %v1282
    %1368 = vmatpush.bf16.msra.mxu0 %v1281
    %1369 = vmatpush.bf16.msra.mxu0 %v1280
    %1370 = vmatpush.bf16.msra.mxu0 %v1279
    %1371 = vmatpush.bf16.msra.mxu0 %v1278
    %1372 = vmatpush.bf16.msra.mxu0 %v1277
    %1373 = vmatpush.bf16.msra.mxu0 %v1276
    %1374 = vmatmul.bf16.gmra.mxu0 %v804
    %v1375 = vpop.f32.mrf.mxu0
    %v1376 = vadd.f32 %v1347, %v1375
    %v1377 = vpop.f32.mrf.mxu0
    %v1378 = vadd.f32 %v1349, %v1377
    %1379 = vmatmul.bf16.gmra.mxu0 %v805
    %v1380 = vpop.f32.mrf.mxu0
    %v1381 = vadd.f32 %v1352, %v1380
    %v1382 = vpop.f32.mrf.mxu0
    %v1383 = vadd.f32 %v1354, %v1382
    %1384 = vmatmul.bf16.gmra.mxu0 %v806
    %v1385 = vpop.f32.mrf.mxu0
    %v1386 = vadd.f32 %v1357, %v1385
    %v1387 = vpop.f32.mrf.mxu0
    %v1388 = vadd.f32 %v1359, %v1387
    %1389 = vmatmul.bf16.gmra.mxu0 %v807
    %v1390 = vpop.f32.mrf.mxu0
    %v1391 = vadd.f32 %v1362, %v1390
    %v1392 = vpop.f32.mrf.mxu0
    %v1393 = vadd.f32 %v1364, %v1392
    %1394 = vdwg.mxu0
    %v1395 = vmax.f32 %v1376, 0.0
    %v1396 = vmax.f32 %v1378, 0.0
    %v1397 = vmax.f32 %v1381, 0.0
    %v1398 = vmax.f32 %v1383, 0.0
    %v1399 = vmax.f32 %v1386, 0.0
    %v1400 = vmax.f32 %v1388, 0.0
    %v1401 = vmax.f32 %v1391, 0.0
    %v1402 = vmax.f32 %v1393, 0.0
    %v1403 = vtanh.pop %v1008
    %v1404 = vtanh.pop %v1010
    %v1405 = vtanh.pop %v1013
    %v1406 = vtanh.pop %v1015
    %v1407 = vtanh.pop %v1018
    %v1408 = vtanh.pop %v1020
    %v1409 = vtanh.pop %v1023
    %v1410 = vtanh.pop %v1025
    %v1411 = vld [vmem:[#allocation2 + $0x180] sm:$0xff]
    %v1412 = vld [vmem:[#allocation2 + $0x18c] sm:$0xff]
    %v1413 = vld [vmem:[#allocation2 + $0x198] sm:$0xff]
    %v1414 = vld [vmem:[#allocation2 + $0x1a4] sm:$0xff]
    %v1415 = vld [vmem:[#allocation2 + $0x1b0] sm:$0xff]
    %v1416 = vld [vmem:[#allocation2 + $0x1bc] sm:$0xff]
    %v1417 = vld [vmem:[#allocation2 + $0x1c8] sm:$0xff]
    %v1418 = vld [vmem:[#allocation2 + $0x1d4] sm:$0xff]
    %v1419 = vld [vmem:[#allocation2 + $0x1e0] sm:$0xff]
    %v1420 = vld [vmem:[#allocation2 + $0x1ec] sm:$0xff]
    %v1421 = vld [vmem:[#allocation2 + $0x1f8] sm:$0xff]
    %v1422 = vld [vmem:[#allocation2 + $0x204] sm:$0xff]
    %v1423 = vld [vmem:[#allocation2 + $0x210] sm:$0xff]
    %v1424 = vld [vmem:[#allocation2 + $0x21c] sm:$0xff]
    %v1425 = vld [vmem:[#allocation2 + $0x228] sm:$0xff]
    %v1426 = vld [vmem:[#allocation2 + $0x234] sm:$0xff]
    %s1427 = scalar_lea.vmem %s4, 4
    %v1428 = vld [vmem:[%s1427] ss:$8 sm:$0x3]
    %v1429 = vpack.c.bf16 %v1403, %v1403
    %v1430 = vpack.c.bf16 %v1404, %v1404
    %v1431 = vpack.c.bf16 %v1405, %v1405
    %v1432 = vpack.c.bf16 %v1406, %v1406
    %v1433 = vpack.c.bf16 %v1407, %v1407
    %v1434 = vpack.c.bf16 %v1408, %v1408
    %v1435 = vpack.c.bf16 %v1409, %v1409
    %v1436 = vpack.c.bf16 %v1410, %v1410
    %v1438 = vperm.slane %v1428, 0
    %v1439 = vperm.slane %v1428, 1
    %v1450 = vunpack.c.l.b16 %v1429
    %v1451 = vunpack.c.l.b16 %v1430
    %v1452 = vunpack.c.l.b16 %v1431
    %v1453 = vunpack.c.l.b16 %v1432
    %v1454 = vunpack.c.l.b16 %v1433
    %v1455 = vunpack.c.l.b16 %v1434
    %v1456 = vunpack.c.l.b16 %v1435
    %v1457 = vunpack.c.l.b16 %v1436
    %v1458 = vpack.c.b16 %v1451, %v1450
    %v1459 = vpack.c.b16 %v1453, %v1452
    %v1460 = vpack.c.b16 %v1455, %v1454
    %v1461 = vpack.c.b16 %v1457, %v1456
    %v1482 = vunpack.c.l.b16 %v1411
    %v1483 = vunpack.c.h.b16 %v1411
    %v1484 = vunpack.c.l.b16 %v1412
    %v1485 = vunpack.c.h.b16 %v1412
    %v1486 = vunpack.c.l.b16 %v1413
    %v1487 = vunpack.c.h.b16 %v1413
    %v1488 = vunpack.c.l.b16 %v1414
    %v1489 = vunpack.c.h.b16 %v1414
    %v1490 = vunpack.c.l.b16 %v1415
    %v1491 = vunpack.c.h.b16 %v1415
    %v1492 = vunpack.c.l.b16 %v1416
    %v1493 = vunpack.c.h.b16 %v1416
    %v1494 = vunpack.c.l.b16 %v1417
    %v1495 = vunpack.c.h.b16 %v1417
    %v1496 = vunpack.c.l.b16 %v1418
    %v1497 = vunpack.c.h.b16 %v1418
    %v1498 = vunpack.c.l.b16 %v1419
    %v1499 = vunpack.c.h.b16 %v1419
    %v1500 = vunpack.c.l.b16 %v1420
    %v1501 = vunpack.c.h.b16 %v1420
    %v1502 = vunpack.c.l.b16 %v1421
    %v1503 = vunpack.c.h.b16 %v1421
    %v1504 = vunpack.c.l.b16 %v1422
    %v1505 = vunpack.c.h.b16 %v1422
    %v1506 = vunpack.c.l.b16 %v1423
    %v1507 = vunpack.c.h.b16 %v1423
    %v1508 = vunpack.c.l.b16 %v1424
    %v1509 = vunpack.c.h.b16 %v1424
    %v1510 = vunpack.c.l.b16 %v1425
    %v1511 = vunpack.c.h.b16 %v1425
    %v1512 = vunpack.c.l.b16 %v1426
    %v1513 = vunpack.c.h.b16 %v1426
    %v1514 = vpack.c.b16 %v1484, %v1482
    %v1515 = vpack.c.b16 %v1485, %v1483
    %v1516 = vpack.c.b16 %v1488, %v1486
    %v1517 = vpack.c.b16 %v1489, %v1487
    %v1518 = vpack.c.b16 %v1492, %v1490
    %v1519 = vpack.c.b16 %v1493, %v1491
    %v1520 = vpack.c.b16 %v1496, %v1494
    %v1521 = vpack.c.b16 %v1497, %v1495
    %v1522 = vpack.c.b16 %v1500, %v1498
    %v1523 = vpack.c.b16 %v1501, %v1499
    %v1524 = vpack.c.b16 %v1504, %v1502
    %v1525 = vpack.c.b16 %v1505, %v1503
    %v1526 = vpack.c.b16 %v1508, %v1506
    %v1527 = vpack.c.b16 %v1509, %v1507
    %v1528 = vpack.c.b16 %v1512, %v1510
    %v1529 = vpack.c.b16 %v1513, %v1511
    %1546 = vmatpush.bf16.msra.mxu0 %v1528
    %1547 = vmatpush.bf16.msra.mxu0 %v1526
    %1548 = vmatpush.bf16.msra.mxu0 %v1524
    %1549 = vmatpush.bf16.msra.mxu0 %v1522
    %1550 = vmatpush.bf16.msra.mxu0 %v1520
    %1551 = vmatpush.bf16.msra.mxu0 %v1518
    %1552 = vmatpush.bf16.msra.mxu0 %v1516
    %1553 = vmatpush.bf16.msra.mxu0 %v1514
    %1554 = vmatmul.bf16.gmra.mxu0 %v1458
    %v1555 = vpop.f32.mrf.mxu0
    %v1556 = vadd.f32 %v1438, %v1555
    %v1557 = vpop.f32.mrf.mxu0
    %v1558 = vadd.f32 %v1438, %v1557
    %1559 = vmatmul.bf16.gmra.mxu0 %v1459
    %v1560 = vpop.f32.mrf.mxu0
    %v1561 = vadd.f32 %v1438, %v1560
    %v1562 = vpop.f32.mrf.mxu0
    %v1563 = vadd.f32 %v1438, %v1562
    %1564 = vmatmul.bf16.gmra.mxu0 %v1460
    %v1565 = vpop.f32.mrf.mxu0
    %v1566 = vadd.f32 %v1438, %v1565
    %v1567 = vpop.f32.mrf.mxu0
    %v1568 = vadd.f32 %v1438, %v1567
    %1569 = vmatmul.bf16.gmra.mxu0 %v1461
    %v1570 = vpop.f32.mrf.mxu0
    %v1571 = vadd.f32 %v1438, %v1570
    %v1572 = vpop.f32.mrf.mxu0
    %v1573 = vadd.f32 %v1438, %v1572
    %1574 = vdwg.mxu0
    %1575 = vmatpush.bf16.msra.mxu0 %v1529
    %1576 = vmatpush.bf16.msra.mxu0 %v1527
    %1577 = vmatpush.bf16.msra.mxu0 %v1525
    %1578 = vmatpush.bf16.msra.mxu0 %v1523
    %1579 = vmatpush.bf16.msra.mxu0 %v1521
    %1580 = vmatpush.bf16.msra.mxu0 %v1519
    %1581 = vmatpush.bf16.msra.mxu0 %v1517
    %1582 = vmatpush.bf16.msra.mxu0 %v1515
    %1583 = vmatmul.bf16.gmra.mxu0 %v1458
    %v1584 = vpop.f32.mrf.mxu0
    %v1585 = vadd.f32 %v1439, %v1584
    %v1586 = vpop.f32.mrf.mxu0
    %v1587 = vadd.f32 %v1439, %v1586
    %1588 = vmatmul.bf16.gmra.mxu0 %v1459
    %v1589 = vpop.f32.mrf.mxu0
    %v1590 = vadd.f32 %v1439, %v1589
    %v1591 = vpop.f32.mrf.mxu0
    %v1592 = vadd.f32 %v1439, %v1591
    %1593 = vmatmul.bf16.gmra.mxu0 %v1460
    %v1594 = vpop.f32.mrf.mxu0
    %v1595 = vadd.f32 %v1439, %v1594
    %v1596 = vpop.f32.mrf.mxu0
    %v1597 = vadd.f32 %v1439, %v1596
    %1598 = vmatmul.bf16.gmra.mxu0 %v1461
    %v1599 = vpop.f32.mrf.mxu0
    %v1600 = vadd.f32 %v1439, %v1599
    %v1601 = vpop.f32.mrf.mxu0
    %v1602 = vadd.f32 %v1439, %v1601
    %1603 = vdwg.mxu0
    %v1604 = vmul.f32 %v1395, %v1556
    %v1605 = vmul.f32 %v1396, %v1558
    %v1606 = vmul.f32 %v1397, %v1561
    %v1607 = vmul.f32 %v1398, %v1563
    %v1608 = vmul.f32 %v1399, %v1566
    %v1609 = vmul.f32 %v1400, %v1568
    %v1610 = vmul.f32 %v1401, %v1571
    %v1611 = vmul.f32 %v1402, %v1573
    %v1612 = vmax.f32 %v1604, 0.0
    %v1613 = vmax.f32 %v1605, 0.0
    %v1614 = vmax.f32 %v1606, 0.0
    %v1615 = vmax.f32 %v1607, 0.0
    %v1616 = vmax.f32 %v1608, 0.0
    %v1617 = vmax.f32 %v1609, 0.0
    %v1618 = vmax.f32 %v1610, 0.0
    %v1619 = vmax.f32 %v1611, 0.0
    %v1620 = vmul.f32 %v52, %v1585
    %v1621 = vmul.f32 %v53, %v1587
    %v1622 = vmul.f32 %v54, %v1590
    %v1623 = vmul.f32 %v55, %v1592
    %v1624 = vmul.f32 %v56, %v1595
    %v1625 = vmul.f32 %v57, %v1597
    %v1626 = vmul.f32 %v58, %v1600
    %v1627 = vmul.f32 %v59, %v1602
    %v1628 = vpack.c.bf16 %v1612, %v1612
    %v1629 = vpack.c.bf16 %v1613, %v1613
    %v1630 = vpack.c.bf16 %v1614, %v1614
    %v1631 = vpack.c.bf16 %v1615, %v1615
    %v1632 = vpack.c.bf16 %v1616, %v1616
    %v1633 = vpack.c.bf16 %v1617, %v1617
    %v1634 = vpack.c.bf16 %v1618, %v1618
    %v1635 = vpack.c.bf16 %v1619, %v1619
    %v1636 = vpack.c.bf16 %v1620, %v1620
    %v1637 = vpack.c.bf16 %v1621, %v1621
    %v1638 = vpack.c.bf16 %v1622, %v1622
    %v1639 = vpack.c.bf16 %v1623, %v1623
    %v1640 = vpack.c.bf16 %v1624, %v1624
    %v1641 = vpack.c.bf16 %v1625, %v1625
    %v1642 = vpack.c.bf16 %v1626, %v1626
    %v1643 = vpack.c.bf16 %v1627, %v1627
    %v1652 = vunpack.c.l.b16 %v1628
    %v1653 = vunpack.c.l.b16 %v1629
    %v1654 = vunpack.c.l.b16 %v1630
    %v1655 = vunpack.c.l.b16 %v1631
    %v1656 = vunpack.c.l.b16 %v1632
    %v1657 = vunpack.c.l.b16 %v1633
    %v1658 = vunpack.c.l.b16 %v1634
    %v1659 = vunpack.c.l.b16 %v1635
    %v1660 = vpack.c.b16 %v1653, %v1652
    %v1661 = vpack.c.b16 %v1655, %v1654
    %v1662 = vpack.c.b16 %v1657, %v1656
    %v1663 = vpack.c.b16 %v1659, %v1658
    %v1676 = vunpack.c.l.b16 %v1636
    %v1677 = vunpack.c.l.b16 %v1637
    %v1678 = vunpack.c.l.b16 %v1638
    %v1679 = vunpack.c.l.b16 %v1639
    %v1680 = vunpack.c.l.b16 %v1640
    %v1681 = vunpack.c.l.b16 %v1641
    %v1682 = vunpack.c.l.b16 %v1642
    %v1683 = vunpack.c.l.b16 %v1643
    %v1684 = vpack.c.b16 %v1677, %v1676
    %v1685 = vpack.c.b16 %v1679, %v1678
    %v1686 = vpack.c.b16 %v1681, %v1680
    %v1687 = vpack.c.b16 %v1683, %v1682
    %v1692 = vld [vmem:[#allocation4 + $0x180] sm:$0xf]
    %v1693 = vld [vmem:[#allocation4 + $0x184] sm:$0xf]
    %v1694 = vld [vmem:[#allocation4 + $0x188] sm:$0xf]
    %v1695 = vld [vmem:[#allocation4 + $0x18c] sm:$0xf]
    %v1696 = vld [vmem:[#allocation4 + $0x190] sm:$0xf]
    %v1697 = vld [vmem:[#allocation4 + $0x194] sm:$0xf]
    %v1698 = vld [vmem:[#allocation4 + $0x198] sm:$0xf]
    %v1699 = vld [vmem:[#allocation4 + $0x19c] sm:$0xf]
    %v1700 = vld [vmem:[#allocation4 + $0x1a0] sm:$0xf]
    %v1701 = vld [vmem:[#allocation4 + $0x1a4] sm:$0xf]
    %v1702 = vld [vmem:[#allocation4 + $0x1a8] sm:$0xf]
    %v1703 = vld [vmem:[#allocation4 + $0x1ac] sm:$0xf]
    %v1704 = vld [vmem:[#allocation4 + $0x1b0] sm:$0xf]
    %v1705 = vld [vmem:[#allocation4 + $0x1b4] sm:$0xf]
    %v1706 = vld [vmem:[#allocation4 + $0x1b8] sm:$0xf]
    %v1707 = vld [vmem:[#allocation4 + $0x1bc] sm:$0xf]
    %v1708 = vld [vmem:[#allocation4 + $0x1c0] sm:$0xf]
    %v1709 = vld [vmem:[#allocation4 + $0x1c4] sm:$0xf]
    %v1710 = vld [vmem:[#allocation4 + $0x1c8] sm:$0xf]
    %v1711 = vld [vmem:[#allocation4 + $0x1cc] sm:$0xf]
    %v1712 = vld [vmem:[#allocation4 + $0x1d0] sm:$0xf]
    %v1713 = vld [vmem:[#allocation4 + $0x1d4] sm:$0xf]
    %v1714 = vld [vmem:[#allocation4 + $0x1d8] sm:$0xf]
    %v1715 = vld [vmem:[#allocation4 + $0x1dc] sm:$0xf]
    %v1716 = vld [vmem:[#allocation4 + $0x1e0] sm:$0xf]
    %v1717 = vld [vmem:[#allocation4 + $0x1e4] sm:$0xf]
    %v1718 = vld [vmem:[#allocation4 + $0x1e8] sm:$0xf]
    %v1719 = vld [vmem:[#allocation4 + $0x1ec] sm:$0xf]
    %v1720 = vld [vmem:[#allocation4 + $0x1f0] sm:$0xf]
    %v1721 = vld [vmem:[#allocation4 + $0x1f4] sm:$0xf]
    %v1722 = vld [vmem:[#allocation4 + $0x1f8] sm:$0xf]
    %v1723 = vld [vmem:[#allocation4 + $0x1fc] sm:$0xf]
    %v1724 = vld [vmem:[#allocation4 + $0x200] sm:$0xf]
    %v1725 = vld [vmem:[#allocation4 + $0x204] sm:$0xf]
    %v1726 = vld [vmem:[#allocation4 + $0x208] sm:$0xf]
    %v1727 = vld [vmem:[#allocation4 + $0x20c] sm:$0xf]
    %v1728 = vld [vmem:[#allocation4 + $0x210] sm:$0xf]
    %v1729 = vld [vmem:[#allocation4 + $0x214] sm:$0xf]
    %v1730 = vld [vmem:[#allocation4 + $0x218] sm:$0xf]
    %v1731 = vld [vmem:[#allocation4 + $0x21c] sm:$0xf]
    %v1732 = vld [vmem:[#allocation4 + $0x220] sm:$0xf]
    %v1733 = vld [vmem:[#allocation4 + $0x224] sm:$0xf]
    %v1734 = vld [vmem:[#allocation4 + $0x228] sm:$0xf]
    %v1735 = vld [vmem:[#allocation4 + $0x22c] sm:$0xf]
    %v1736 = vld [vmem:[#allocation4 + $0x230] sm:$0xf]
    %v1737 = vld [vmem:[#allocation4 + $0x234] sm:$0xf]
    %v1738 = vld [vmem:[#allocation4 + $0x238] sm:$0xf]
    %v1739 = vld [vmem:[#allocation4 + $0x23c] sm:$0xf]
    %v1740 = vld [vmem:[%s4 + $0x5] ss:$0 sm:$0xff]
    %v1789 = vunpack.c.l.b16 %v1692
    %v1790 = vunpack.c.l.b16 %v1693
    %v1791 = vunpack.c.l.b16 %v1694
    %v1792 = vunpack.c.l.b16 %v1695
    %v1793 = vunpack.c.l.b16 %v1696
    %v1794 = vunpack.c.l.b16 %v1697
    %v1795 = vunpack.c.l.b16 %v1698
    %v1796 = vunpack.c.l.b16 %v1699
    %v1797 = vunpack.c.l.b16 %v1700
    %v1798 = vunpack.c.l.b16 %v1701
    %v1799 = vunpack.c.l.b16 %v1702
    %v1800 = vunpack.c.l.b16 %v1703
    %v1801 = vunpack.c.l.b16 %v1704
    %v1802 = vunpack.c.l.b16 %v1705
    %v1803 = vunpack.c.l.b16 %v1706
    %v1804 = vunpack.c.l.b16 %v1707
    %v1805 = vunpack.c.l.b16 %v1708
    %v1806 = vunpack.c.l.b16 %v1709
    %v1807 = vunpack.c.l.b16 %v1710
    %v1808 = vunpack.c.l.b16 %v1711
    %v1809 = vunpack.c.l.b16 %v1712
    %v1810 = vunpack.c.l.b16 %v1713
    %v1811 = vunpack.c.l.b16 %v1714
    %v1812 = vunpack.c.l.b16 %v1715
    %v1813 = vunpack.c.l.b16 %v1716
    %v1814 = vunpack.c.l.b16 %v1717
    %v1815 = vunpack.c.l.b16 %v1718
    %v1816 = vunpack.c.l.b16 %v1719
    %v1817 = vunpack.c.l.b16 %v1720
    %v1818 = vunpack.c.l.b16 %v1721
    %v1819 = vunpack.c.l.b16 %v1722
    %v1820 = vunpack.c.l.b16 %v1723
    %v1821 = vunpack.c.l.b16 %v1724
    %v1822 = vunpack.c.l.b16 %v1725
    %v1823 = vunpack.c.l.b16 %v1726
    %v1824 = vunpack.c.l.b16 %v1727
    %v1825 = vunpack.c.l.b16 %v1728
    %v1826 = vunpack.c.l.b16 %v1729
    %v1827 = vunpack.c.l.b16 %v1730
    %v1828 = vunpack.c.l.b16 %v1731
    %v1829 = vunpack.c.l.b16 %v1732
    %v1830 = vunpack.c.l.b16 %v1733
    %v1831 = vunpack.c.l.b16 %v1734
    %v1832 = vunpack.c.l.b16 %v1735
    %v1833 = vunpack.c.l.b16 %v1736
    %v1834 = vunpack.c.l.b16 %v1737
    %v1835 = vunpack.c.l.b16 %v1738
    %v1836 = vunpack.c.l.b16 %v1739
    %v1837 = vpack.c.b16 %v1790, %v1789
    %v1838 = vpack.c.b16 %v1792, %v1791
    %v1839 = vpack.c.b16 %v1794, %v1793
    %v1840 = vpack.c.b16 %v1796, %v1795
    %v1841 = vpack.c.b16 %v1798, %v1797
    %v1842 = vpack.c.b16 %v1800, %v1799
    %v1843 = vpack.c.b16 %v1802, %v1801
    %v1844 = vpack.c.b16 %v1804, %v1803
    %v1845 = vpack.c.b16 %v1806, %v1805
    %v1846 = vpack.c.b16 %v1808, %v1807
    %v1847 = vpack.c.b16 %v1810, %v1809
    %v1848 = vpack.c.b16 %v1812, %v1811
    %v1849 = vpack.c.b16 %v1814, %v1813
    %v1850 = vpack.c.b16 %v1816, %v1815
    %v1851 = vpack.c.b16 %v1818, %v1817
    %v1852 = vpack.c.b16 %v1820, %v1819
    %v1853 = vpack.c.b16 %v1822, %v1821
    %v1854 = vpack.c.b16 %v1824, %v1823
    %v1855 = vpack.c.b16 %v1826, %v1825
    %v1856 = vpack.c.b16 %v1828, %v1827
    %v1857 = vpack.c.b16 %v1830, %v1829
    %v1858 = vpack.c.b16 %v1832, %v1831
    %v1859 = vpack.c.b16 %v1834, %v1833
    %v1860 = vpack.c.b16 %v1836, %v1835
    %1885 = vmatpush.bf16.msra.mxu0 %v1844
    %1886 = vmatpush.bf16.msra.mxu0 %v1843
    %1887 = vmatpush.bf16.msra.mxu0 %v1842
    %1888 = vmatpush.bf16.msra.mxu0 %v1841
    %1889 = vmatpush.bf16.msra.mxu0 %v1840
    %1890 = vmatpush.bf16.msra.mxu0 %v1839
    %1891 = vmatpush.bf16.msra.mxu0 %v1838
    %1892 = vmatpush.bf16.msra.mxu0 %v1837
    %1893 = vmatmul.bf16.gmra.mxu0 %v1660
    %v1894 = vpop.f32.mrf.mxu0
    %v1895 = vadd.f32 %v1740, %v1894
    %v1896 = vpop.f32.mrf.mxu0
    %v1897 = vadd.f32 %v1740, %v1896
    %1898 = vmatmul.bf16.gmra.mxu0 %v1661
    %v1899 = vpop.f32.mrf.mxu0
    %v1900 = vadd.f32 %v1740, %v1899
    %v1901 = vpop.f32.mrf.mxu0
    %v1902 = vadd.f32 %v1740, %v1901
    %1903 = vmatmul.bf16.gmra.mxu0 %v1662
    %v1904 = vpop.f32.mrf.mxu0
    %v1905 = vadd.f32 %v1740, %v1904
    %v1906 = vpop.f32.mrf.mxu0
    %v1907 = vadd.f32 %v1740, %v1906
    %1908 = vmatmul.bf16.gmra.mxu0 %v1663
    %v1909 = vpop.f32.mrf.mxu0
    %v1910 = vadd.f32 %v1740, %v1909
    %v1911 = vpop.f32.mrf.mxu0
    %v1912 = vadd.f32 %v1740, %v1911
    %1913 = vdwg.mxu0
    %1914 = vmatpush.bf16.msra.mxu0 %v1852
    %1915 = vmatpush.bf16.msra.mxu0 %v1851
    %1916 = vmatpush.bf16.msra.mxu0 %v1850
    %1917 = vmatpush.bf16.msra.mxu0 %v1849
    %1918 = vmatpush.bf16.msra.mxu0 %v1848
    %1919 = vmatpush.bf16.msra.mxu0 %v1847
    %1920 = vmatpush.bf16.msra.mxu0 %v1846
    %1921 = vmatpush.bf16.msra.mxu0 %v1845
    %1922 = vmatmul.bf16.gmra.mxu0 %v1684
    %v1923 = vpop.f32.mrf.mxu0
    %v1924 = vadd.f32 %v1895, %v1923
    %v1925 = vpop.f32.mrf.mxu0
    %v1926 = vadd.f32 %v1897, %v1925
    %1927 = vmatmul.bf16.gmra.mxu0 %v1685
    %v1928 = vpop.f32.mrf.mxu0
    %v1929 = vadd.f32 %v1900, %v1928
    %v1930 = vpop.f32.mrf.mxu0
    %v1931 = vadd.f32 %v1902, %v1930
    %1932 = vmatmul.bf16.gmra.mxu0 %v1686
    %v1933 = vpop.f32.mrf.mxu0
    %v1934 = vadd.f32 %v1905, %v1933
    %v1935 = vpop.f32.mrf.mxu0
    %v1936 = vadd.f32 %v1907, %v1935
    %1937 = vmatmul.bf16.gmra.mxu0 %v1687
    %v1938 = vpop.f32.mrf.mxu0
    %v1939 = vadd.f32 %v1910, %v1938
    %v1940 = vpop.f32.mrf.mxu0
    %v1941 = vadd.f32 %v1912, %v1940
    %1942 = vdwg.mxu0
    %1943 = vmatpush.bf16.msra.mxu0 %v1860
    %1944 = vmatpush.bf16.msra.mxu0 %v1859
    %1945 = vmatpush.bf16.msra.mxu0 %v1858
    %1946 = vmatpush.bf16.msra.mxu0 %v1857
    %1947 = vmatpush.bf16.msra.mxu0 %v1856
    %1948 = vmatpush.bf16.msra.mxu0 %v1855
    %1949 = vmatpush.bf16.msra.mxu0 %v1854
    %1950 = vmatpush.bf16.msra.mxu0 %v1853
    %1951 = vmatmul.bf16.gmra.mxu0 %v1458
    %v1952 = vpop.f32.mrf.mxu0
    %v1953 = vadd.f32 %v1924, %v1952
    %v1954 = vpop.f32.mrf.mxu0
    %v1955 = vadd.f32 %v1926, %v1954
    %1956 = vmatmul.bf16.gmra.mxu0 %v1459
    %v1957 = vpop.f32.mrf.mxu0
    %v1958 = vadd.f32 %v1929, %v1957
    %v1959 = vpop.f32.mrf.mxu0
    %v1960 = vadd.f32 %v1931, %v1959
    %1961 = vmatmul.bf16.gmra.mxu0 %v1460
    %v1962 = vpop.f32.mrf.mxu0
    %v1963 = vadd.f32 %v1934, %v1962
    %v1964 = vpop.f32.mrf.mxu0
    %v1965 = vadd.f32 %v1936, %v1964
    %1966 = vmatmul.bf16.gmra.mxu0 %v1461
    %v1967 = vpop.f32.mrf.mxu0
    %v1968 = vadd.f32 %v1939, %v1967
    %v1969 = vpop.f32.mrf.mxu0
    %v1970 = vadd.f32 %v1941, %v1969
    %1971 = vdwg.mxu0
    %v1972 = vmax.f32 %v1953, 0.0
    %v1973 = vmax.f32 %v1955, 0.0
    %v1974 = vmax.f32 %v1958, 0.0
    %v1975 = vmax.f32 %v1960, 0.0
    %v1976 = vmax.f32 %v1963, 0.0
    %v1977 = vmax.f32 %v1965, 0.0
    %v1978 = vmax.f32 %v1968, 0.0
    %v1979 = vmax.f32 %v1970, 0.0
    %1980 = vst [vmem:[%s5] sm:$0xff] %v1972
    %1981 = vst [vmem:[%s5 + $0x8] sm:$0xff] %v1973
    %1982 = vst [vmem:[%s5 + $0x10] sm:$0xff] %v1974
    %1983 = vst [vmem:[%s5 + $0x18] sm:$0xff] %v1975
    %1984 = vst [vmem:[%s5 + $0x20] sm:$0xff] %v1976
    %1985 = vst [vmem:[%s5 + $0x28] sm:$0xff] %v1977
    %1986 = vst [vmem:[%s5 + $0x30] sm:$0xff] %v1978
    %1987 = vst [vmem:[%s5 + $0x38] sm:$0xff] %v1979
    // Predicated region
    $region30: #{_lambda_.1} parent=1 // pred_check
      _
    $region31: #{_lambda_.1} parent=1 // pred_check_branch
      %1989 = sbr.rel (0) target = $region33
    $region32: #{_lambda_.1} parent=1 // pred_region
      _
    $region33: #{_lambda_.1} parent=1 // pred_fallthru
      _
    // Predicated region
    $region34: #{_lambda_.1} parent=1 // pred_check
      _
    $region35: #{_lambda_.1} parent=1 // pred_check_branch
      %1991 = sbr.rel (0) target = $region37
    $region36: #{_lambda_.1} parent=1 // pred_region
      _
    $region37: #{_lambda_.1} parent=1 // pred_fallthru
      _
    %1992 = vsyncpa [#allocation3], 1
    %1993 = vsyncpa [#allocation5], 1

// kernel: _lambda_.1
$region0: #{_lambda_.1}
  #allocation0 [shape = 'u32[]', space=smem, size = 0x4, offset = 0x4, fixed_abs, tag = 'smem constant byte address 0x4 - core index']
  #allocation1 [shape = 'u32[72,128]{1,0:T(1,128)}', space=vmem, size = 0x9000, scoped, tag = 'internal scratch']
  %s0 = inlined_call_operand.vmem [shape: f32[64,128], index: 0, kind: input, shape index: {}]
  %s1 = inlined_call_operand.vmem [shape: f32[64,128], index: 1, kind: input, shape index: {}]
  %s2 = inlined_call_operand.hbm [shape: bf16[384,384], index: 2, kind: input, shape index: {}]
  %s3 = inlined_call_operand.hbm [shape: bf16[1152,128], index: 3, kind: input, shape index: {}]
  %s4 = inlined_call_operand.vmem [shape: f32[8,384], index: 4, kind: input, shape index: {}]
  %s5 = inlined_call_operand.vmem [shape: f32[64,128], index: 5, kind: output, shape index: {}]
  %s6 = sld [smem:[#allocation0]]
  $region38: #{_lambda_.1} parent=0
    _
  %s8 = ssub.s32 1, %s6
  %s9 = scalar_select 0, %s8, %s6
  $region1: #{_lambda_.1} parent=0
    #allocation2 [shape = 'u8[294912]{0}', space=vmem, size = 0x48000, scoped, tag = 'input window, operand 2, single buffered']
    #allocation3 [shape = 's32[1]{0}', space=sflag, size = 0x4, scoped, tag = 'scoped memory for _lambda_.1']
    #allocation4 [shape = 'u8[294912]{0}', space=vmem, size = 0x48000, scoped, tag = 'input window, operand 3, single buffered']
    #allocation5 [shape = 's32[1]{0}', space=sflag, size = 0x4, scoped, tag = 'scoped memory for _lambda_.1']
    %10 = vsyncpa [#allocation3], 0
    %11 = vsyncpa [#allocation5], 0
    // Predicated region
    $region2: #{_lambda_.1} parent=1 // pred_check
      _
    $region3: #{_lambda_.1} parent=1 // pred_check_branch
      %13 = sbr.rel (0) target = $region5
    $region4: #{_lambda_.1} parent=1 // pred_region
      _
    $region5: #{_lambda_.1} parent=1 // pred_fallthru
      _
    // Predicated region
    $region6: #{_lambda_.1} parent=1 // pred_check
      _
    $region7: #{_lambda_.1} parent=1 // pred_check_branch
      %15 = sbr.rel (0) target = $region9
    $region8: #{_lambda_.1} parent=1 // pred_region
      _
    $region9: #{_lambda_.1} parent=1 // pred_fallthru
      _
    // Predicated region
    $region10: #{_lambda_.1} parent=1 // pred_check
      _
    $region11: #{_lambda_.1} parent=1 // pred_check_branch
      %17 = sbr.rel (0) target = $region13
    $region12: #{_lambda_.1} parent=1 // pred_region
      %19 = vsyncadd [#allocation3], 0
      %s20 = sshll.u32 %s2, 4
      %s21 = int_to_ptr.hbm [resolvable:$true] %s20
      %s22 = sshll.u32 [#allocation2], 4
      %s23 = int_to_ptr.vmem [resolvable:$true] %s22
      %28 = dma.hbm_to_vmem [thread:$0]  %s21, 9216, %s23, [#allocation3], 192, 192, 12
    $region13: #{_lambda_.1} parent=1 // pred_fallthru
      _
    // Predicated region
    $region14: #{_lambda_.1} parent=1 // pred_check
      _
    $region15: #{_lambda_.1} parent=1 // pred_check_branch
      %30 = sbr.rel (0) target = $region17
    $region16: #{_lambda_.1} parent=1 // pred_region
      %32 = vsyncadd [#allocation5], 0
      %s33 = sshll.u32 %s3, 4
      %s34 = int_to_ptr.hbm [resolvable:$true] %s33
      %s35 = sshll.u32 [#allocation4], 4
      %s36 = int_to_ptr.vmem [resolvable:$true] %s35
      %41 = dma.hbm_to_vmem [thread:$0]  %s34, 9216, %s36, [#allocation5], 64, 64, 4
    $region17: #{_lambda_.1} parent=1 // pred_fallthru
      _
    // Predicated region
    $region18: #{_lambda_.1} parent=1 // pred_check
      _
    $region19: #{_lambda_.1} parent=1 // pred_check_branch
      %43 = sbr.rel (0) target = $region21
    $region20: #{_lambda_.1} parent=1 // pred_region
      _
    $region21: #{_lambda_.1} parent=1 // pred_fallthru
      _
    // Predicated region
    $region22: #{_lambda_.1} parent=1 // pred_check
      _
    $region23: #{_lambda_.1} parent=1 // pred_check_branch
      %45 = sbr.rel (0) target = $region25
    $region24: #{_lambda_.1} parent=1 // pred_region
      %47 = dma.done [#allocation3], 9216
    $region25: #{_lambda_.1} parent=1 // pred_fallthru
      _
    // Predicated region
    $region26: #{_lambda_.1} parent=1 // pred_check
      _
    $region27: #{_lambda_.1} parent=1 // pred_check_branch
      %49 = sbr.rel (0) target = $region29
    $region28: #{_lambda_.1} parent=1 // pred_region
      %51 = dma.done [#allocation5], 9216
    $region29: #{_lambda_.1} parent=1 // pred_fallthru
      _
    %v52 = vld [vmem:[%s1] sm:$0xff]
    %v53 = vld [vmem:[%s1 + $0x8] sm:$0xff]
    %v54 = vld [vmem:[%s1 + $0x10] sm:$0xff]
    %v55 = vld [vmem:[%s1 + $0x18] sm:$0xff]
    %v56 = vld [vmem:[%s1 + $0x20] sm:$0xff]
    %v57 = vld [vmem:[%s1 + $0x28] sm:$0xff]
    %v58 = vld [vmem:[%s1 + $0x30] sm:$0xff]
    %v59 = vld [vmem:[%s1 + $0x38] sm:$0xff]
    %v60 = vld [vmem:[%s0] sm:$0xff]
    %v61 = vld [vmem:[%s0 + $0x8] sm:$0xff]
    %v62 = vld [vmem:[%s0 + $0x10] sm:$0xff]
    %v63 = vld [vmem:[%s0 + $0x18] sm:$0xff]
    %v64 = vld [vmem:[%s0 + $0x20] sm:$0xff]
    %v65 = vld [vmem:[%s0 + $0x28] sm:$0xff]
    %v66 = vld [vmem:[%s0 + $0x30] sm:$0xff]
    %v67 = vld [vmem:[%s0 + $0x38] sm:$0xff]
    %v68 = vld [vmem:[#allocation2] sm:$0xff]
    %v69 = vld [vmem:[#allocation2 + $0x8] sm:$0xf]
    %v70 = vld [vmem:[#allocation2 + $0xc] sm:$0xff]
    %v71 = vld [vmem:[#allocation2 + $0x14] sm:$0xf]
    %v72 = vld [vmem:[#allocation2 + $0x18] sm:$0xff]
    %v73 = vld [vmem:[#allocation2 + $0x20] sm:$0xf]
    %v74 = vld [vmem:[#allocation2 + $0x24] sm:$0xff]
    %v75 = vld [vmem:[#allocation2 + $0x2c] sm:$0xf]
    %v76 = vld [vmem:[#allocation2 + $0x30] sm:$0xff]
    %v77 = vld [vmem:[#allocation2 + $0x38] sm:$0xf]
    %v78 = vld [vmem:[#allocation2 + $0x3c] sm:$0xff]
    %v79 = vld [vmem:[#allocation2 + $0x44] sm:$0xf]
    %v80 = vld [vmem:[#allocation2 + $0x48] sm:$0xff]
    %v81 = vld [vmem:[#allocation2 + $0x50] sm:$0xf]
    %v82 = vld [vmem:[#allocation2 + $0x54] sm:$0xff]
    %v83 = vld [vmem:[#allocation2 + $0x5c] sm:$0xf]
    %v84 = vld [vmem:[#allocation2 + $0x60] sm:$0xff]
    %v85 = vld [vmem:[#allocation2 + $0x68] sm:$0xf]
    %v86 = vld [vmem:[#allocation2 + $0x6c] sm:$0xff]
    %v87 = vld [vmem:[#allocation2 + $0x74] sm:$0xf]
    %v88 = vld [vmem:[#allocation2 + $0x78] sm:$0xff]
    %v89 = vld [vmem:[#allocation2 + $0x80] sm:$0xf]
    %v90 = vld [vmem:[#allocation2 + $0x84] sm:$0xff]
    %v91 = vld [vmem:[#allocation2 + $0x8c] sm:$0xf]
    %v92 = vld [vmem:[#allocation2 + $0x90] sm:$0xff]
    %v93 = vld [vmem:[#allocation2 + $0x98] sm:$0xf]
    %v94 = vld [vmem:[#allocation2 + $0x9c] sm:$0xff]
    %v95 = vld [vmem:[#allocation2 + $0xa4] sm:$0xf]
    %v96 = vld [vmem:[#allocation2 + $0xa8] sm:$0xff]
    %v97 = vld [vmem:[#allocation2 + $0xb0] sm:$0xf]
    %v98 = vld [vmem:[#allocation2 + $0xb4] sm:$0xff]
    %v99 = vld [vmem:[#allocation2 + $0xbc] sm:$0xf]
    %v100 = vld [vmem:[%s4] ss:$8 sm:$0x7]
    %v101 = vpack.c.bf16 %v60, %v60
    %v102 = vpack.c.bf16 %v61, %v61
    %v103 = vpack.c.bf16 %v62, %v62
    %v104 = vpack.c.bf16 %v63, %v63
    %v105 = vpack.c.bf16 %v64, %v64
    %v106 = vpack.c.bf16 %v65, %v65
    %v107 = vpack.c.bf16 %v66, %v66
    %v108 = vpack.c.bf16 %v67, %v67
    %v110 = vperm.slane %v100, 0
    %v111 = vperm.slane %v100, 1
    %v112 = vperm.slane %v100, 2
    %v124 = vunpack.c.l.b16 %v101
    %v125 = vunpack.c.l.b16 %v102
    %v126 = vunpack.c.l.b16 %v103
    %v127 = vunpack.c.l.b16 %v104
    %v128 = vunpack.c.l.b16 %v105
    %v129 = vunpack.c.l.b16 %v106
    %v130 = vunpack.c.l.b16 %v107
    %v131 = vunpack.c.l.b16 %v108
    %v132 = vpack.c.b16 %v125, %v124
    %v133 = vpack.c.b16 %v127, %v126
    %v134 = vpack.c.b16 %v129, %v128
    %v135 = vpack.c.b16 %v131, %v130
    %v172 = vunpack.c.l.b16 %v68
    %v173 = vunpack.c.h.b16 %v68
    %v174 = vunpack.c.l.b16 %v69
    %v175 = vunpack.c.l.b16 %v70
    %v176 = vunpack.c.h.b16 %v70
    %v177 = vunpack.c.l.b16 %v71
    %v178 = vunpack.c.l.b16 %v72
    %v179 = vunpack.c.h.b16 %v72
    %v180 = vunpack.c.l.b16 %v73
    %v181 = vunpack.c.l.b16 %v74
    %v182 = vunpack.c.h.b16 %v74
    %v183 = vunpack.c.l.b16 %v75
    %v184 = vunpack.c.l.b16 %v76
    %v185 = vunpack.c.h.b16 %v76
    %v186 = vunpack.c.l.b16 %v77
    %v187 = vunpack.c.l.b16 %v78
    %v188 = vunpack.c.h.b16 %v78
    %v189 = vunpack.c.l.b16 %v79
    %v190 = vunpack.c.l.b16 %v80
    %v191 = vunpack.c.h.b16 %v80
    %v192 = vunpack.c.l.b16 %v81
    %v193 = vunpack.c.l.b16 %v82
    %v194 = vunpack.c.h.b16 %v82
    %v195 = vunpack.c.l.b16 %v83
    %v196 = vunpack.c.l.b16 %v84
    %v197 = vunpack.c.h.b16 %v84
    %v198 = vunpack.c.l.b16 %v85
    %v199 = vunpack.c.l.b16 %v86
    %v200 = vunpack.c.h.b16 %v86
    %v201 = vunpack.c.l.b16 %v87
    %v202 = vunpack.c.l.b16 %v88
    %v203 = vunpack.c.h.b16 %v88
    %v204 = vunpack.c.l.b16 %v89
    %v205 = vunpack.c.l.b16 %v90
    %v206 = vunpack.c.h.b16 %v90
    %v207 = vunpack.c.l.b16 %v91
    %v208 = vunpack.c.l.b16 %v92
    %v209 = vunpack.c.h.b16 %v92
    %v210 = vunpack.c.l.b16 %v93
    %v211 = vunpack.c.l.b16 %v94
    %v212 = vunpack.c.h.b16 %v94
    %v213 = vunpack.c.l.b16 %v95
    %v214 = vunpack.c.l.b16 %v96
    %v215 = vunpack.c.h.b16 %v96
    %v216 = vunpack.c.l.b16 %v97
    %v217 = vunpack.c.l.b16 %v98
    %v218 = vunpack.c.h.b16 %v98
    %v219 = vunpack.c.l.b16 %v99
    %v220 = vpack.c.b16 %v175, %v172
    %v221 = vpack.c.b16 %v176, %v173
    %v222 = vpack.c.b16 %v177, %v174
    %v223 = vpack.c.b16 %v181, %v178
    %v224 = vpack.c.b16 %v182, %v179
    %v225 = vpack.c.b16 %v183, %v180
    %v226 = vpack.c.b16 %v187, %v184
    %v227 = vpack.c.b16 %v188, %v185
    %v228 = vpack.c.b16 %v189, %v186
    %v229 = vpack.c.b16 %v193, %v190
    %v230 = vpack.c.b16 %v194, %v191
    %v231 = vpack.c.b16 %v195, %v192
    %v232 = vpack.c.b16 %v199, %v196
    %v233 = vpack.c.b16 %v200, %v197
    %v234 = vpack.c.b16 %v201, %v198
    %v235 = vpack.c.b16 %v205, %v202
    %v236 = vpack.c.b16 %v206, %v203
    %v237 = vpack.c.b16 %v207, %v204
    %v238 = vpack.c.b16 %v211, %v208
    %v239 = vpack.c.b16 %v212, %v209
    %v240 = vpack.c.b16 %v213, %v210
    %v241 = vpack.c.b16 %v217, %v214
    %v242 = vpack.c.b16 %v218, %v215
    %v243 = vpack.c.b16 %v219, %v216
    %268 = vmatpush.bf16.msra.mxu0 %v241
    %269 = vmatpush.bf16.msra.mxu0 %v238
    %270 = vmatpush.bf16.msra.mxu0 %v235
    %271 = vmatpush.bf16.msra.mxu0 %v232
    %272 = vmatpush.bf16.msra.mxu0 %v229
    %273 = vmatpush.bf16.msra.mxu0 %v226
    %274 = vmatpush.bf16.msra.mxu0 %v223
    %275 = vmatpush.bf16.msra.mxu0 %v220
    %276 = vmatmul.bf16.gmra.mxu0 %v132
    %v277 = vpop.f32.mrf.mxu0
    %v278 = vadd.f32 %v110, %v277
    %v279 = vpop.f32.mrf.mxu0
    %v280 = vadd.f32 %v110, %v279
    %281 = vmatmul.bf16.gmra.mxu0 %v133
    %v282 = vpop.f32.mrf.mxu0
    %v283 = vadd.f32 %v110, %v282
    %v284 = vpop.f32.mrf.mxu0
    %v285 = vadd.f32 %v110, %v284
    %286 = vmatmul.bf16.gmra.mxu0 %v134
    %v287 = vpop.f32.mrf.mxu0
    %v288 = vadd.f32 %v110, %v287
    %v289 = vpop.f32.mrf.mxu0
    %v290 = vadd.f32 %v110, %v289
    %291 = vmatmul.bf16.gmra.mxu0 %v135
    %v292 = vpop.f32.mrf.mxu0
    %v293 = vadd.f32 %v110, %v292
    %v294 = vpop.f32.mrf.mxu0
    %v295 = vadd.f32 %v110, %v294
    %296 = vdwg.mxu0
    %297 = vmatpush.bf16.msra.mxu0 %v242
    %298 = vmatpush.bf16.msra.mxu0 %v239
    %299 = vmatpush.bf16.msra.mxu0 %v236
    %300 = vmatpush.bf16.msra.mxu0 %v233
    %301 = vmatpush.bf16.msra.mxu0 %v230
    %302 = vmatpush.bf16.msra.mxu0 %v227
    %303 = vmatpush.bf16.msra.mxu0 %v224
    %304 = vmatpush.bf16.msra.mxu0 %v221
    %305 = vmatmul.bf16.gmra.mxu0 %v132
    %v306 = vpop.f32.mrf.mxu0
    %v307 = vadd.f32 %v111, %v306
    %v308 = vpop.f32.mrf.mxu0
    %v309 = vadd.f32 %v111, %v308
    %310 = vmatmul.bf16.gmra.mxu0 %v133
    %v311 = vpop.f32.mrf.mxu0
    %v312 = vadd.f32 %v111, %v311
    %v313 = vpop.f32.mrf.mxu0
    %v314 = vadd.f32 %v111, %v313
    %315 = vmatmul.bf16.gmra.mxu0 %v134
    %v316 = vpop.f32.mrf.mxu0
    %v317 = vadd.f32 %v111, %v316
    %v318 = vpop.f32.mrf.mxu0
    %v319 = vadd.f32 %v111, %v318
    %320 = vmatmul.bf16.gmra.mxu0 %v135
    %v321 = vpop.f32.mrf.mxu0
    %v322 = vadd.f32 %v111, %v321
    %v323 = vpop.f32.mrf.mxu0
    %v324 = vadd.f32 %v111, %v323
    %325 = vdwg.mxu0
    %326 = vmatpush.bf16.msra.mxu0 %v243
    %327 = vmatpush.bf16.msra.mxu0 %v240
    %328 = vmatpush.bf16.msra.mxu0 %v237
    %329 = vmatpush.bf16.msra.mxu0 %v234
    %330 = vmatpush.bf16.msra.mxu0 %v231
    %331 = vmatpush.bf16.msra.mxu0 %v228
    %332 = vmatpush.bf16.msra.mxu0 %v225
    %333 = vmatpush.bf16.msra.mxu0 %v222
    %334 = vmatmul.bf16.gmra.mxu0 %v132
    %v335 = vpop.f32.mrf.mxu0
    %v336 = vadd.f32 %v112, %v335
    %v337 = vpop.f32.mrf.mxu0
    %v338 = vadd.f32 %v112, %v337
    %339 = vmatmul.bf16.gmra.mxu0 %v133
    %v340 = vpop.f32.mrf.mxu0
    %v341 = vadd.f32 %v112, %v340
    %v342 = vpop.f32.mrf.mxu0
    %v343 = vadd.f32 %v112, %v342
    %344 = vmatmul.bf16.gmra.mxu0 %v134
    %v345 = vpop.f32.mrf.mxu0
    %v346 = vadd.f32 %v112, %v345
    %v347 = vpop.f32.mrf.mxu0
    %v348 = vadd.f32 %v112, %v347
    %349 = vmatmul.bf16.gmra.mxu0 %v135
    %v350 = vpop.f32.mrf.mxu0
    %v351 = vadd.f32 %v112, %v350
    %v352 = vpop.f32.mrf.mxu0
    %v353 = vadd.f32 %v112, %v352
    %354 = vdwg.mxu0
    %v355 = vmul.f32 %v278, 0.0
    %v356 = vmul.f32 %v280, 0.0
    %v357 = vmul.f32 %v283, 0.0
    %v358 = vmul.f32 %v285, 0.0
    %v359 = vmul.f32 %v288, 0.0
    %v360 = vmul.f32 %v290, 0.0
    %v361 = vmul.f32 %v293, 0.0
    %v362 = vmul.f32 %v295, 0.0
    %v363 = vmax.f32 %v355, 0.0
    %v364 = vmax.f32 %v356, 0.0
    %v365 = vmax.f32 %v357, 0.0
    %v366 = vmax.f32 %v358, 0.0
    %v367 = vmax.f32 %v359, 0.0
    %v368 = vmax.f32 %v360, 0.0
    %v369 = vmax.f32 %v361, 0.0
    %v370 = vmax.f32 %v362, 0.0
    %v371 = vmul.f32 %v52, %v307
    %v372 = vmul.f32 %v53, %v309
    %v373 = vmul.f32 %v54, %v312
    %v374 = vmul.f32 %v55, %v314
    %v375 = vmul.f32 %v56, %v317
    %v376 = vmul.f32 %v57, %v319
    %v377 = vmul.f32 %v58, %v322
    %v378 = vmul.f32 %v59, %v324
    %v379 = vpack.c.bf16 %v363, %v363
    %v380 = vpack.c.bf16 %v364, %v364
    %v381 = vpack.c.bf16 %v365, %v365
    %v382 = vpack.c.bf16 %v366, %v366
    %v383 = vpack.c.bf16 %v367, %v367
    %v384 = vpack.c.bf16 %v368, %v368
    %v385 = vpack.c.bf16 %v369, %v369
    %v386 = vpack.c.bf16 %v370, %v370
    %v387 = vpack.c.bf16 %v371, %v371
    %v388 = vpack.c.bf16 %v372, %v372
    %v389 = vpack.c.bf16 %v373, %v373
    %v390 = vpack.c.bf16 %v374, %v374
    %v391 = vpack.c.bf16 %v375, %v375
    %v392 = vpack.c.bf16 %v376, %v376
    %v393 = vpack.c.bf16 %v377, %v377
    %v394 = vpack.c.bf16 %v378, %v378
    %v403 = vunpack.c.l.b16 %v379
    %v404 = vunpack.c.l.b16 %v380
    %v405 = vunpack.c.l.b16 %v381
    %v406 = vunpack.c.l.b16 %v382
    %v407 = vunpack.c.l.b16 %v383
    %v408 = vunpack.c.l.b16 %v384
    %v409 = vunpack.c.l.b16 %v385
    %v410 = vunpack.c.l.b16 %v386
    %v411 = vpack.c.b16 %v404, %v403
    %v412 = vpack.c.b16 %v406, %v405
    %v413 = vpack.c.b16 %v408, %v407
    %v414 = vpack.c.b16 %v410, %v409
    %v427 = vunpack.c.l.b16 %v387
    %v428 = vunpack.c.l.b16 %v388
    %v429 = vunpack.c.l.b16 %v389
    %v430 = vunpack.c.l.b16 %v390
    %v431 = vunpack.c.l.b16 %v391
    %v432 = vunpack.c.l.b16 %v392
    %v433 = vunpack.c.l.b16 %v393
    %v434 = vunpack.c.l.b16 %v394
    %v435 = vpack.c.b16 %v428, %v427
    %v436 = vpack.c.b16 %v430, %v429
    %v437 = vpack.c.b16 %v432, %v431
    %v438 = vpack.c.b16 %v434, %v433
    %v443 = vld [vmem:[#allocation4] sm:$0xf]
    %v444 = vld [vmem:[#allocation4 + $0x4] sm:$0xf]
    %v445 = vld [vmem:[#allocation4 + $0x8] sm:$0xf]
    %v446 = vld [vmem:[#allocation4 + $0xc] sm:$0xf]
    %v447 = vld [vmem:[#allocation4 + $0x10] sm:$0xf]
    %v448 = vld [vmem:[#allocation4 + $0x14] sm:$0xf]
    %v449 = vld [vmem:[#allocation4 + $0x18] sm:$0xf]
    %v450 = vld [vmem:[#allocation4 + $0x1c] sm:$0xf]
    %v451 = vld [vmem:[#allocation4 + $0x20] sm:$0xf]
    %v452 = vld [vmem:[#allocation4 + $0x24] sm:$0xf]
    %v453 = vld [vmem:[#allocation4 + $0x28] sm:$0xf]
    %v454 = vld [vmem:[#allocation4 + $0x2c] sm:$0xf]
    %v455 = vld [vmem:[#allocation4 + $0x30] sm:$0xf]
    %v456 = vld [vmem:[#allocation4 + $0x34] sm:$0xf]
    %v457 = vld [vmem:[#allocation4 + $0x38] sm:$0xf]
    %v458 = vld [vmem:[#allocation4 + $0x3c] sm:$0xf]
    %v459 = vld [vmem:[#allocation4 + $0x40] sm:$0xf]
    %v460 = vld [vmem:[#allocation4 + $0x44] sm:$0xf]
    %v461 = vld [vmem:[#allocation4 + $0x48] sm:$0xf]
    %v462 = vld [vmem:[#allocation4 + $0x4c] sm:$0xf]
    %v463 = vld [vmem:[#allocation4 + $0x50] sm:$0xf]
    %v464 = vld [vmem:[#allocation4 + $0x54] sm:$0xf]
    %v465 = vld [vmem:[#allocation4 + $0x58] sm:$0xf]
    %v466 = vld [vmem:[#allocation4 + $0x5c] sm:$0xf]
    %v467 = vld [vmem:[#allocation4 + $0x60] sm:$0xf]
    %v468 = vld [vmem:[#allocation4 + $0x64] sm:$0xf]
    %v469 = vld [vmem:[#allocation4 + $0x68] sm:$0xf]
    %v470 = vld [vmem:[#allocation4 + $0x6c] sm:$0xf]
    %v471 = vld [vmem:[#allocation4 + $0x70] sm:$0xf]
    %v472 = vld [vmem:[#allocation4 + $0x74] sm:$0xf]
    %v473 = vld [vmem:[#allocation4 + $0x78] sm:$0xf]
    %v474 = vld [vmem:[#allocation4 + $0x7c] sm:$0xf]
    %v475 = vld [vmem:[#allocation4 + $0x80] sm:$0xf]
    %v476 = vld [vmem:[#allocation4 + $0x84] sm:$0xf]
    %v477 = vld [vmem:[#allocation4 + $0x88] sm:$0xf]
    %v478 = vld [vmem:[#allocation4 + $0x8c] sm:$0xf]
    %v479 = vld [vmem:[#allocation4 + $0x90] sm:$0xf]
    %v480 = vld [vmem:[#allocation4 + $0x94] sm:$0xf]
    %v481 = vld [vmem:[#allocation4 + $0x98] sm:$0xf]
    %v482 = vld [vmem:[#allocation4 + $0x9c] sm:$0xf]
    %v483 = vld [vmem:[#allocation4 + $0xa0] sm:$0xf]
    %v484 = vld [vmem:[#allocation4 + $0xa4] sm:$0xf]
    %v485 = vld [vmem:[#allocation4 + $0xa8] sm:$0xf]
    %v486 = vld [vmem:[#allocation4 + $0xac] sm:$0xf]
    %v487 = vld [vmem:[#allocation4 + $0xb0] sm:$0xf]
    %v488 = vld [vmem:[#allocation4 + $0xb4] sm:$0xf]
    %v489 = vld [vmem:[#allocation4 + $0xb8] sm:$0xf]
    %v490 = vld [vmem:[#allocation4 + $0xbc] sm:$0xf]
    %v491 = vld [vmem:[%s4 + $0x1] ss:$0 sm:$0xff]
    %v540 = vunpack.c.l.b16 %v443
    %v541 = vunpack.c.l.b16 %v444
    %v542 = vunpack.c.l.b16 %v445
    %v543 = vunpack.c.l.b16 %v446
    %v544 = vunpack.c.l.b16 %v447
    %v545 = vunpack.c.l.b16 %v448
    %v546 = vunpack.c.l.b16 %v449
    %v547 = vunpack.c.l.b16 %v450
    %v548 = vunpack.c.l.b16 %v451
    %v549 = vunpack.c.l.b16 %v452
    %v550 = vunpack.c.l.b16 %v453
    %v551 = vunpack.c.l.b16 %v454
    %v552 = vunpack.c.l.b16 %v455
    %v553 = vunpack.c.l.b16 %v456
    %v554 = vunpack.c.l.b16 %v457
    %v555 = vunpack.c.l.b16 %v458
    %v556 = vunpack.c.l.b16 %v459
    %v557 = vunpack.c.l.b16 %v460
    %v558 = vunpack.c.l.b16 %v461
    %v559 = vunpack.c.l.b16 %v462
    %v560 = vunpack.c.l.b16 %v463
    %v561 = vunpack.c.l.b16 %v464
    %v562 = vunpack.c.l.b16 %v465
    %v563 = vunpack.c.l.b16 %v466
    %v564 = vunpack.c.l.b16 %v467
    %v565 = vunpack.c.l.b16 %v468
    %v566 = vunpack.c.l.b16 %v469
    %v567 = vunpack.c.l.b16 %v470
    %v568 = vunpack.c.l.b16 %v471
    %v569 = vunpack.c.l.b16 %v472
    %v570 = vunpack.c.l.b16 %v473
    %v571 = vunpack.c.l.b16 %v474
    %v572 = vunpack.c.l.b16 %v475
    %v573 = vunpack.c.l.b16 %v476
    %v574 = vunpack.c.l.b16 %v477
    %v575 = vunpack.c.l.b16 %v478
    %v576 = vunpack.c.l.b16 %v479
    %v577 = vunpack.c.l.b16 %v480
    %v578 = vunpack.c.l.b16 %v481
    %v579 = vunpack.c.l.b16 %v482
    %v580 = vunpack.c.l.b16 %v483
    %v581 = vunpack.c.l.b16 %v484
    %v582 = vunpack.c.l.b16 %v485
    %v583 = vunpack.c.l.b16 %v486
    %v584 = vunpack.c.l.b16 %v487
    %v585 = vunpack.c.l.b16 %v488
    %v586 = vunpack.c.l.b16 %v489
    %v587 = vunpack.c.l.b16 %v490
    %v588 = vpack.c.b16 %v541, %v540
    %v589 = vpack.c.b16 %v543, %v542
    %v590 = vpack.c.b16 %v545, %v544
    %v591 = vpack.c.b16 %v547, %v546
    %v592 = vpack.c.b16 %v549, %v548
    %v593 = vpack.c.b16 %v551, %v550
    %v594 = vpack.c.b16 %v553, %v552
    %v595 = vpack.c.b16 %v555, %v554
    %v596 = vpack.c.b16 %v557, %v556
    %v597 = vpack.c.b16 %v559, %v558
    %v598 = vpack.c.b16 %v561, %v560
    %v599 = vpack.c.b16 %v563, %v562
    %v600 = vpack.c.b16 %v565, %v564
    %v601 = vpack.c.b16 %v567, %v566
    %v602 = vpack.c.b16 %v569, %v568
    %v603 = vpack.c.b16 %v571, %v570
    %v604 = vpack.c.b16 %v573, %v572
    %v605 = vpack.c.b16 %v575, %v574
    %v606 = vpack.c.b16 %v577, %v576
    %v607 = vpack.c.b16 %v579, %v578
    %v608 = vpack.c.b16 %v581, %v580
    %v609 = vpack.c.b16 %v583, %v582
    %v610 = vpack.c.b16 %v585, %v584
    %v611 = vpack.c.b16 %v587, %v586
    %636 = vmatpush.bf16.msra.mxu0 %v595
    %637 = vmatpush.bf16.msra.mxu0 %v594
    %638 = vmatpush.bf16.msra.mxu0 %v593
    %639 = vmatpush.bf16.msra.mxu0 %v592
    %640 = vmatpush.bf16.msra.mxu0 %v591
    %641 = vmatpush.bf16.msra.mxu0 %v590
    %642 = vmatpush.bf16.msra.mxu0 %v589
    %643 = vmatpush.bf16.msra.mxu0 %v588
    %644 = vmatmul.bf16.gmra.mxu0 %v411
    %v645 = vpop.f32.mrf.mxu0
    %v646 = vadd.f32 %v491, %v645
    %v647 = vpop.f32.mrf.mxu0
    %v648 = vadd.f32 %v491, %v647
    %649 = vmatmul.bf16.gmra.mxu0 %v412
    %v650 = vpop.f32.mrf.mxu0
    %v651 = vadd.f32 %v491, %v650
    %v652 = vpop.f32.mrf.mxu0
    %v653 = vadd.f32 %v491, %v652
    %654 = vmatmul.bf16.gmra.mxu0 %v413
    %v655 = vpop.f32.mrf.mxu0
    %v656 = vadd.f32 %v491, %v655
    %v657 = vpop.f32.mrf.mxu0
    %v658 = vadd.f32 %v491, %v657
    %659 = vmatmul.bf16.gmra.mxu0 %v414
    %v660 = vpop.f32.mrf.mxu0
    %v661 = vadd.f32 %v491, %v660
    %v662 = vpop.f32.mrf.mxu0
    %v663 = vadd.f32 %v491, %v662
    %664 = vdwg.mxu0
    %665 = vmatpush.bf16.msra.mxu0 %v603
    %666 = vmatpush.bf16.msra.mxu0 %v602
    %667 = vmatpush.bf16.msra.mxu0 %v601
    %668 = vmatpush.bf16.msra.mxu0 %v600
    %669 = vmatpush.bf16.msra.mxu0 %v599
    %670 = vmatpush.bf16.msra.mxu0 %v598
    %671 = vmatpush.bf16.msra.mxu0 %v597
    %672 = vmatpush.bf16.msra.mxu0 %v596
    %673 = vmatmul.bf16.gmra.mxu0 %v435
    %v674 = vpop.f32.mrf.mxu0
    %v675 = vadd.f32 %v646, %v674
    %v676 = vpop.f32.mrf.mxu0
    %v677 = vadd.f32 %v648, %v676
    %678 = vmatmul.bf16.gmra.mxu0 %v436
    %v679 = vpop.f32.mrf.mxu0
    %v680 = vadd.f32 %v651, %v679
    %v681 = vpop.f32.mrf.mxu0
    %v682 = vadd.f32 %v653, %v681
    %683 = vmatmul.bf16.gmra.mxu0 %v437
    %v684 = vpop.f32.mrf.mxu0
    %v685 = vadd.f32 %v656, %v684
    %v686 = vpop.f32.mrf.mxu0
    %v687 = vadd.f32 %v658, %v686
    %688 = vmatmul.bf16.gmra.mxu0 %v438
    %v689 = vpop.f32.mrf.mxu0
    %v690 = vadd.f32 %v661, %v689
    %v691 = vpop.f32.mrf.mxu0
    %v692 = vadd.f32 %v663, %v691
    %693 = vdwg.mxu0
    %694 = vmatpush.bf16.msra.mxu0 %v611
    %695 = vmatpush.bf16.msra.mxu0 %v610
    %696 = vmatpush.bf16.msra.mxu0 %v609
    %697 = vmatpush.bf16.msra.mxu0 %v608
    %698 = vmatpush.bf16.msra.mxu0 %v607
    %699 = vmatpush.bf16.msra.mxu0 %v606
    %700 = vmatpush.bf16.msra.mxu0 %v605
    %701 = vmatpush.bf16.msra.mxu0 %v604
    %702 = vmatmul.bf16.gmra.mxu0 %v132
    %v703 = vpop.f32.mrf.mxu0
    %v704 = vadd.f32 %v675, %v703
    %v705 = vpop.f32.mrf.mxu0
    %v706 = vadd.f32 %v677, %v705
    %707 = vmatmul.bf16.gmra.mxu0 %v133
    %v708 = vpop.f32.mrf.mxu0
    %v709 = vadd.f32 %v680, %v708
    %v710 = vpop.f32.mrf.mxu0
    %v711 = vadd.f32 %v682, %v710
    %712 = vmatmul.bf16.gmra.mxu0 %v134
    %v713 = vpop.f32.mrf.mxu0
    %v714 = vadd.f32 %v685, %v713
    %v715 = vpop.f32.mrf.mxu0
    %v716 = vadd.f32 %v687, %v715
    %717 = vmatmul.bf16.gmra.mxu0 %v135
    %v718 = vpop.f32.mrf.mxu0
    %v719 = vadd.f32 %v690, %v718
    %v720 = vpop.f32.mrf.mxu0
    %v721 = vadd.f32 %v692, %v720
    %722 = vdwg.mxu0
    %v723 = vmax.f32 %v704, 0.0
    %v724 = vmax.f32 %v706, 0.0
    %v725 = vmax.f32 %v709, 0.0
    %v726 = vmax.f32 %v711, 0.0
    %v727 = vmax.f32 %v714, 0.0
    %v728 = vmax.f32 %v716, 0.0
    %v729 = vmax.f32 %v719, 0.0
    %v730 = vmax.f32 %v721, 0.0
    %v731 = vtanh.pop %v336
    %v732 = vtanh.pop %v338
    %v733 = vtanh.pop %v341
    %v734 = vtanh.pop %v343
    %v735 = vtanh.pop %v346
    %v736 = vtanh.pop %v348
    %v737 = vtanh.pop %v351
    %v738 = vtanh.pop %v353
    %v739 = vld [vmem:[#allocation2 + $0xc0] sm:$0xff]
    %v740 = vld [vmem:[#allocation2 + $0xc8] sm:$0xf]
    %v741 = vld [vmem:[#allocation2 + $0xcc] sm:$0xff]
    %v742 = vld [vmem:[#allocation2 + $0xd4] sm:$0xf]
    %v743 = vld [vmem:[#allocation2 + $0xd8] sm:$0xff]
    %v744 = vld [vmem:[#allocation2 + $0xe0] sm:$0xf]
    %v745 = vld [vmem:[#allocation2 + $0xe4] sm:$0xff]
    %v746 = vld [vmem:[#allocation2 + $0xec] sm:$0xf]
    %v747 = vld [vmem:[#allocation2 + $0xf0] sm:$0xff]
    %v748 = vld [vmem:[#allocation2 + $0xf8] sm:$0xf]
    %v749 = vld [vmem:[#allocation2 + $0xfc] sm:$0xff]
    %v750 = vld [vmem:[#allocation2 + $0x104] sm:$0xf]
    %v751 = vld [vmem:[#allocation2 + $0x108] sm:$0xff]
    %v752 = vld [vmem:[#allocation2 + $0x110] sm:$0xf]
    %v753 = vld [vmem:[#allocation2 + $0x114] sm:$0xff]
    %v754 = vld [vmem:[#allocation2 + $0x11c] sm:$0xf]
    %v755 = vld [vmem:[#allocation2 + $0x120] sm:$0xff]
    %v756 = vld [vmem:[#allocation2 + $0x128] sm:$0xf]
    %v757 = vld [vmem:[#allocation2 + $0x12c] sm:$0xff]
    %v758 = vld [vmem:[#allocation2 + $0x134] sm:$0xf]
    %v759 = vld [vmem:[#allocation2 + $0x138] sm:$0xff]
    %v760 = vld [vmem:[#allocation2 + $0x140] sm:$0xf]
    %v761 = vld [vmem:[#allocation2 + $0x144] sm:$0xff]
    %v762 = vld [vmem:[#allocation2 + $0x14c] sm:$0xf]
    %v763 = vld [vmem:[#allocation2 + $0x150] sm:$0xff]
    %v764 = vld [vmem:[#allocation2 + $0x158] sm:$0xf]
    %v765 = vld [vmem:[#allocation2 + $0x15c] sm:$0xff]
    %v766 = vld [vmem:[#allocation2 + $0x164] sm:$0xf]
    %v767 = vld [vmem:[#allocation2 + $0x168] sm:$0xff]
    %v768 = vld [vmem:[#allocation2 + $0x170] sm:$0xf]
    %v769 = vld [vmem:[#allocation2 + $0x174] sm:$0xff]
    %v770 = vld [vmem:[#allocation2 + $0x17c] sm:$0xf]
    %s771 = scalar_lea.vmem %s4, 2
    %v772 = vld [vmem:[%s771] ss:$8 sm:$0x7]
    %v773 = vpack.c.bf16 %v731, %v731
    %v774 = vpack.c.bf16 %v732, %v732
    %v775 = vpack.c.bf16 %v733, %v733
    %v776 = vpack.c.bf16 %v734, %v734
    %v777 = vpack.c.bf16 %v735, %v735
    %v778 = vpack.c.bf16 %v736, %v736
    %v779 = vpack.c.bf16 %v737, %v737
    %v780 = vpack.c.bf16 %v738, %v738
    %v782 = vperm.slane %v772, 0
    %v783 = vperm.slane %v772, 1
    %v784 = vperm.slane %v772, 2
    %v796 = vunpack.c.l.b16 %v773
    %v797 = vunpack.c.l.b16 %v774
    %v798 = vunpack.c.l.b16 %v775
    %v799 = vunpack.c.l.b16 %v776
    %v800 = vunpack.c.l.b16 %v777
    %v801 = vunpack.c.l.b16 %v778
    %v802 = vunpack.c.l.b16 %v779
    %v803 = vunpack.c.l.b16 %v780
    %v804 = vpack.c.b16 %v797, %v796
    %v805 = vpack.c.b16 %v799, %v798
    %v806 = vpack.c.b16 %v801, %v800
    %v807 = vpack.c.b16 %v803, %v802
    %v844 = vunpack.c.l.b16 %v739
    %v845 = vunpack.c.h.b16 %v739
    %v846 = vunpack.c.l.b16 %v740
    %v847 = vunpack.c.l.b16 %v741
    %v848 = vunpack.c.h.b16 %v741
    %v849 = vunpack.c.l.b16 %v742
    %v850 = vunpack.c.l.b16 %v743
    %v851 = vunpack.c.h.b16 %v743
    %v852 = vunpack.c.l.b16 %v744
    %v853 = vunpack.c.l.b16 %v745
    %v854 = vunpack.c.h.b16 %v745
    %v855 = vunpack.c.l.b16 %v746
    %v856 = vunpack.c.l.b16 %v747
    %v857 = vunpack.c.h.b16 %v747
    %v858 = vunpack.c.l.b16 %v748
    %v859 = vunpack.c.l.b16 %v749
    %v860 = vunpack.c.h.b16 %v749
    %v861 = vunpack.c.l.b16 %v750
    %v862 = vunpack.c.l.b16 %v751
    %v863 = vunpack.c.h.b16 %v751
    %v864 = vunpack.c.l.b16 %v752
    %v865 = vunpack.c.l.b16 %v753
    %v866 = vunpack.c.h.b16 %v753
    %v867 = vunpack.c.l.b16 %v754
    %v868 = vunpack.c.l.b16 %v755
    %v869 = vunpack.c.h.b16 %v755
    %v870 = vunpack.c.l.b16 %v756
    %v871 = vunpack.c.l.b16 %v757
    %v872 = vunpack.c.h.b16 %v757
    %v873 = vunpack.c.l.b16 %v758
    %v874 = vunpack.c.l.b16 %v759
    %v875 = vunpack.c.h.b16 %v759
    %v876 = vunpack.c.l.b16 %v760
    %v877 = vunpack.c.l.b16 %v761
    %v878 = vunpack.c.h.b16 %v761
    %v879 = vunpack.c.l.b16 %v762
    %v880 = vunpack.c.l.b16 %v763
    %v881 = vunpack.c.h.b16 %v763
    %v882 = vunpack.c.l.b16 %v764
    %v883 = vunpack.c.l.b16 %v765
    %v884 = vunpack.c.h.b16 %v765
    %v885 = vunpack.c.l.b16 %v766
    %v886 = vunpack.c.l.b16 %v767
    %v887 = vunpack.c.h.b16 %v767
    %v888 = vunpack.c.l.b16 %v768
    %v889 = vunpack.c.l.b16 %v769
    %v890 = vunpack.c.h.b16 %v769
    %v891 = vunpack.c.l.b16 %v770
    %v892 = vpack.c.b16 %v847, %v844
    %v893 = vpack.c.b16 %v848, %v845
    %v894 = vpack.c.b16 %v849, %v846
    %v895 = vpack.c.b16 %v853, %v850
    %v896 = vpack.c.b16 %v854, %v851
    %v897 = vpack.c.b16 %v855, %v852
    %v898 = vpack.c.b16 %v859, %v856
    %v899 = vpack.c.b16 %v860, %v857
    %v900 = vpack.c.b16 %v861, %v858
    %v901 = vpack.c.b16 %v865, %v862
    %v902 = vpack.c.b16 %v866, %v863
    %v903 = vpack.c.b16 %v867, %v864
    %v904 = vpack.c.b16 %v871, %v868
    %v905 = vpack.c.b16 %v872, %v869
    %v906 = vpack.c.b16 %v873, %v870
    %v907 = vpack.c.b16 %v877, %v874
    %v908 = vpack.c.b16 %v878, %v875
    %v909 = vpack.c.b16 %v879, %v876
    %v910 = vpack.c.b16 %v883, %v880
    %v911 = vpack.c.b16 %v884, %v881
    %v912 = vpack.c.b16 %v885, %v882
    %v913 = vpack.c.b16 %v889, %v886
    %v914 = vpack.c.b16 %v890, %v887
    %v915 = vpack.c.b16 %v891, %v888
    %940 = vmatpush.bf16.msra.mxu0 %v913
    %941 = vmatpush.bf16.msra.mxu0 %v910
    %942 = vmatpush.bf16.msra.mxu0 %v907
    %943 = vmatpush.bf16.msra.mxu0 %v904
    %944 = vmatpush.bf16.msra.mxu0 %v901
    %945 = vmatpush.bf16.msra.mxu0 %v898
    %946 = vmatpush.bf16.msra.mxu0 %v895
    %947 = vmatpush.bf16.msra.mxu0 %v892
    %948 = vmatmul.bf16.gmra.mxu0 %v804
    %v949 = vpop.f32.mrf.mxu0
    %v950 = vadd.f32 %v782, %v949
    %v951 = vpop.f32.mrf.mxu0
    %v952 = vadd.f32 %v782, %v951
    %953 = vmatmul.bf16.gmra.mxu0 %v805
    %v954 = vpop.f32.mrf.mxu0
    %v955 = vadd.f32 %v782, %v954
    %v956 = vpop.f32.mrf.mxu0
    %v957 = vadd.f32 %v782, %v956
    %958 = vmatmul.bf16.gmra.mxu0 %v806
    %v959 = vpop.f32.mrf.mxu0
    %v960 = vadd.f32 %v782, %v959
    %v961 = vpop.f32.mrf.mxu0
    %v962 = vadd.f32 %v782, %v961
    %963 = vmatmul.bf16.gmra.mxu0 %v807
    %v964 = vpop.f32.mrf.mxu0
    %v965 = vadd.f32 %v782, %v964
    %v966 = vpop.f32.mrf.mxu0
    %v967 = vadd.f32 %v782, %v966
    %968 = vdwg.mxu0
    %969 = vmatpush.bf16.msra.mxu0 %v914
    %970 = vmatpush.bf16.msra.mxu0 %v911
    %971 = vmatpush.bf16.msra.mxu0 %v908
    %972 = vmatpush.bf16.msra.mxu0 %v905
    %973 = vmatpush.bf16.msra.mxu0 %v902
    %974 = vmatpush.bf16.msra.mxu0 %v899
    %975 = vmatpush.bf16.msra.mxu0 %v896
    %976 = vmatpush.bf16.msra.mxu0 %v893
    %977 = vmatmul.bf16.gmra.mxu0 %v804
    %v978 = vpop.f32.mrf.mxu0
    %v979 = vadd.f32 %v783, %v978
    %v980 = vpop.f32.mrf.mxu0
    %v981 = vadd.f32 %v783, %v980
    %982 = vmatmul.bf16.gmra.mxu0 %v805
    %v983 = vpop.f32.mrf.mxu0
    %v984 = vadd.f32 %v783, %v983
    %v985 = vpop.f32.mrf.mxu0
    %v986 = vadd.f32 %v783, %v985
    %987 = vmatmul.bf16.gmra.mxu0 %v806
    %v988 = vpop.f32.mrf.mxu0
    %v989 = vadd.f32 %v783, %v988
    %v990 = vpop.f32.mrf.mxu0
    %v991 = vadd.f32 %v783, %v990
    %992 = vmatmul.bf16.gmra.mxu0 %v807
    %v993 = vpop.f32.mrf.mxu0
    %v994 = vadd.f32 %v783, %v993
    %v995 = vpop.f32.mrf.mxu0
    %v996 = vadd.f32 %v783, %v995
    %997 = vdwg.mxu0
    %998 = vmatpush.bf16.msra.mxu0 %v915
    %999 = vmatpush.bf16.msra.mxu0 %v912
    %1000 = vmatpush.bf16.msra.mxu0 %v909
    %1001 = vmatpush.bf16.msra.mxu0 %v906
    %1002 = vmatpush.bf16.msra.mxu0 %v903
    %1003 = vmatpush.bf16.msra.mxu0 %v900
    %1004 = vmatpush.bf16.msra.mxu0 %v897
    %1005 = vmatpush.bf16.msra.mxu0 %v894
    %1006 = vmatmul.bf16.gmra.mxu0 %v804
    %v1007 = vpop.f32.mrf.mxu0
    %v1008 = vadd.f32 %v784, %v1007
    %v1009 = vpop.f32.mrf.mxu0
    %v1010 = vadd.f32 %v784, %v1009
    %1011 = vmatmul.bf16.gmra.mxu0 %v805
    %v1012 = vpop.f32.mrf.mxu0
    %v1013 = vadd.f32 %v784, %v1012
    %v1014 = vpop.f32.mrf.mxu0
    %v1015 = vadd.f32 %v784, %v1014
    %1016 = vmatmul.bf16.gmra.mxu0 %v806
    %v1017 = vpop.f32.mrf.mxu0
    %v1018 = vadd.f32 %v784, %v1017
    %v1019 = vpop.f32.mrf.mxu0
    %v1020 = vadd.f32 %v784, %v1019
    %1021 = vmatmul.bf16.gmra.mxu0 %v807
    %v1022 = vpop.f32.mrf.mxu0
    %v1023 = vadd.f32 %v784, %v1022
    %v1024 = vpop.f32.mrf.mxu0
    %v1025 = vadd.f32 %v784, %v1024
    %1026 = vdwg.mxu0
    %v1027 = vmul.f32 %v723, %v950
    %v1028 = vmul.f32 %v724, %v952
    %v1029 = vmul.f32 %v725, %v955
    %v1030 = vmul.f32 %v726, %v957
    %v1031 = vmul.f32 %v727, %v960
    %v1032 = vmul.f32 %v728, %v962
    %v1033 = vmul.f32 %v729, %v965
    %v1034 = vmul.f32 %v730, %v967
    %v1035 = vmax.f32 %v1027, 0.0
    %v1036 = vmax.f32 %v1028, 0.0
    %v1037 = vmax.f32 %v1029, 0.0
    %v1038 = vmax.f32 %v1030, 0.0
    %v1039 = vmax.f32 %v1031, 0.0
    %v1040 = vmax.f32 %v1032, 0.0
    %v1041 = vmax.f32 %v1033, 0.0
    %v1042 = vmax.f32 %v1034, 0.0
    %v1043 = vmul.f32 %v52, %v979
    %v1044 = vmul.f32 %v53, %v981
    %v1045 = vmul.f32 %v54, %v984
    %v1046 = vmul.f32 %v55, %v986
    %v1047 = vmul.f32 %v56, %v989
    %v1048 = vmul.f32 %v57, %v991
    %v1049 = vmul.f32 %v58, %v994
    %v1050 = vmul.f32 %v59, %v996
    %v1051 = vpack.c.bf16 %v1035, %v1035
    %v1052 = vpack.c.bf16 %v1036, %v1036
    %v1053 = vpack.c.bf16 %v1037, %v1037
    %v1054 = vpack.c.bf16 %v1038, %v1038
    %v1055 = vpack.c.bf16 %v1039, %v1039
    %v1056 = vpack.c.bf16 %v1040, %v1040
    %v1057 = vpack.c.bf16 %v1041, %v1041
    %v1058 = vpack.c.bf16 %v1042, %v1042
    %v1059 = vpack.c.bf16 %v1043, %v1043
    %v1060 = vpack.c.bf16 %v1044, %v1044
    %v1061 = vpack.c.bf16 %v1045, %v1045
    %v1062 = vpack.c.bf16 %v1046, %v1046
    %v1063 = vpack.c.bf16 %v1047, %v1047
    %v1064 = vpack.c.bf16 %v1048, %v1048
    %v1065 = vpack.c.bf16 %v1049, %v1049
    %v1066 = vpack.c.bf16 %v1050, %v1050
    %v1075 = vunpack.c.l.b16 %v1051
    %v1076 = vunpack.c.l.b16 %v1052
    %v1077 = vunpack.c.l.b16 %v1053
    %v1078 = vunpack.c.l.b16 %v1054
    %v1079 = vunpack.c.l.b16 %v1055
    %v1080 = vunpack.c.l.b16 %v1056
    %v1081 = vunpack.c.l.b16 %v1057
    %v1082 = vunpack.c.l.b16 %v1058
    %v1083 = vpack.c.b16 %v1076, %v1075
    %v1084 = vpack.c.b16 %v1078, %v1077
    %v1085 = vpack.c.b16 %v1080, %v1079
    %v1086 = vpack.c.b16 %v1082, %v1081
    %v1099 = vunpack.c.l.b16 %v1059
    %v1100 = vunpack.c.l.b16 %v1060
    %v1101 = vunpack.c.l.b16 %v1061
    %v1102 = vunpack.c.l.b16 %v1062
    %v1103 = vunpack.c.l.b16 %v1063
    %v1104 = vunpack.c.l.b16 %v1064
    %v1105 = vunpack.c.l.b16 %v1065
    %v1106 = vunpack.c.l.b16 %v1066
    %v1107 = vpack.c.b16 %v1100, %v1099
    %v1108 = vpack.c.b16 %v1102, %v1101
    %v1109 = vpack.c.b16 %v1104, %v1103
    %v1110 = vpack.c.b16 %v1106, %v1105
    %v1115 = vld [vmem:[#allocation4 + $0xc0] sm:$0xf]
    %v1116 = vld [vmem:[#allocation4 + $0xc4] sm:$0xf]
    %v1117 = vld [vmem:[#allocation4 + $0xc8] sm:$0xf]
    %v1118 = vld [vmem:[#allocation4 + $0xcc] sm:$0xf]
    %v1119 = vld [vmem:[#allocation4 + $0xd0] sm:$0xf]
    %v1120 = vld [vmem:[#allocation4 + $0xd4] sm:$0xf]
    %v1121 = vld [vmem:[#allocation4 + $0xd8] sm:$0xf]
    %v1122 = vld [vmem:[#allocation4 + $0xdc] sm:$0xf]
    %v1123 = vld [vmem:[#allocation4 + $0xe0] sm:$0xf]
    %v1124 = vld [vmem:[#allocation4 + $0xe4] sm:$0xf]
    %v1125 = vld [vmem:[#allocation4 + $0xe8] sm:$0xf]
    %v1126 = vld [vmem:[#allocation4 + $0xec] sm:$0xf]
    %v1127 = vld [vmem:[#allocation4 + $0xf0] sm:$0xf]
    %v1128 = vld [vmem:[#allocation4 + $0xf4] sm:$0xf]
    %v1129 = vld [vmem:[#allocation4 + $0xf8] sm:$0xf]
    %v1130 = vld [vmem:[#allocation4 + $0xfc] sm:$0xf]
    %v1131 = vld [vmem:[#allocation4 + $0x100] sm:$0xf]
    %v1132 = vld [vmem:[#allocation4 + $0x104] sm:$0xf]
    %v1133 = vld [vmem:[#allocation4 + $0x108] sm:$0xf]
    %v1134 = vld [vmem:[#allocation4 + $0x10c] sm:$0xf]
    %v1135 = vld [vmem:[#allocation4 + $0x110] sm:$0xf]
    %v1136 = vld [vmem:[#allocation4 + $0x114] sm:$0xf]
    %v1137 = vld [vmem:[#allocation4 + $0x118] sm:$0xf]
    %v1138 = vld [vmem:[#allocation4 + $0x11c] sm:$0xf]
    %v1139 = vld [vmem:[#allocation4 + $0x120] sm:$0xf]
    %v1140 = vld [vmem:[#allocation4 + $0x124] sm:$0xf]
    %v1141 = vld [vmem:[#allocation4 + $0x128] sm:$0xf]
    %v1142 = vld [vmem:[#allocation4 + $0x12c] sm:$0xf]
    %v1143 = vld [vmem:[#allocation4 + $0x130] sm:$0xf]
    %v1144 = vld [vmem:[#allocation4 + $0x134] sm:$0xf]
    %v1145 = vld [vmem:[#allocation4 + $0x138] sm:$0xf]
    %v1146 = vld [vmem:[#allocation4 + $0x13c] sm:$0xf]
    %v1147 = vld [vmem:[#allocation4 + $0x140] sm:$0xf]
    %v1148 = vld [vmem:[#allocation4 + $0x144] sm:$0xf]
    %v1149 = vld [vmem:[#allocation4 + $0x148] sm:$0xf]
    %v1150 = vld [vmem:[#allocation4 + $0x14c] sm:$0xf]
    %v1151 = vld [vmem:[#allocation4 + $0x150] sm:$0xf]
    %v1152 = vld [vmem:[#allocation4 + $0x154] sm:$0xf]
    %v1153 = vld [vmem:[#allocation4 + $0x158] sm:$0xf]
    %v1154 = vld [vmem:[#allocation4 + $0x15c] sm:$0xf]
    %v1155 = vld [vmem:[#allocation4 + $0x160] sm:$0xf]
    %v1156 = vld [vmem:[#allocation4 + $0x164] sm:$0xf]
    %v1157 = vld [vmem:[#allocation4 + $0x168] sm:$0xf]
    %v1158 = vld [vmem:[#allocation4 + $0x16c] sm:$0xf]
    %v1159 = vld [vmem:[#allocation4 + $0x170] sm:$0xf]
    %v1160 = vld [vmem:[#allocation4 + $0x174] sm:$0xf]
    %v1161 = vld [vmem:[#allocation4 + $0x178] sm:$0xf]
    %v1162 = vld [vmem:[#allocation4 + $0x17c] sm:$0xf]
    %v1163 = vld [vmem:[%s4 + $0x3] ss:$0 sm:$0xff]
    %v1212 = vunpack.c.l.b16 %v1115
    %v1213 = vunpack.c.l.b16 %v1116
    %v1214 = vunpack.c.l.b16 %v1117
    %v1215 = vunpack.c.l.b16 %v1118
    %v1216 = vunpack.c.l.b16 %v1119
    %v1217 = vunpack.c.l.b16 %v1120
    %v1218 = vunpack.c.l.b16 %v1121
    %v1219 = vunpack.c.l.b16 %v1122
    %v1220 = vunpack.c.l.b16 %v1123
    %v1221 = vunpack.c.l.b16 %v1124
    %v1222 = vunpack.c.l.b16 %v1125
    %v1223 = vunpack.c.l.b16 %v1126
    %v1224 = vunpack.c.l.b16 %v1127
    %v1225 = vunpack.c.l.b16 %v1128
    %v1226 = vunpack.c.l.b16 %v1129
    %v1227 = vunpack.c.l.b16 %v1130
    %v1228 = vunpack.c.l.b16 %v1131
    %v1229 = vunpack.c.l.b16 %v1132
    %v1230 = vunpack.c.l.b16 %v1133
    %v1231 = vunpack.c.l.b16 %v1134
    %v1232 = vunpack.c.l.b16 %v1135
    %v1233 = vunpack.c.l.b16 %v1136
    %v1234 = vunpack.c.l.b16 %v1137
    %v1235 = vunpack.c.l.b16 %v1138
    %v1236 = vunpack.c.l.b16 %v1139
    %v1237 = vunpack.c.l.b16 %v1140
    %v1238 = vunpack.c.l.b16 %v1141
    %v1239 = vunpack.c.l.b16 %v1142
    %v1240 = vunpack.c.l.b16 %v1143
    %v1241 = vunpack.c.l.b16 %v1144
    %v1242 = vunpack.c.l.b16 %v1145
    %v1243 = vunpack.c.l.b16 %v1146
    %v1244 = vunpack.c.l.b16 %v1147
    %v1245 = vunpack.c.l.b16 %v1148
    %v1246 = vunpack.c.l.b16 %v1149
    %v1247 = vunpack.c.l.b16 %v1150
    %v1248 = vunpack.c.l.b16 %v1151
    %v1249 = vunpack.c.l.b16 %v1152
    %v1250 = vunpack.c.l.b16 %v1153
    %v1251 = vunpack.c.l.b16 %v1154
    %v1252 = vunpack.c.l.b16 %v1155
    %v1253 = vunpack.c.l.b16 %v1156
    %v1254 = vunpack.c.l.b16 %v1157
    %v1255 = vunpack.c.l.b16 %v1158
    %v1256 = vunpack.c.l.b16 %v1159
    %v1257 = vunpack.c.l.b16 %v1160
    %v1258 = vunpack.c.l.b16 %v1161
    %v1259 = vunpack.c.l.b16 %v1162
    %v1260 = vpack.c.b16 %v1213, %v1212
    %v1261 = vpack.c.b16 %v1215, %v1214
    %v1262 = vpack.c.b16 %v1217, %v1216
    %v1263 = vpack.c.b16 %v1219, %v1218
    %v1264 = vpack.c.b16 %v1221, %v1220
    %v1265 = vpack.c.b16 %v1223, %v1222
    %v1266 = vpack.c.b16 %v1225, %v1224
    %v1267 = vpack.c.b16 %v1227, %v1226
    %v1268 = vpack.c.b16 %v1229, %v1228
    %v1269 = vpack.c.b16 %v1231, %v1230
    %v1270 = vpack.c.b16 %v1233, %v1232
    %v1271 = vpack.c.b16 %v1235, %v1234
    %v1272 = vpack.c.b16 %v1237, %v1236
    %v1273 = vpack.c.b16 %v1239, %v1238
    %v1274 = vpack.c.b16 %v1241, %v1240
    %v1275 = vpack.c.b16 %v1243, %v1242
    %v1276 = vpack.c.b16 %v1245, %v1244
    %v1277 = vpack.c.b16 %v1247, %v1246
    %v1278 = vpack.c.b16 %v1249, %v1248
    %v1279 = vpack.c.b16 %v1251, %v1250
    %v1280 = vpack.c.b16 %v1253, %v1252
    %v1281 = vpack.c.b16 %v1255, %v1254
    %v1282 = vpack.c.b16 %v1257, %v1256
    %v1283 = vpack.c.b16 %v1259, %v1258
    %1308 = vmatpush.bf16.msra.mxu0 %v1267
    %1309 = vmatpush.bf16.msra.mxu0 %v1266
    %1310 = vmatpush.bf16.msra.mxu0 %v1265
    %1311 = vmatpush.bf16.msra.mxu0 %v1264
    %1312 = vmatpush.bf16.msra.mxu0 %v1263
    %1313 = vmatpush.bf16.msra.mxu0 %v1262
    %1314 = vmatpush.bf16.msra.mxu0 %v1261
    %1315 = vmatpush.bf16.msra.mxu0 %v1260
    %1316 = vmatmul.bf16.gmra.mxu0 %v1083
    %v1317 = vpop.f32.mrf.mxu0
    %v1318 = vadd.f32 %v1163, %v1317
    %v1319 = vpop.f32.mrf.mxu0
    %v1320 = vadd.f32 %v1163, %v1319
    %1321 = vmatmul.bf16.gmra.mxu0 %v1084
    %v1322 = vpop.f32.mrf.mxu0
    %v1323 = vadd.f32 %v1163, %v1322
    %v1324 = vpop.f32.mrf.mxu0
    %v1325 = vadd.f32 %v1163, %v1324
    %1326 = vmatmul.bf16.gmra.mxu0 %v1085
    %v1327 = vpop.f32.mrf.mxu0
    %v1328 = vadd.f32 %v1163, %v1327
    %v1329 = vpop.f32.mrf.mxu0
    %v1330 = vadd.f32 %v1163, %v1329
    %1331 = vmatmul.bf16.gmra.mxu0 %v1086
    %v1332 = vpop.f32.mrf.mxu0
    %v1333 = vadd.f32 %v1163, %v1332
    %v1334 = vpop.f32.mrf.mxu0
    %v1335 = vadd.f32 %v1163, %v1334
    %1336 = vdwg.mxu0
    %1337 = vmatpush.bf16.msra.mxu0 %v1275
    %1338 = vmatpush.bf16.msra.mxu0 %v1274
    %1339 = vmatpush.bf16.msra.mxu0 %v1273
    %1340 = vmatpush.bf16.msra.mxu0 %v1272
    %1341 = vmatpush.bf16.msra.mxu0 %v1271
    %1342 = vmatpush.bf16.msra.mxu0 %v1270
    %1343 = vmatpush.bf16.msra.mxu0 %v1269
    %1344 = vmatpush.bf16.msra.mxu0 %v1268
    %1345 = vmatmul.bf16.gmra.mxu0 %v1107
    %v1346 = vpop.f32.mrf.mxu0
    %v1347 = vadd.f32 %v1318, %v1346
    %v1348 = vpop.f32.mrf.mxu0
    %v1349 = vadd.f32 %v1320, %v1348
    %1350 = vmatmul.bf16.gmra.mxu0 %v1108
    %v1351 = vpop.f32.mrf.mxu0
    %v1352 = vadd.f32 %v1323, %v1351
    %v1353 = vpop.f32.mrf.mxu0
    %v1354 = vadd.f32 %v1325, %v1353
    %1355 = vmatmul.bf16.gmra.mxu0 %v1109
    %v1356 = vpop.f32.mrf.mxu0
    %v1357 = vadd.f32 %v1328, %v1356
    %v1358 = vpop.f32.mrf.mxu0
    %v1359 = vadd.f32 %v1330, %v1358
    %1360 = vmatmul.bf16.gmra.mxu0 %v1110
    %v1361 = vpop.f32.mrf.mxu0
    %v1362 = vadd.f32 %v1333, %v1361
    %v1363 = vpop.f32.mrf.mxu0
    %v1364 = vadd.f32 %v1335, %v1363
    %1365 = vdwg.mxu0
    %1366 = vmatpush.bf16.msra.mxu0 %v1283
    %1367 = vmatpush.bf16.msra.mxu0 %v1282
    %1368 = vmatpush.bf16.msra.mxu0 %v1281
    %1369 = vmatpush.bf16.msra.mxu0 %v1280
    %1370 = vmatpush.bf16.msra.mxu0 %v1279
    %1371 = vmatpush.bf16.msra.mxu0 %v1278
    %1372 = vmatpush.bf16.msra.mxu0 %v1277
    %1373 = vmatpush.bf16.msra.mxu0 %v1276
    %1374 = vmatmul.bf16.gmra.mxu0 %v804
    %v1375 = vpop.f32.mrf.mxu0
    %v1376 = vadd.f32 %v1347, %v1375
    %v1377 = vpop.f32.mrf.mxu0
    %v1378 = vadd.f32 %v1349, %v1377
    %1379 = vmatmul.bf16.gmra.mxu0 %v805
    %v1380 = vpop.f32.mrf.mxu0
    %v1381 = vadd.f32 %v1352, %v1380
    %v1382 = vpop.f32.mrf.mxu0
    %v1383 = vadd.f32 %v1354, %v1382
    %1384 = vmatmul.bf16.gmra.mxu0 %v806
    %v1385 = vpop.f32.mrf.mxu0
    %v1386 = vadd.f32 %v1357, %v1385
    %v1387 = vpop.f32.mrf.mxu0
    %v1388 = vadd.f32 %v1359, %v1387
    %1389 = vmatmul.bf16.gmra.mxu0 %v807
    %v1390 = vpop.f32.mrf.mxu0
    %v1391 = vadd.f32 %v1362, %v1390
    %v1392 = vpop.f32.mrf.mxu0
    %v1393 = vadd.f32 %v1364, %v1392
    %1394 = vdwg.mxu0
    %v1395 = vmax.f32 %v1376, 0.0
    %v1396 = vmax.f32 %v1378, 0.0
    %v1397 = vmax.f32 %v1381, 0.0
    %v1398 = vmax.f32 %v1383, 0.0
    %v1399 = vmax.f32 %v1386, 0.0
    %v1400 = vmax.f32 %v1388, 0.0
    %v1401 = vmax.f32 %v1391, 0.0
    %v1402 = vmax.f32 %v1393, 0.0
    %v1403 = vtanh.pop %v1008
    %v1404 = vtanh.pop %v1010
    %v1405 = vtanh.pop %v1013
    %v1406 = vtanh.pop %v1015
    %v1407 = vtanh.pop %v1018
    %v1408 = vtanh.pop %v1020
    %v1409 = vtanh.pop %v1023
    %v1410 = vtanh.pop %v1025
    %v1411 = vld [vmem:[#allocation2 + $0x180] sm:$0xff]
    %v1412 = vld [vmem:[#allocation2 + $0x18c] sm:$0xff]
    %v1413 = vld [vmem:[#allocation2 + $0x198] sm:$0xff]
    %v1414 = vld [vmem:[#allocation2 + $0x1a4] sm:$0xff]
    %v1415 = vld [vmem:[#allocation2 + $0x1b0] sm:$0xff]
    %v1416 = vld [vmem:[#allocation2 + $0x1bc] sm:$0xff]
    %v1417 = vld [vmem:[#allocation2 + $0x1c8] sm:$0xff]
    %v1418 = vld [vmem:[#allocation2 + $0x1d4] sm:$0xff]
    %v1419 = vld [vmem:[#allocation2 + $0x1e0] sm:$0xff]
    %v1420 = vld [vmem:[#allocation2 + $0x1ec] sm:$0xff]
    %v1421 = vld [vmem:[#allocation2 + $0x1f8] sm:$0xff]
    %v1422 = vld [vmem:[#allocation2 + $0x204] sm:$0xff]
    %v1423 = vld [vmem:[#allocation2 + $0x210] sm:$0xff]
    %v1424 = vld [vmem:[#allocation2 + $0x21c] sm:$0xff]
    %v1425 = vld [vmem:[#allocation2 + $0x228] sm:$0xff]
    %v1426 = vld [vmem:[#allocation2 + $0x234] sm:$0xff]
    %s1427 = scalar_lea.vmem %s4, 4
    %v1428 = vld [vmem:[%s1427] ss:$8 sm:$0x3]
    %v1429 = vpack.c.bf16 %v1403, %v1403
    %v1430 = vpack.c.bf16 %v1404, %v1404
    %v1431 = vpack.c.bf16 %v1405, %v1405
    %v1432 = vpack.c.bf16 %v1406, %v1406
    %v1433 = vpack.c.bf16 %v1407, %v1407
    %v1434 = vpack.c.bf16 %v1408, %v1408
    %v1435 = vpack.c.bf16 %v1409, %v1409
    %v1436 = vpack.c.bf16 %v1410, %v1410
    %v1438 = vperm.slane %v1428, 0
    %v1439 = vperm.slane %v1428, 1
    %v1450 = vunpack.c.l.b16 %v1429
    %v1451 = vunpack.c.l.b16 %v1430
    %v1452 = vunpack.c.l.b16 %v1431
    %v1453 = vunpack.c.l.b16 %v1432
    %v1454 = vunpack.c.l.b16 %v1433
    %v1455 = vunpack.c.l.b16 %v1434
    %v1456 = vunpack.c.l.b16 %v1435
    %v1457 = vunpack.c.l.b16 %v1436
    %v1458 = vpack.c.b16 %v1451, %v1450
    %v1459 = vpack.c.b16 %v1453, %v1452
    %v1460 = vpack.c.b16 %v1455, %v1454
    %v1461 = vpack.c.b16 %v1457, %v1456
    %v1482 = vunpack.c.l.b16 %v1411
    %v1483 = vunpack.c.h.b16 %v1411
    %v1484 = vunpack.c.l.b16 %v1412
    %v1485 = vunpack.c.h.b16 %v1412
    %v1486 = vunpack.c.l.b16 %v1413
    %v1487 = vunpack.c.h.b16 %v1413
    %v1488 = vunpack.c.l.b16 %v1414
    %v1489 = vunpack.c.h.b16 %v1414
    %v1490 = vunpack.c.l.b16 %v1415
    %v1491 = vunpack.c.h.b16 %v1415
    %v1492 = vunpack.c.l.b16 %v1416
    %v1493 = vunpack.c.h.b16 %v1416
    %v1494 = vunpack.c.l.b16 %v1417
    %v1495 = vunpack.c.h.b16 %v1417
    %v1496 = vunpack.c.l.b16 %v1418
    %v1497 = vunpack.c.h.b16 %v1418
    %v1498 = vunpack.c.l.b16 %v1419
    %v1499 = vunpack.c.h.b16 %v1419
    %v1500 = vunpack.c.l.b16 %v1420
    %v1501 = vunpack.c.h.b16 %v1420
    %v1502 = vunpack.c.l.b16 %v1421
    %v1503 = vunpack.c.h.b16 %v1421
    %v1504 = vunpack.c.l.b16 %v1422
    %v1505 = vunpack.c.h.b16 %v1422
    %v1506 = vunpack.c.l.b16 %v1423
    %v1507 = vunpack.c.h.b16 %v1423
    %v1508 = vunpack.c.l.b16 %v1424
    %v1509 = vunpack.c.h.b16 %v1424
    %v1510 = vunpack.c.l.b16 %v1425
    %v1511 = vunpack.c.h.b16 %v1425
    %v1512 = vunpack.c.l.b16 %v1426
    %v1513 = vunpack.c.h.b16 %v1426
    %v1514 = vpack.c.b16 %v1484, %v1482
    %v1515 = vpack.c.b16 %v1485, %v1483
    %v1516 = vpack.c.b16 %v1488, %v1486
    %v1517 = vpack.c.b16 %v1489, %v1487
    %v1518 = vpack.c.b16 %v1492, %v1490
    %v1519 = vpack.c.b16 %v1493, %v1491
    %v1520 = vpack.c.b16 %v1496, %v1494
    %v1521 = vpack.c.b16 %v1497, %v1495
    %v1522 = vpack.c.b16 %v1500, %v1498
    %v1523 = vpack.c.b16 %v1501, %v1499
    %v1524 = vpack.c.b16 %v1504, %v1502
    %v1525 = vpack.c.b16 %v1505, %v1503
    %v1526 = vpack.c.b16 %v1508, %v1506
    %v1527 = vpack.c.b16 %v1509, %v1507
    %v1528 = vpack.c.b16 %v1512, %v1510
    %v1529 = vpack.c.b16 %v1513, %v1511
    %1546 = vmatpush.bf16.msra.mxu0 %v1528
    %1547 = vmatpush.bf16.msra.mxu0 %v1526
    %1548 = vmatpush.bf16.msra.mxu0 %v1524
    %1549 = vmatpush.bf16.msra.mxu0 %v1522
    %1550 = vmatpush.bf16.msra.mxu0 %v1520
    %1551 = vmatpush.bf16.msra.mxu0 %v1518
    %1552 = vmatpush.bf16.msra.mxu0 %v1516
    %1553 = vmatpush.bf16.msra.mxu0 %v1514
    %1554 = vmatmul.bf16.gmra.mxu0 %v1458
    %v1555 = vpop.f32.mrf.mxu0
    %v1556 = vadd.f32 %v1438, %v1555
    %v1557 = vpop.f32.mrf.mxu0
    %v1558 = vadd.f32 %v1438, %v1557
    %1559 = vmatmul.bf16.gmra.mxu0 %v1459
    %v1560 = vpop.f32.mrf.mxu0
    %v1561 = vadd.f32 %v1438, %v1560
    %v1562 = vpop.f32.mrf.mxu0
    %v1563 = vadd.f32 %v1438, %v1562
    %1564 = vmatmul.bf16.gmra.mxu0 %v1460
    %v1565 = vpop.f32.mrf.mxu0
    %v1566 = vadd.f32 %v1438, %v1565
    %v1567 = vpop.f32.mrf.mxu0
    %v1568 = vadd.f32 %v1438, %v1567
    %1569 = vmatmul.bf16.gmra.mxu0 %v1461
    %v1570 = vpop.f32.mrf.mxu0
    %v1571 = vadd.f32 %v1438, %v1570
    %v1572 = vpop.f32.mrf.mxu0
    %v1573 = vadd.f32 %v1438, %v1572
    %1574 = vdwg.mxu0
    %1575 = vmatpush.bf16.msra.mxu0 %v1529
    %1576 = vmatpush.bf16.msra.mxu0 %v1527
    %1577 = vmatpush.bf16.msra.mxu0 %v1525
    %1578 = vmatpush.bf16.msra.mxu0 %v1523
    %1579 = vmatpush.bf16.msra.mxu0 %v1521
    %1580 = vmatpush.bf16.msra.mxu0 %v1519
    %1581 = vmatpush.bf16.msra.mxu0 %v1517
    %1582 = vmatpush.bf16.msra.mxu0 %v1515
    %1583 = vmatmul.bf16.gmra.mxu0 %v1458
    %v1584 = vpop.f32.mrf.mxu0
    %v1585 = vadd.f32 %v1439, %v1584
    %v1586 = vpop.f32.mrf.mxu0
    %v1587 = vadd.f32 %v1439, %v1586
    %1588 = vmatmul.bf16.gmra.mxu0 %v1459
    %v1589 = vpop.f32.mrf.mxu0
    %v1590 = vadd.f32 %v1439, %v1589
    %v1591 = vpop.f32.mrf.mxu0
    %v1592 = vadd.f32 %v1439, %v1591
    %1593 = vmatmul.bf16.gmra.mxu0 %v1460
    %v1594 = vpop.f32.mrf.mxu0
    %v1595 = vadd.f32 %v1439, %v1594
    %v1596 = vpop.f32.mrf.mxu0
    %v1597 = vadd.f32 %v1439, %v1596
    %1598 = vmatmul.bf16.gmra.mxu0 %v1461
    %v1599 = vpop.f32.mrf.mxu0
    %v1600 = vadd.f32 %v1439, %v1599
    %v1601 = vpop.f32.mrf.mxu0
    %v1602 = vadd.f32 %v1439, %v1601
    %1603 = vdwg.mxu0
    %v1604 = vmul.f32 %v1395, %v1556
    %v1605 = vmul.f32 %v1396, %v1558
    %v1606 = vmul.f32 %v1397, %v1561
    %v1607 = vmul.f32 %v1398, %v1563
    %v1608 = vmul.f32 %v1399, %v1566
    %v1609 = vmul.f32 %v1400, %v1568
    %v1610 = vmul.f32 %v1401, %v1571
    %v1611 = vmul.f32 %v1402, %v1573
    %v1612 = vmax.f32 %v1604, 0.0
    %v1613 = vmax.f32 %v1605, 0.0
    %v1614 = vmax.f32 %v1606, 0.0
    %v1615 = vmax.f32 %v1607, 0.0
    %v1616 = vmax.f32 %v1608, 0.0
    %v1617 = vmax.f32 %v1609, 0.0
    %v1618 = vmax.f32 %v1610, 0.0
    %v1619 = vmax.f32 %v1611, 0.0
    %v1620 = vmul.f32 %v52, %v1585
    %v1621 = vmul.f32 %v53, %v1587
    %v1622 = vmul.f32 %v54, %v1590
    %v1623 = vmul.f32 %v55, %v1592
    %v1624 = vmul.f32 %v56, %v1595
    %v1625 = vmul.f32 %v57, %v1597
    %v1626 = vmul.f32 %v58, %v1600
    %v1627 = vmul.f32 %v59, %v1602
    %v1628 = vpack.c.bf16 %v1612, %v1612
    %v1629 = vpack.c.bf16 %v1613, %v1613
    %v1630 = vpack.c.bf16 %v1614, %v1614
    %v1631 = vpack.c.bf16 %v1615, %v1615
    %v1632 = vpack.c.bf16 %v1616, %v1616
    %v1633 = vpack.c.bf16 %v1617, %v1617
    %v1634 = vpack.c.bf16 %v1618, %v1618
    %v1635 = vpack.c.bf16 %v1619, %v1619
    %v1636 = vpack.c.bf16 %v1620, %v1620
    %v1637 = vpack.c.bf16 %v1621, %v1621
    %v1638 = vpack.c.bf16 %v1622, %v1622
    %v1639 = vpack.c.bf16 %v1623, %v1623
    %v1640 = vpack.c.bf16 %v1624, %v1624
    %v1641 = vpack.c.bf16 %v1625, %v1625
    %v1642 = vpack.c.bf16 %v1626, %v1626
    %v1643 = vpack.c.bf16 %v1627, %v1627
    %v1652 = vunpack.c.l.b16 %v1628
    %v1653 = vunpack.c.l.b16 %v1629
    %v1654 = vunpack.c.l.b16 %v1630
    %v1655 = vunpack.c.l.b16 %v1631
    %v1656 = vunpack.c.l.b16 %v1632
    %v1657 = vunpack.c.l.b16 %v1633
    %v1658 = vunpack.c.l.b16 %v1634
    %v1659 = vunpack.c.l.b16 %v1635
    %v1660 = vpack.c.b16 %v1653, %v1652
    %v1661 = vpack.c.b16 %v1655, %v1654
    %v1662 = vpack.c.b16 %v1657, %v1656
    %v1663 = vpack.c.b16 %v1659, %v1658
    %v1676 = vunpack.c.l.b16 %v1636
    %v1677 = vunpack.c.l.b16 %v1637
    %v1678 = vunpack.c.l.b16 %v1638
    %v1679 = vunpack.c.l.b16 %v1639
    %v1680 = vunpack.c.l.b16 %v1640
    %v1681 = vunpack.c.l.b16 %v1641
    %v1682 = vunpack.c.l.b16 %v1642
    %v1683 = vunpack.c.l.b16 %v1643
    %v1684 = vpack.c.b16 %v1677, %v1676
    %v1685 = vpack.c.b16 %v1679, %v1678
    %v1686 = vpack.c.b16 %v1681, %v1680
    %v1687 = vpack.c.b16 %v1683, %v1682
    %v1692 = vld [vmem:[#allocation4 + $0x180] sm:$0xf]
    %v1693 = vld [vmem:[#allocation4 + $0x184] sm:$0xf]
    %v1694 = vld [vmem:[#allocation4 + $0x188] sm:$0xf]
    %v1695 = vld [vmem:[#allocation4 + $0x18c] sm:$0xf]
    %v1696 = vld [vmem:[#allocation4 + $0x190] sm:$0xf]
    %v1697 = vld [vmem:[#allocation4 + $0x194] sm:$0xf]
    %v1698 = vld [vmem:[#allocation4 + $0x198] sm:$0xf]
    %v1699 = vld [vmem:[#allocation4 + $0x19c] sm:$0xf]
    %v1700 = vld [vmem:[#allocation4 + $0x1a0] sm:$0xf]
    %v1701 = vld [vmem:[#allocation4 + $0x1a4] sm:$0xf]
    %v1702 = vld [vmem:[#allocation4 + $0x1a8] sm:$0xf]
    %v1703 = vld [vmem:[#allocation4 + $0x1ac] sm:$0xf]
    %v1704 = vld [vmem:[#allocation4 + $0x1b0] sm:$0xf]
    %v1705 = vld [vmem:[#allocation4 + $0x1b4] sm:$0xf]
    %v1706 = vld [vmem:[#allocation4 + $0x1b8] sm:$0xf]
    %v1707 = vld [vmem:[#allocation4 + $0x1bc] sm:$0xf]
    %v1708 = vld [vmem:[#allocation4 + $0x1c0] sm:$0xf]
    %v1709 = vld [vmem:[#allocation4 + $0x1c4] sm:$0xf]
    %v1710 = vld [vmem:[#allocation4 + $0x1c8] sm:$0xf]
    %v1711 = vld [vmem:[#allocation4 + $0x1cc] sm:$0xf]
    %v1712 = vld [vmem:[#allocation4 + $0x1d0] sm:$0xf]
    %v1713 = vld [vmem:[#allocation4 + $0x1d4] sm:$0xf]
    %v1714 = vld [vmem:[#allocation4 + $0x1d8] sm:$0xf]
    %v1715 = vld [vmem:[#allocation4 + $0x1dc] sm:$0xf]
    %v1716 = vld [vmem:[#allocation4 + $0x1e0] sm:$0xf]
    %v1717 = vld [vmem:[#allocation4 + $0x1e4] sm:$0xf]
    %v1718 = vld [vmem:[#allocation4 + $0x1e8] sm:$0xf]
    %v1719 = vld [vmem:[#allocation4 + $0x1ec] sm:$0xf]
    %v1720 = vld [vmem:[#allocation4 + $0x1f0] sm:$0xf]
    %v1721 = vld [vmem:[#allocation4 + $0x1f4] sm:$0xf]
    %v1722 = vld [vmem:[#allocation4 + $0x1f8] sm:$0xf]
    %v1723 = vld [vmem:[#allocation4 + $0x1fc] sm:$0xf]
    %v1724 = vld [vmem:[#allocation4 + $0x200] sm:$0xf]
    %v1725 = vld [vmem:[#allocation4 + $0x204] sm:$0xf]
    %v1726 = vld [vmem:[#allocation4 + $0x208] sm:$0xf]
    %v1727 = vld [vmem:[#allocation4 + $0x20c] sm:$0xf]
    %v1728 = vld [vmem:[#allocation4 + $0x210] sm:$0xf]
    %v1729 = vld [vmem:[#allocation4 + $0x214] sm:$0xf]
    %v1730 = vld [vmem:[#allocation4 + $0x218] sm:$0xf]
    %v1731 = vld [vmem:[#allocation4 + $0x21c] sm:$0xf]
    %v1732 = vld [vmem:[#allocation4 + $0x220] sm:$0xf]
    %v1733 = vld [vmem:[#allocation4 + $0x224] sm:$0xf]
    %v1734 = vld [vmem:[#allocation4 + $0x228] sm:$0xf]
    %v1735 = vld [vmem:[#allocation4 + $0x22c] sm:$0xf]
    %v1736 = vld [vmem:[#allocation4 + $0x230] sm:$0xf]
    %v1737 = vld [vmem:[#allocation4 + $0x234] sm:$0xf]
    %v1738 = vld [vmem:[#allocation4 + $0x238] sm:$0xf]
    %v1739 = vld [vmem:[#allocation4 + $0x23c] sm:$0xf]
    %v1740 = vld [vmem:[%s4 + $0x5] ss:$0 sm:$0xff]
    %v1789 = vunpack.c.l.b16 %v1692
    %v1790 = vunpack.c.l.b16 %v1693
    %v1791 = vunpack.c.l.b16 %v1694
    %v1792 = vunpack.c.l.b16 %v1695
    %v1793 = vunpack.c.l.b16 %v1696
    %v1794 = vunpack.c.l.b16 %v1697
    %v1795 = vunpack.c.l.b16 %v1698
    %v1796 = vunpack.c.l.b16 %v1699
    %v1797 = vunpack.c.l.b16 %v1700
    %v1798 = vunpack.c.l.b16 %v1701
    %v1799 = vunpack.c.l.b16 %v1702
    %v1800 = vunpack.c.l.b16 %v1703
    %v1801 = vunpack.c.l.b16 %v1704
    %v1802 = vunpack.c.l.b16 %v1705
    %v1803 = vunpack.c.l.b16 %v1706
    %v1804 = vunpack.c.l.b16 %v1707
    %v1805 = vunpack.c.l.b16 %v1708
    %v1806 = vunpack.c.l.b16 %v1709
    %v1807 = vunpack.c.l.b16 %v1710
    %v1808 = vunpack.c.l.b16 %v1711
    %v1809 = vunpack.c.l.b16 %v1712
    %v1810 = vunpack.c.l.b16 %v1713
    %v1811 = vunpack.c.l.b16 %v1714
    %v1812 = vunpack.c.l.b16 %v1715
    %v1813 = vunpack.c.l.b16 %v1716
    %v1814 = vunpack.c.l.b16 %v1717
    %v1815 = vunpack.c.l.b16 %v1718
    %v1816 = vunpack.c.l.b16 %v1719
    %v1817 = vunpack.c.l.b16 %v1720
    %v1818 = vunpack.c.l.b16 %v1721
    %v1819 = vunpack.c.l.b16 %v1722
    %v1820 = vunpack.c.l.b16 %v1723
    %v1821 = vunpack.c.l.b16 %v1724
    %v1822 = vunpack.c.l.b16 %v1725
    %v1823 = vunpack.c.l.b16 %v1726
    %v1824 = vunpack.c.l.b16 %v1727
    %v1825 = vunpack.c.l.b16 %v1728
    %v1826 = vunpack.c.l.b16 %v1729
    %v1827 = vunpack.c.l.b16 %v1730
    %v1828 = vunpack.c.l.b16 %v1731
    %v1829 = vunpack.c.l.b16 %v1732
    %v1830 = vunpack.c.l.b16 %v1733
    %v1831 = vunpack.c.l.b16 %v1734
    %v1832 = vunpack.c.l.b16 %v1735
    %v1833 = vunpack.c.l.b16 %v1736
    %v1834 = vunpack.c.l.b16 %v1737
    %v1835 = vunpack.c.l.b16 %v1738
    %v1836 = vunpack.c.l.b16 %v1739
    %v1837 = vpack.c.b16 %v1790, %v1789
    %v1838 = vpack.c.b16 %v1792, %v1791
    %v1839 = vpack.c.b16 %v1794, %v1793
    %v1840 = vpack.c.b16 %v1796, %v1795
    %v1841 = vpack.c.b16 %v1798, %v1797
    %v1842 = vpack.c.b16 %v1800, %v1799
    %v1843 = vpack.c.b16 %v1802, %v1801
    %v1844 = vpack.c.b16 %v1804, %v1803
    %v1845 = vpack.c.b16 %v1806, %v1805
    %v1846 = vpack.c.b16 %v1808, %v1807
    %v1847 = vpack.c.b16 %v1810, %v1809
    %v1848 = vpack.c.b16 %v1812, %v1811
    %v1849 = vpack.c.b16 %v1814, %v1813
    %v1850 = vpack.c.b16 %v1816, %v1815
    %v1851 = vpack.c.b16 %v1818, %v1817
    %v1852 = vpack.c.b16 %v1820, %v1819
    %v1853 = vpack.c.b16 %v1822, %v1821
    %v1854 = vpack.c.b16 %v1824, %v1823
    %v1855 = vpack.c.b16 %v1826, %v1825
    %v1856 = vpack.c.b16 %v1828, %v1827
    %v1857 = vpack.c.b16 %v1830, %v1829
    %v1858 = vpack.c.b16 %v1832, %v1831
    %v1859 = vpack.c.b16 %v1834, %v1833
    %v1860 = vpack.c.b16 %v1836, %v1835
    %1885 = vmatpush.bf16.msra.mxu0 %v1844
    %1886 = vmatpush.bf16.msra.mxu0 %v1843
    %1887 = vmatpush.bf16.msra.mxu0 %v1842
    %1888 = vmatpush.bf16.msra.mxu0 %v1841
    %1889 = vmatpush.bf16.msra.mxu0 %v1840
    %1890 = vmatpush.bf16.msra.mxu0 %v1839
    %1891 = vmatpush.bf16.msra.mxu0 %v1838
    %1892 = vmatpush.bf16.msra.mxu0 %v1837
    %1893 = vmatmul.bf16.gmra.mxu0 %v1660
    %v1894 = vpop.f32.mrf.mxu0
    %v1895 = vadd.f32 %v1740, %v1894
    %v1896 = vpop.f32.mrf.mxu0
    %v1897 = vadd.f32 %v1740, %v1896
    %1898 = vmatmul.bf16.gmra.mxu0 %v1661
    %v1899 = vpop.f32.mrf.mxu0
    %v1900 = vadd.f32 %v1740, %v1899
    %v1901 = vpop.f32.mrf.mxu0
    %v1902 = vadd.f32 %v1740, %v1901
    %1903 = vmatmul.bf16.gmra.mxu0 %v1662
    %v1904 = vpop.f32.mrf.mxu0
    %v1905 = vadd.f32 %v1740, %v1904
    %v1906 = vpop.f32.mrf.mxu0
    %v1907 = vadd.f32 %v1740, %v1906
    %1908 = vmatmul.bf16.gmra.mxu0 %v1663
    %v1909 = vpop.f32.mrf.mxu0
    %v1910 = vadd.f32 %v1740, %v1909
    %v1911 = vpop.f32.mrf.mxu0
    %v1912 = vadd.f32 %v1740, %v1911
    %1913 = vdwg.mxu0
    %1914 = vmatpush.bf16.msra.mxu0 %v1852
    %1915 = vmatpush.bf16.msra.mxu0 %v1851
    %1916 = vmatpush.bf16.msra.mxu0 %v1850
    %1917 = vmatpush.bf16.msra.mxu0 %v1849
    %1918 = vmatpush.bf16.msra.mxu0 %v1848
    %1919 = vmatpush.bf16.msra.mxu0 %v1847
    %1920 = vmatpush.bf16.msra.mxu0 %v1846
    %1921 = vmatpush.bf16.msra.mxu0 %v1845
    %1922 = vmatmul.bf16.gmra.mxu0 %v1684
    %v1923 = vpop.f32.mrf.mxu0
    %v1924 = vadd.f32 %v1895, %v1923
    %v1925 = vpop.f32.mrf.mxu0
    %v1926 = vadd.f32 %v1897, %v1925
    %1927 = vmatmul.bf16.gmra.mxu0 %v1685
    %v1928 = vpop.f32.mrf.mxu0
    %v1929 = vadd.f32 %v1900, %v1928
    %v1930 = vpop.f32.mrf.mxu0
    %v1931 = vadd.f32 %v1902, %v1930
    %1932 = vmatmul.bf16.gmra.mxu0 %v1686
    %v1933 = vpop.f32.mrf.mxu0
    %v1934 = vadd.f32 %v1905, %v1933
    %v1935 = vpop.f32.mrf.mxu0
    %v1936 = vadd.f32 %v1907, %v1935
    %1937 = vmatmul.bf16.gmra.mxu0 %v1687
    %v1938 = vpop.f32.mrf.mxu0
    %v1939 = vadd.f32 %v1910, %v1938
    %v1940 = vpop.f32.mrf.mxu0
    %v1941 = vadd.f32 %v1912, %v1940
    %1942 = vdwg.mxu0
    %1943 = vmatpush.bf16.msra.mxu0 %v1860
    %1944 = vmatpush.bf16.msra.mxu0 %v1859
    %1945 = vmatpush.bf16.msra.mxu0 %v1858
    %1946 = vmatpush.bf16.msra.mxu0 %v1857
    %1947 = vmatpush.bf16.msra.mxu0 %v1856
    %1948 = vmatpush.bf16.msra.mxu0 %v1855
    %1949 = vmatpush.bf16.msra.mxu0 %v1854
    %1950 = vmatpush.bf16.msra.mxu0 %v1853
    %1951 = vmatmul.bf16.gmra.mxu0 %v1458
    %v1952 = vpop.f32.mrf.mxu0
    %v1953 = vadd.f32 %v1924, %v1952
    %v1954 = vpop.f32.mrf.mxu0
    %v1955 = vadd.f32 %v1926, %v1954
    %1956 = vmatmul.bf16.gmra.mxu0 %v1459
    %v1957 = vpop.f32.mrf.mxu0
    %v1958 = vadd.f32 %v1929, %v1957
    %v1959 = vpop.f32.mrf.mxu0
    %v1960 = vadd.f32 %v1931, %v1959
    %1961 = vmatmul.bf16.gmra.mxu0 %v1460
    %v1962 = vpop.f32.mrf.mxu0
    %v1963 = vadd.f32 %v1934, %v1962
    %v1964 = vpop.f32.mrf.mxu0
    %v1965 = vadd.f32 %v1936, %v1964
    %1966 = vmatmul.bf16.gmra.mxu0 %v1461
    %v1967 = vpop.f32.mrf.mxu0
    %v1968 = vadd.f32 %v1939, %v1967
    %v1969 = vpop.f32.mrf.mxu0
    %v1970 = vadd.f32 %v1941, %v1969
    %1971 = vdwg.mxu0
    %v1972 = vmax.f32 %v1953, 0.0
    %v1973 = vmax.f32 %v1955, 0.0
    %v1974 = vmax.f32 %v1958, 0.0
    %v1975 = vmax.f32 %v1960, 0.0
    %v1976 = vmax.f32 %v1963, 0.0
    %v1977 = vmax.f32 %v1965, 0.0
    %v1978 = vmax.f32 %v1968, 0.0
    %v1979 = vmax.f32 %v1970, 0.0
    %1980 = vst [vmem:[%s5] sm:$0xff] %v1972
    %1981 = vst [vmem:[%s5 + $0x8] sm:$0xff] %v1973
    %1982 = vst [vmem:[%s5 + $0x10] sm:$0xff] %v1974
    %1983 = vst [vmem:[%s5 + $0x18] sm:$0xff] %v1975
    %1984 = vst [vmem:[%s5 + $0x20] sm:$0xff] %v1976
    %1985 = vst [vmem:[%s5 + $0x28] sm:$0xff] %v1977
    %1986 = vst [vmem:[%s5 + $0x30] sm:$0xff] %v1978
    %1987 = vst [vmem:[%s5 + $0x38] sm:$0xff] %v1979
    // Predicated region
    $region30: #{_lambda_.1} parent=1 // pred_check
      _
    $region31: #{_lambda_.1} parent=1 // pred_check_branch
      %1989 = sbr.rel (0) target = $region33
    $region32: #{_lambda_.1} parent=1 // pred_region
      _
    $region33: #{_lambda_.1} parent=1 // pred_fallthru
      _
    // Predicated region
    $region34: #{_lambda_.1} parent=1 // pred_check
      _
    $region35: #{_lambda_.1} parent=1 // pred_check_branch
      %1991 = sbr.rel (0) target = $region37
    $region36: #{_lambda_.1} parent=1 // pred_region
      _
    $region37: #{_lambda_.1} parent=1 // pred_fallthru
      _
    %1992 = vsyncpa [#allocation3], 1
    %1993 = vsyncpa [#allocation5], 1

</llo_original>
